<compile_context>
chip_gen: v5e
topology: v5e:2x2
jax: 0.10.0
libtpu: 0.0.40
codegen_flags: <defaults>
</compile_context>

<pallas_src>
import numpy as np
import jax
import jax.numpy as jnp
from jax.experimental import pallas as pl
from jax.experimental.pallas import tpu as pltpu


# ----------------------------------------------------------------------------
# Init-time constant builders (pure numpy, run once -- NOT per forward pass)
# ----------------------------------------------------------------------------
def _band_mats(w_oihw, W):
    """K[dh] ((W*Cin), (W*Cout)) folds the 3 column taps, channel mixing and
    the SAME zero padding of a 3x3 conv into one banded matrix per row tap:
        sum_dh (row-shifted activations)[.,(w,ci)] @ K[dh] == conv2d(x, w, pad=1)
    K[dh][wi*Cin + ci, wo*Cout + co] = w[co, ci, dh, wi - wo + 1] (if in range).
    """
    Cout, Cin, KH, KW = w_oihw.shape
    K = np.zeros((KH, W * Cin, W * Cout), np.float32)
    for dh in range(KH):
        for wo in range(W):
            for dw in range(KW):
                wi = wo + dw - 1
                if 0 <= wi < W:
                    K[dh, wi * Cin:(wi + 1) * Cin, wo * Cout:(wo + 1) * Cout] = \
                        w_oihw[:, :, dh, dw].T
    return K


def _pool_lane_mats(W, C):
    """P[0/1] ((W*C), (W//2*C)): select even/odd image column per channel
    (column half of the 2x2 max-pool; exact 0/1 matrices)."""
    Wo = W // 2
    P = np.zeros((2, W * C, Wo * C), np.float32)
    for par in range(2):
        for wo in range(Wo):
            for c in range(C):
                P[par, (2 * wo + par) * C + c, wo * C + c] = 1.0
    return P


def _fc1_weight_blocks(fc1_w, C2, H2, W2):
    """V[ho] ((W2*C2), nhidden): fc1 weights permuted so the kernel's
    (rows=(h,b), lanes=(w,c)) layout contracts exactly like torch's NCHW
    `.view(-1, C2*H2*W2)` flatten (no runtime transpose before fc1)."""
    nh = fc1_w.shape[0]
    V = np.zeros((H2, W2 * C2, nh), np.float32)
    for ho in range(H2):
        for wo in range(W2):
            for c in range(C2):
                V[ho, wo * C2 + c, :] = fc1_w[:, c * (H2 * W2) + ho * W2 + wo]
    return V


# ----------------------------------------------------------------------------
# The single fused kernel.
# Activations rows = (image_row h, image_in_tile b), lanes = (col w, channel).
# All data movement (row taps, row pooling, flatten) is contiguous aligned
# scratch loads/stores; the MXU only sees the banded conv matrices, the 0/1
# column-pool selectors and the fc weights.
# ----------------------------------------------------------------------------
def _net_kernel(x_ref, k1_ref, b1_ref, pw1_ref, k2_ref, b2_ref, pw2_ref,
                v_ref, fb1_ref, fw2_ref, fb2_ref,
                out_ref, s1_ref, a1_ref, s2_ref, a2_ref):
    f32 = jnp.float32
    mm = x_ref.dtype                      # matmul dtype (bf16 or f32)
    Bt = out_ref.shape[0]                 # images per grid step
    N1 = x_ref.shape[0]                   # H * Bt
    H = N1 // Bt
    H1, H2 = H // 2, H // 4
    N2 = H1 * Bt

    def conv_tanh(src_ref, n_rows, k_ref, b_ref):
        # src_ref rows: [0,Bt) zeros | [Bt, Bt+n_rows) activations (h-major)
        # | [Bt+n_rows, Bt+n_rows+Bt) zeros.  The three 3x3 row taps
        # (h-1, h, h+1) are plain offset reads: no shift matmuls, no identity
        # tap, zero padding for free.
        pre = jnp.dot(src_ref[pl.ds(0, n_rows), :], k_ref[0],
                      preferred_element_type=f32)
        pre = pre + jnp.dot(src_ref[pl.ds(Bt, n_rows), :], k_ref[1],
                            preferred_element_type=f32)
        pre = pre + jnp.dot(src_ref[pl.ds(2 * Bt, n_rows), :], k_ref[2],
                            preferred_element_type=f32)
        return jnp.tanh(pre + b_ref[...]).astype(mm)     # bias added once

    def lane_pool(y, pw_ref):             # column half of the 2x2 max-pool
        return jnp.maximum(
            jnp.dot(y, pw_ref[0], preferred_element_type=f32),
            jnp.dot(y, pw_ref[1], preferred_element_type=f32)).astype(mm)

    # -------- stage 1: conv1 + tanh + 2x2 max-pool ---------------------------
    z1 = jnp.zeros((Bt, s1_ref.shape[1]), mm)
    s1_ref[pl.ds(0, Bt), :] = z1                          # image row h = -1
    s1_ref[pl.ds((H + 1) * Bt, Bt), :] = z1               # image row h = H
    s1_ref[pl.ds(Bt, N1), :] = x_ref[...]
    a1_ref[...] = lane_pool(conv_tanh(s1_ref, N1, k1_ref, b1_ref), pw1_ref)

    # Row half of pool1: max of adjacent image rows, written directly into the
    # zero-padded conv2 input scratch (no row-selection matmuls).
    z2 = jnp.zeros((Bt, s2_ref.shape[1]), mm)
    s2_ref[pl.ds(0, Bt), :] = z2
    s2_ref[pl.ds((H1 + 1) * Bt, Bt), :] = z2
    for ho in range(H1):
        s2_ref[pl.ds((ho + 1) * Bt, Bt), :] = jnp.maximum(
            a1_ref[pl.ds(2 * ho * Bt, Bt), :],
            a1_ref[pl.ds((2 * ho + 1) * Bt, Bt), :])

    # -------- stage 2: conv2 + tanh + 2x2 max-pool ---------------------------
    a2_ref[...] = lane_pool(conv_tanh(s2_ref, N2, k2_ref, b2_ref), pw2_ref)

    # -------- row half of pool2 + NCHW flatten + fc1 + tanh (fused) ----------
    # The torch NCHW flatten is folded into v_ref, so each pooled-row block
    # contracts directly against its fc1 weight slab (f32 path; tiny matmuls).
    h = None
    for ho in range(H2):
        p = jnp.maximum(a2_ref[pl.ds(2 * ho * Bt, Bt), :],
                        a2_ref[pl.ds((2 * ho + 1) * Bt, Bt), :]).astype(f32)
        d = jnp.dot(p, v_ref[ho], preferred_element_type=f32)
        h = d if h is None else h + d
    h = jnp.tanh(h + fb1_ref[...])

    # -------- fc2 ------------------------------------------------------------
    out_ref[...] = (jnp.dot(h, fw2_ref[...], preferred_element_type=f32)
                    + fb2_ref[...]).astype(out_ref.dtype)


# ----------------------------------------------------------------------------
# The Net module
# ----------------------------------------------------------------------------
class NetPallas:
    def __init__(self, nclasses, img_shape, nchans1=16, nhidden=32,
                 matmul_dtype=jnp.bfloat16, key=None):
        if key is None:
            key = jax.random.PRNGKey(0)
        nchannels, nrows, ncols = img_shape
        assert nrows % 4 == 0 and ncols % 4 == 0
        self.nchannels, self.nrows, self.ncols = nchannels, nrows, ncols
        self.nchans1 = nchans1
        self.nchans2 = nchans1 // 2
        self.nhidden = nhidden
        self.nclasses = nclasses
        self.nflat = nrows // 4 * ncols // 4          # same expression as torch
        self.mm_dtype = matmul_dtype
        nin = self.nchans2 * self.nflat

        keys = jax.random.split(key, 8)

        def u(k, shape, fan_in):
            bound = 1.0 / np.sqrt(fan_in)
            return jax.random.uniform(k, shape, jnp.float32, -bound, bound)

        # PyTorch-layout parameters (source of truth for the reference).
        self.w1 = u(keys[0], (nchans1, nchannels, 3, 3), 9 * nchannels)   # OIHW
        self.b1 = u(keys[1], (nchans1,), 9 * nchannels)
        self.w2 = u(keys[2], (self.nchans2, nchans1, 3, 3), 9 * nchans1)  # OIHW
        self.b2 = u(keys[3], (self.nchans2,), 9 * nchans1)
        self.fc1_w = u(keys[4], (nhidden, nin), nin)                      # (out, in)
        self.fc1_b = u(keys[5], (nhidden,), nin)
        self.fc2_w = u(keys[6], (nclasses, nhidden), nhidden)
        self.fc2_b = u(keys[7], (nclasses,), nhidden)

        self._build_weight_constants()

    # ---- weight-only constants (batch independent, built once) -------------
    def _build_weight_constants(self):
        W, W1, W2 = self.ncols, self.ncols // 2, self.ncols // 4
        H2 = self.nrows // 4
        mm = self.mm_dtype
        self.K1 = jnp.asarray(_band_mats(np.asarray(self.w1), W), mm)
        self.K2 = jnp.asarray(_band_mats(np.asarray(self.w2), W1), mm)
        self.PW1 = jnp.asarray(_pool_lane_mats(W, self.nchans1), mm)
        self.PW2 = jnp.asarray(_pool_lane_mats(W1, self.nchans2), mm)
        self.b1t = jnp.asarray(np.tile(np.asarray(self.b1), W)[None, :],
                               jnp.float32)
        self.b2t = jnp.asarray(np.tile(np.asarray(self.b2), W1)[None, :],
                               jnp.float32)
        # fc path stays f32 (tiny matmuls; keeps bf16-mode error small).
        self.Vblk = jnp.asarray(
            _fc1_weight_blocks(np.asarray(self.fc1_w), self.nchans2, H2, W2),
            jnp.float32)
        self.fb1t = jnp.asarray(np.asarray(self.fc1_b)[None, :], jnp.float32)
        self.fw2m = jnp.asarray(np.asarray(self.fc2_w).T, jnp.float32)
        self.fb2t = jnp.asarray(np.asarray(self.fc2_b)[None, :], jnp.float32)

    # ---- forward ------------------------------------------------------------
    def __call__(self, x_nchw):
        B, C, H, W = x_nchw.shape
        assert (C, H, W) == (self.nchannels, self.nrows, self.ncols)
        H1 = H // 2
        C1, C2 = self.nchans1, self.nchans2
        L1, L2, L3 = W * C, (W // 2) * C1, (W // 4) * C2

        # Batch tiling: 32 images per step for big batches (amortizes the
        # ~0.35us/step pipeline overhead and fills the MXU), 16 for small ones;
        # always >= 2 grid steps so both v7x TensorCores get work.  Tiles are
        # multiples of 16, so every scratch row offset in the kernel stays
        # aligned even for bf16 sublane packing.
        Bt = 32 if B > 32 else 16
        T = max(2, -(-B // Bt))
        Bp = T * Bt
        if Bp != B:
            x_nchw = jnp.concatenate(
                [x_nchw, jnp.zeros((Bp - B, C, H, W), x_nchw.dtype)], axis=0)

        # Per-call glue: NCHW -> rows=(tile, image_row, image_in_tile),
        # lanes=(col, channel).  With h-major rows, conv row taps and both
        # pooling halves become contiguous aligned scratch reads in-kernel.
        # TODO(synk): fold this relayout into the kernel's input DMA
        # (memory_space=pl.ANY + manual copies) to save one HBM pass on large
        # inputs.
        x0 = (x_nchw.reshape(T, Bt, C, H, W)
                     .transpose(0, 3, 1, 4, 2)            # (T, H, Bt, W, C)
                     .reshape(T * H * Bt, L1)
                     .astype(self.mm_dtype))

        consts = (self.K1, self.b1t, self.PW1, self.K2, self.b2t, self.PW2,
                  self.Vblk, self.fb1t, self.fw2m, self.fb2t)

        # Constant operands: full-array blocks with a constant index_map, so
        # the pipeline only fetches them once (total ~0.3 MiB; the default
        # double buffering costs nothing that matters on any generation).
        def _const_spec(a):
            nd = a.ndim
            return pl.BlockSpec(a.shape, lambda i, _nd=nd: (0,) * _nd)

        out = pl.pallas_call(
            _net_kernel,
            out_shape=jax.ShapeDtypeStruct((Bp, self.nclasses), jnp.float32),
            grid=(T,),
            in_specs=[pl.BlockSpec((H * Bt, L1), lambda i: (i, 0))]
                     + [_const_spec(a) for a in consts],
            out_specs=pl.BlockSpec((Bt, self.nclasses), lambda i: (i, 0)),
            scratch_shapes=[
                pltpu.VMEM(((H + 2) * Bt, L1), self.mm_dtype),   # zero-padded conv1 in
                pltpu.VMEM((H * Bt, L2), self.mm_dtype),         # stage-1 col-pooled
                pltpu.VMEM(((H1 + 2) * Bt, L2), self.mm_dtype),  # zero-padded conv2 in
                pltpu.VMEM((H1 * Bt, L3), self.mm_dtype),        # stage-2 col-pooled
            ],
            compiler_params=pltpu.CompilerParams(
                dimension_semantics=("parallel",)),
        )(x0, *consts)

        return out[:B]


# ----------------------------------------------------------------------------
# Pure-JAX reference (for correctness check)
# ----------------------------------------------------------------------------
def reference_forward(model, x_nchw):
    hp = jax.lax.Precision.HIGHEST

    def conv(x, w, b):
        y = jax.lax.conv_general_dilated(
            x, w, (1, 1), 'SAME',
            dimension_numbers=('NCHW', 'OIHW', 'NCHW'), precision=hp)
        return y + b[None, :, None, None]

    def pool(x):
        return jax.lax.reduce_window(x, -jnp.inf, jax.lax.max,
                                     (1, 1, 2, 2), (1, 1, 2, 2), 'VALID')

    y = pool(jnp.tanh(conv(x_nchw, model.w1, model.b1)))
    y = pool(jnp.tanh(conv(y, model.w2, model.b2)))
    y = y.reshape(y.shape[0], -1)                      # NCHW flatten, like torch
    h = jnp.tanh(jnp.dot(y, model.fc1_w.T, precision=hp) + model.fc1_b)
    return jnp.dot(h, model.fc2_w.T, precision=hp) + model.fc2_b


if __name__ == "__main__":
    key = jax.random.PRNGKey(0)
    kx, kp = jax.random.split(key)
    B, C, H, W = 2, 4, 16, 16
    x = jax.random.normal(kx, (B, C, H, W), jnp.float32)    # NCHW like torch

    # f32 MXU path: tight check against the HIGHEST-precision XLA reference.
    model_f32 = NetPallas(nclasses=10, img_shape=(C, H, W), nchans1=16,
                          nhidden=32, matmul_dtype=jnp.float32, key=kp)
    out_f32 = jax.block_until_ready(model_f32(x))
    ref = jax.block_until_ready(reference_forward(model_f32, x))
    assert out_f32.shape == (B, 10), out_f32.shape
    np.testing.assert_allclose(np.asarray(out_f32), np.asarray(ref),
                               rtol=2e-3, atol=2e-3)

    # bf16 MXU path (production default, native MXU on v5e/v6e/v7x): same
    # params, f32 accumulation, bf16-level tolerance.
    model_bf16 = NetPallas(nclasses=10, img_shape=(C, H, W), nchans1=16,
                           nhidden=32, matmul_dtype=jnp.bfloat16, key=kp)
    out_bf16 = jax.block_until_ready(model_bf16(x))
    assert out_bf16.shape == (B, 10), out_bf16.shape
    np.testing.assert_allclose(np.asarray(out_bf16), np.asarray(ref),
                               rtol=3e-2, atol=3e-2)

    print("KERNEL_OK")
</pallas_src>

<mosaic_0001>
module attributes {stable_mosaic.version = 11 : i64} {
  func.func @_net_kernel(%arg0: i32, %arg1: memref<256x64xf32, #tpu.memory_space<vmem>>, %arg2: memref<3x64x256xf32, #tpu.memory_space<vmem>>, %arg3: memref<1x256xf32, #tpu.memory_space<vmem>>, %arg4: memref<2x256x128xf32, #tpu.memory_space<vmem>>, %arg5: memref<3x128x64xf32, #tpu.memory_space<vmem>>, %arg6: memref<1x64xf32, #tpu.memory_space<vmem>>, %arg7: memref<2x64x32xf32, #tpu.memory_space<vmem>>, %arg8: memref<4x32x32xf32, #tpu.memory_space<vmem>>, %arg9: memref<1x32xf32, #tpu.memory_space<vmem>>, %arg10: memref<32x10xf32, #tpu.memory_space<vmem>>, %arg11: memref<1x10xf32, #tpu.memory_space<vmem>>, %arg12: memref<16x10xf32, #tpu.memory_space<vmem>>, %arg13: memref<288x64xf32, #tpu.memory_space<vmem>>, %arg14: memref<256x128xf32, #tpu.memory_space<vmem>>, %arg15: memref<160x128xf32, #tpu.memory_space<vmem>>, %arg16: memref<128x32xf32, #tpu.memory_space<vmem>>) attributes {dimension_semantics = [#tpu.dimension_semantics<parallel>], iteration_bounds = array<i64: 2>, scalar_prefetch = 0 : i64, scratch_operands = 4 : i64, tpu.core_type = #tpu.core_type<tc>, window_params = [{transform_indices = @transform_0, window_bounds = array<i64: 256, 64>}, {pipeline_mode = #tpu.pipeline_mode<synchronous>, transform_indices = @transform_1, window_bounds = array<i64: 3, 64, 256>}, {pipeline_mode = #tpu.pipeline_mode<synchronous>, transform_indices = @transform_2, window_bounds = array<i64: 1, 256>}, {pipeline_mode = #tpu.pipeline_mode<synchronous>, transform_indices = @transform_3, window_bounds = array<i64: 2, 256, 128>}, {pipeline_mode = #tpu.pipeline_mode<synchronous>, transform_indices = @transform_4, window_bounds = array<i64: 3, 128, 64>}, {pipeline_mode = #tpu.pipeline_mode<synchronous>, transform_indices = @transform_5, window_bounds = array<i64: 1, 64>}, {pipeline_mode = #tpu.pipeline_mode<synchronous>, transform_indices = @transform_6, window_bounds = array<i64: 2, 64, 32>}, {pipeline_mode = #tpu.pipeline_mode<synchronous>, transform_indices = @transform_7, window_bounds = array<i64: 4, 32, 32>}, {pipeline_mode = #tpu.pipeline_mode<synchronous>, transform_indices = @transform_8, window_bounds = array<i64: 1, 32>}, {pipeline_mode = #tpu.pipeline_mode<synchronous>, transform_indices = @transform_9, window_bounds = array<i64: 32, 10>}, {pipeline_mode = #tpu.pipeline_mode<synchronous>, transform_indices = @transform_10, window_bounds = array<i64: 1, 10>}, {transform_indices = @transform_11, window_bounds = array<i64: 16, 10>}]} {
    %cst = arith.constant 0.000000e+00 : f32
    %0 = vector.broadcast %cst : f32 to vector<16x64xf32>
    %c0 = arith.constant 0 : index
    %c0_0 = arith.constant 0 : index
    %1 = vector.load %arg13[%c0, %c0_0] : memref<288x64xf32, #tpu.memory_space<vmem>>, vector<16x64xf32>
    tpu.vector_store %arg13[%c0, %c0_0], %0 {strides = array<i32>} : memref<288x64xf32, #tpu.memory_space<vmem>>, vector<16x64xf32>,
    %c272 = arith.constant 272 : index
    %c0_1 = arith.constant 0 : index
    %2 = vector.load %arg13[%c272, %c0_1] : memref<288x64xf32, #tpu.memory_space<vmem>>, vector<16x64xf32>
    tpu.vector_store %arg13[%c272, %c0_1], %0 {strides = array<i32>} : memref<288x64xf32, #tpu.memory_space<vmem>>, vector<16x64xf32>,
    %c0_2 = arith.constant 0 : index
    %c0_3 = arith.constant 0 : index
    %3 = vector.load %arg1[%c0_2, %c0_3] : memref<256x64xf32, #tpu.memory_space<vmem>>, vector<256x64xf32>
    %c16 = arith.constant 16 : index
    %c0_4 = arith.constant 0 : index
    %4 = vector.load %arg13[%c16, %c0_4] : memref<288x64xf32, #tpu.memory_space<vmem>>, vector<256x64xf32>
    tpu.vector_store %arg13[%c16, %c0_4], %3 {strides = array<i32>} : memref<288x64xf32, #tpu.memory_space<vmem>>, vector<256x64xf32>,
    %c0_5 = arith.constant 0 : index
    %c0_6 = arith.constant 0 : index
    %5 = vector.load %arg13[%c0_5, %c0_6] : memref<288x64xf32, #tpu.memory_space<vmem>>, vector<256x64xf32>
    %c0_7 = arith.constant 0 : index
    %c0_8 = arith.constant 0 : index
    %c0_9 = arith.constant 0 : index
    %6 = vector.load %arg2[%c0_7, %c0_8, %c0_9] : memref<3x64x256xf32, #tpu.memory_space<vmem>>, vector<1x64x256xf32>
    %7 = vector.shape_cast %6 : vector<1x64x256xf32> to vector<64x256xf32>
    %cst_10 = arith.constant dense<0.000000e+00> : vector<256x256xf32>
    %8 = tpu.matmul %5, %7, %cst_10 {dimension_numbers = #tpu.dot_dimension_numbers<[1], [0], [0], [1], [0, 0, 1, 1], [], []>} : vector<256x64xf32>, vector<64x256xf32>, vector<256x256xf32> -> vector<256x256xf32>
    %c16_11 = arith.constant 16 : index
    %c0_12 = arith.constant 0 : index
    %9 = vector.load %arg13[%c16_11, %c0_12] : memref<288x64xf32, #tpu.memory_space<vmem>>, vector<256x64xf32>
    %c1 = arith.constant 1 : index
    %c0_13 = arith.constant 0 : index
    %c0_14 = arith.constant 0 : index
    %10 = vector.load %arg2[%c1, %c0_13, %c0_14] : memref<3x64x256xf32, #tpu.memory_space<vmem>>, vector<1x64x256xf32>
    %11 = vector.shape_cast %10 : vector<1x64x256xf32> to vector<64x256xf32>
    %cst_15 = arith.constant dense<0.000000e+00> : vector<256x256xf32>
    %12 = tpu.matmul %9, %11, %cst_15 {dimension_numbers = #tpu.dot_dimension_numbers<[1], [0], [0], [1], [0, 0, 1, 1], [], []>} : vector<256x64xf32>, vector<64x256xf32>, vector<256x256xf32> -> vector<256x256xf32>
    %13 = arith.addf %8, %12 : vector<256x256xf32>
    %c32 = arith.constant 32 : index
    %c0_16 = arith.constant 0 : index
    %14 = vector.load %arg13[%c32, %c0_16] : memref<288x64xf32, #tpu.memory_space<vmem>>, vector<256x64xf32>
    %c2 = arith.constant 2 : index
    %c0_17 = arith.constant 0 : index
    %c0_18 = arith.constant 0 : index
    %15 = vector.load %arg2[%c2, %c0_17, %c0_18] : memref<3x64x256xf32, #tpu.memory_space<vmem>>, vector<1x64x256xf32>
    %16 = vector.shape_cast %15 : vector<1x64x256xf32> to vector<64x256xf32>
    %cst_19 = arith.constant dense<0.000000e+00> : vector<256x256xf32>
    %17 = tpu.matmul %14, %16, %cst_19 {dimension_numbers = #tpu.dot_dimension_numbers<[1], [0], [0], [1], [0, 0, 1, 1], [], []>} : vector<256x64xf32>, vector<64x256xf32>, vector<256x256xf32> -> vector<256x256xf32>
    %18 = arith.addf %13, %17 : vector<256x256xf32>
    %c0_20 = arith.constant 0 : index
    %c0_21 = arith.constant 0 : index
    %19 = vector.load %arg3[%c0_20, %c0_21] : memref<1x256xf32, #tpu.memory_space<vmem>>, vector<1x256xf32>
    %20 = vector.broadcast %19 : vector<1x256xf32> to vector<256x256xf32>
    %21 = arith.addf %18, %20 : vector<256x256xf32>
    %22 = math.tanh %21 : vector<256x256xf32>
    %c0_22 = arith.constant 0 : index
    %c0_23 = arith.constant 0 : index
    %c0_24 = arith.constant 0 : index
    %23 = vector.load %arg4[%c0_22, %c0_23, %c0_24] : memref<2x256x128xf32, #tpu.memory_space<vmem>>, vector<1x256x128xf32>
    %24 = vector.shape_cast %23 : vector<1x256x128xf32> to vector<256x128xf32>
    %cst_25 = arith.constant dense<0.000000e+00> : vector<256x128xf32>
    %25 = tpu.matmul %22, %24, %cst_25 {dimension_numbers = #tpu.dot_dimension_numbers<[1], [0], [0], [1], [0, 0, 1, 1], [], []>} : vector<256x256xf32>, vector<256x128xf32>, vector<256x128xf32> -> vector<256x128xf32>
    %c1_26 = arith.constant 1 : index
    %c0_27 = arith.constant 0 : index
    %c0_28 = arith.constant 0 : index
    %26 = vector.load %arg4[%c1_26, %c0_27, %c0_28] : memref<2x256x128xf32, #tpu.memory_space<vmem>>, vector<1x256x128xf32>
    %27 = vector.shape_cast %26 : vector<1x256x128xf32> to vector<256x128xf32>
    %cst_29 = arith.constant dense<0.000000e+00> : vector<256x128xf32>
    %28 = tpu.matmul %22, %27, %cst_29 {dimension_numbers = #tpu.dot_dimension_numbers<[1], [0], [0], [1], [0, 0, 1, 1], [], []>} : vector<256x256xf32>, vector<256x128xf32>, vector<256x128xf32> -> vector<256x128xf32>
    %29 = arith.maximumf %25, %28 : vector<256x128xf32>
    %c0_30 = arith.constant 0 : index
    %c0_31 = arith.constant 0 : index
    %30 = vector.load %arg14[%c0_30, %c0_31] : memref<256x128xf32, #tpu.memory_space<vmem>>, vector<256x128xf32>
    tpu.vector_store %arg14[%c0_30, %c0_31], %29 {strides = array<i32>} : memref<256x128xf32, #tpu.memory_space<vmem>>, vector<256x128xf32>,
    %cst_32 = arith.constant 0.000000e+00 : f32
    %31 = vector.broadcast %cst_32 : f32 to vector<16x128xf32>
    %c0_33 = arith.constant 0 : index
    %c0_34 = arith.constant 0 : index
    %32 = vector.load %arg15[%c0_33, %c0_34] : memref<160x128xf32, #tpu.memory_space<vmem>>, vector<16x128xf32>
    tpu.vector_store %arg15[%c0_33, %c0_34], %31 {strides = array<i32>} : memref<160x128xf32, #tpu.memory_space<vmem>>, vector<16x128xf32>,
    %c144 = arith.constant 144 : index
    %c0_35 = arith.constant 0 : index
    %33 = vector.load %arg15[%c144, %c0_35] : memref<160x128xf32, #tpu.memory_space<vmem>>, vector<16x128xf32>
    tpu.vector_store %arg15[%c144, %c0_35], %31 {strides = array<i32>} : memref<160x128xf32, #tpu.memory_space<vmem>>, vector<16x128xf32>,
    %c0_36 = arith.constant 0 : index
    %c0_37 = arith.constant 0 : index
    %34 = vector.load %arg14[%c0_36, %c0_37] : memref<256x128xf32, #tpu.memory_space<vmem>>, vector<16x128xf32>
    %c16_38 = arith.constant 16 : index
    %c0_39 = arith.constant 0 : index
    %35 = vector.load %arg14[%c16_38, %c0_39] : memref<256x128xf32, #tpu.memory_space<vmem>>, vector<16x128xf32>
    %36 = arith.maximumf %34, %35 : vector<16x128xf32>
    %c16_40 = arith.constant 16 : index
    %c0_41 = arith.constant 0 : index
    %37 = vector.load %arg15[%c16_40, %c0_41] : memref<160x128xf32, #tpu.memory_space<vmem>>, vector<16x128xf32>
    tpu.vector_store %arg15[%c16_40, %c0_41], %36 {strides = array<i32>} : memref<160x128xf32, #tpu.memory_space<vmem>>, vector<16x128xf32>,
    %c32_42 = arith.constant 32 : index
    %c0_43 = arith.constant 0 : index
    %38 = vector.load %arg14[%c32_42, %c0_43] : memref<256x128xf32, #tpu.memory_space<vmem>>, vector<16x128xf32>
    %c48 = arith.constant 48 : index
    %c0_44 = arith.constant 0 : index
    %39 = vector.load %arg14[%c48, %c0_44] : memref<256x128xf32, #tpu.memory_space<vmem>>, vector<16x128xf32>
    %40 = arith.maximumf %38, %39 : vector<16x128xf32>
    %c32_45 = arith.constant 32 : index
    %c0_46 = arith.constant 0 : index
    %41 = vector.load %arg15[%c32_45, %c0_46] : memref<160x128xf32, #tpu.memory_space<vmem>>, vector<16x128xf32>
    tpu.vector_store %arg15[%c32_45, %c0_46], %40 {strides = array<i32>} : memref<160x128xf32, #tpu.memory_space<vmem>>, vector<16x128xf32>,
    %c64 = arith.constant 64 : index
    %c0_47 = arith.constant 0 : index
    %42 = vector.load %arg14[%c64, %c0_47] : memref<256x128xf32, #tpu.memory_space<vmem>>, vector<16x128xf32>
    %c80 = arith.constant 80 : index
    %c0_48 = arith.constant 0 : index
    %43 = vector.load %arg14[%c80, %c0_48] : memref<256x128xf32, #tpu.memory_space<vmem>>, vector<16x128xf32>
    %44 = arith.maximumf %42, %43 : vector<16x128xf32>
    %c48_49 = arith.constant 48 : index
    %c0_50 = arith.constant 0 : index
    %45 = vector.load %arg15[%c48_49, %c0_50] : memref<160x128xf32, #tpu.memory_space<vmem>>, vector<16x128xf32>
    tpu.vector_store %arg15[%c48_49, %c0_50], %44 {strides = array<i32>} : memref<160x128xf32, #tpu.memory_space<vmem>>, vector<16x128xf32>,
    %c96 = arith.constant 96 : index
    %c0_51 = arith.constant 0 : index
    %46 = vector.load %arg14[%c96, %c0_51] : memref<256x128xf32, #tpu.memory_space<vmem>>, vector<16x128xf32>
    %c112 = arith.constant 112 : index
    %c0_52 = arith.constant 0 : index
    %47 = vector.load %arg14[%c112, %c0_52] : memref<256x128xf32, #tpu.memory_space<vmem>>, vector<16x128xf32>
    %48 = arith.maximumf %46, %47 : vector<16x128xf32>
    %c64_53 = arith.constant 64 : index
    %c0_54 = arith.constant 0 : index
    %49 = vector.load %arg15[%c64_53, %c0_54] : memref<160x128xf32, #tpu.memory_space<vmem>>, vector<16x128xf32>
    tpu.vector_store %arg15[%c64_53, %c0_54], %48 {strides = array<i32>} : memref<160x128xf32, #tpu.memory_space<vmem>>, vector<16x128xf32>,
    %c128 = arith.constant 128 : index
    %c0_55 = arith.constant 0 : index
    %50 = vector.load %arg14[%c128, %c0_55] : memref<256x128xf32, #tpu.memory_space<vmem>>, vector<16x128xf32>
    %c144_56 = arith.constant 144 : index
    %c0_57 = arith.constant 0 : index
    %51 = vector.load %arg14[%c144_56, %c0_57] : memref<256x128xf32, #tpu.memory_space<vmem>>, vector<16x128xf32>
    %52 = arith.maximumf %50, %51 : vector<16x128xf32>
    %c80_58 = arith.constant 80 : index
    %c0_59 = arith.constant 0 : index
    %53 = vector.load %arg15[%c80_58, %c0_59] : memref<160x128xf32, #tpu.memory_space<vmem>>, vector<16x128xf32>
    tpu.vector_store %arg15[%c80_58, %c0_59], %52 {strides = array<i32>} : memref<160x128xf32, #tpu.memory_space<vmem>>, vector<16x128xf32>,
    %c160 = arith.constant 160 : index
    %c0_60 = arith.constant 0 : index
    %54 = vector.load %arg14[%c160, %c0_60] : memref<256x128xf32, #tpu.memory_space<vmem>>, vector<16x128xf32>
    %c176 = arith.constant 176 : index
    %c0_61 = arith.constant 0 : index
    %55 = vector.load %arg14[%c176, %c0_61] : memref<256x128xf32, #tpu.memory_space<vmem>>, vector<16x128xf32>
    %56 = arith.maximumf %54, %55 : vector<16x128xf32>
    %c96_62 = arith.constant 96 : index
    %c0_63 = arith.constant 0 : index
    %57 = vector.load %arg15[%c96_62, %c0_63] : memref<160x128xf32, #tpu.memory_space<vmem>>, vector<16x128xf32>
    tpu.vector_store %arg15[%c96_62, %c0_63], %56 {strides = array<i32>} : memref<160x128xf32, #tpu.memory_space<vmem>>, vector<16x128xf32>,
    %c192 = arith.constant 192 : index
    %c0_64 = arith.constant 0 : index
    %58 = vector.load %arg14[%c192, %c0_64] : memref<256x128xf32, #tpu.memory_space<vmem>>, vector<16x128xf32>
    %c208 = arith.constant 208 : index
    %c0_65 = arith.constant 0 : index
    %59 = vector.load %arg14[%c208, %c0_65] : memref<256x128xf32, #tpu.memory_space<vmem>>, vector<16x128xf32>
    %60 = arith.maximumf %58, %59 : vector<16x128xf32>
    %c112_66 = arith.constant 112 : index
    %c0_67 = arith.constant 0 : index
    %61 = vector.load %arg15[%c112_66, %c0_67] : memref<160x128xf32, #tpu.memory_space<vmem>>, vector<16x128xf32>
    tpu.vector_store %arg15[%c112_66, %c0_67], %60 {strides = array<i32>} : memref<160x128xf32, #tpu.memory_space<vmem>>, vector<16x128xf32>,
    %c224 = arith.constant 224 : index
    %c0_68 = arith.constant 0 : index
    %62 = vector.load %arg14[%c224, %c0_68] : memref<256x128xf32, #tpu.memory_space<vmem>>, vector<16x128xf32>
    %c240 = arith.constant 240 : index
    %c0_69 = arith.constant 0 : index
    %63 = vector.load %arg14[%c240, %c0_69] : memref<256x128xf32, #tpu.memory_space<vmem>>, vector<16x128xf32>
    %64 = arith.maximumf %62, %63 : vector<16x128xf32>
    %c128_70 = arith.constant 128 : index
    %c0_71 = arith.constant 0 : index
    %65 = vector.load %arg15[%c128_70, %c0_71] : memref<160x128xf32, #tpu.memory_space<vmem>>, vector<16x128xf32>
    tpu.vector_store %arg15[%c128_70, %c0_71], %64 {strides = array<i32>} : memref<160x128xf32, #tpu.memory_space<vmem>>, vector<16x128xf32>,
    %c0_72 = arith.constant 0 : index
    %c0_73 = arith.constant 0 : index
    %66 = vector.load %arg15[%c0_72, %c0_73] : memref<160x128xf32, #tpu.memory_space<vmem>>, vector<128x128xf32>
    %c0_74 = arith.constant 0 : index
    %c0_75 = arith.constant 0 : index
    %c0_76 = arith.constant 0 : index
    %67 = vector.load %arg5[%c0_74, %c0_75, %c0_76] : memref<3x128x64xf32, #tpu.memory_space<vmem>>, vector<1x128x64xf32>
    %68 = vector.shape_cast %67 : vector<1x128x64xf32> to vector<128x64xf32>
    %cst_77 = arith.constant dense<0.000000e+00> : vector<128x64xf32>
    %69 = tpu.matmul %66, %68, %cst_77 {dimension_numbers = #tpu.dot_dimension_numbers<[1], [0], [0], [1], [0, 0, 1, 1], [], []>} : vector<128x128xf32>, vector<128x64xf32>, vector<128x64xf32> -> vector<128x64xf32>
    %c16_78 = arith.constant 16 : index
    %c0_79 = arith.constant 0 : index
    %70 = vector.load %arg15[%c16_78, %c0_79] : memref<160x128xf32, #tpu.memory_space<vmem>>, vector<128x128xf32>
    %c1_80 = arith.constant 1 : index
    %c0_81 = arith.constant 0 : index
    %c0_82 = arith.constant 0 : index
    %71 = vector.load %arg5[%c1_80, %c0_81, %c0_82] : memref<3x128x64xf32, #tpu.memory_space<vmem>>, vector<1x128x64xf32>
    %72 = vector.shape_cast %71 : vector<1x128x64xf32> to vector<128x64xf32>
    %cst_83 = arith.constant dense<0.000000e+00> : vector<128x64xf32>
    %73 = tpu.matmul %70, %72, %cst_83 {dimension_numbers = #tpu.dot_dimension_numbers<[1], [0], [0], [1], [0, 0, 1, 1], [], []>} : vector<128x128xf32>, vector<128x64xf32>, vector<128x64xf32> -> vector<128x64xf32>
    %74 = arith.addf %69, %73 : vector<128x64xf32>
    %c32_84 = arith.constant 32 : index
    %c0_85 = arith.constant 0 : index
    %75 = vector.load %arg15[%c32_84, %c0_85] : memref<160x128xf32, #tpu.memory_space<vmem>>, vector<128x128xf32>
    %c2_86 = arith.constant 2 : index
    %c0_87 = arith.constant 0 : index
    %c0_88 = arith.constant 0 : index
    %76 = vector.load %arg5[%c2_86, %c0_87, %c0_88] : memref<3x128x64xf32, #tpu.memory_space<vmem>>, vector<1x128x64xf32>
    %77 = vector.shape_cast %76 : vector<1x128x64xf32> to vector<128x64xf32>
    %cst_89 = arith.constant dense<0.000000e+00> : vector<128x64xf32>
    %78 = tpu.matmul %75, %77, %cst_89 {dimension_numbers = #tpu.dot_dimension_numbers<[1], [0], [0], [1], [0, 0, 1, 1], [], []>} : vector<128x128xf32>, vector<128x64xf32>, vector<128x64xf32> -> vector<128x64xf32>
    %79 = arith.addf %74, %78 : vector<128x64xf32>
    %c0_90 = arith.constant 0 : index
    %c0_91 = arith.constant 0 : index
    %80 = vector.load %arg6[%c0_90, %c0_91] : memref<1x64xf32, #tpu.memory_space<vmem>>, vector<1x64xf32>
    %81 = vector.broadcast %80 : vector<1x64xf32> to vector<128x64xf32>
    %82 = arith.addf %79, %81 : vector<128x64xf32>
    %83 = math.tanh %82 : vector<128x64xf32>
    %c0_92 = arith.constant 0 : index
    %c0_93 = arith.constant 0 : index
    %c0_94 = arith.constant 0 : index
    %84 = vector.load %arg7[%c0_92, %c0_93, %c0_94] : memref<2x64x32xf32, #tpu.memory_space<vmem>>, vector<1x64x32xf32>
    %85 = vector.shape_cast %84 : vector<1x64x32xf32> to vector<64x32xf32>
    %cst_95 = arith.constant dense<0.000000e+00> : vector<128x32xf32>
    %86 = tpu.matmul %83, %85, %cst_95 {dimension_numbers = #tpu.dot_dimension_numbers<[1], [0], [0], [1], [0, 0, 1, 1], [], []>} : vector<128x64xf32>, vector<64x32xf32>, vector<128x32xf32> -> vector<128x32xf32>
    %c1_96 = arith.constant 1 : index
    %c0_97 = arith.constant 0 : index
    %c0_98 = arith.constant 0 : index
    %87 = vector.load %arg7[%c1_96, %c0_97, %c0_98] : memref<2x64x32xf32, #tpu.memory_space<vmem>>, vector<1x64x32xf32>
    %88 = vector.shape_cast %87 : vector<1x64x32xf32> to vector<64x32xf32>
    %cst_99 = arith.constant dense<0.000000e+00> : vector<128x32xf32>
    %89 = tpu.matmul %83, %88, %cst_99 {dimension_numbers = #tpu.dot_dimension_numbers<[1], [0], [0], [1], [0, 0, 1, 1], [], []>} : vector<128x64xf32>, vector<64x32xf32>, vector<128x32xf32> -> vector<128x32xf32>
    %90 = arith.maximumf %86, %89 : vector<128x32xf32>
    %c0_100 = arith.constant 0 : index
    %c0_101 = arith.constant 0 : index
    %91 = vector.load %arg16[%c0_100, %c0_101] : memref<128x32xf32, #tpu.memory_space<vmem>>, vector<128x32xf32>
    tpu.vector_store %arg16[%c0_100, %c0_101], %90 {strides = array<i32>} : memref<128x32xf32, #tpu.memory_space<vmem>>, vector<128x32xf32>,
    %c0_102 = arith.constant 0 : index
    %c0_103 = arith.constant 0 : index
    %92 = vector.load %arg16[%c0_102, %c0_103] : memref<128x32xf32, #tpu.memory_space<vmem>>, vector<16x32xf32>
    %c16_104 = arith.constant 16 : index
    %c0_105 = arith.constant 0 : index
    %93 = vector.load %arg16[%c16_104, %c0_105] : memref<128x32xf32, #tpu.memory_space<vmem>>, vector<16x32xf32>
    %94 = arith.maximumf %92, %93 : vector<16x32xf32>
    %c0_106 = arith.constant 0 : index
    %c0_107 = arith.constant 0 : index
    %c0_108 = arith.constant 0 : index
    %95 = vector.load %arg8[%c0_106, %c0_107, %c0_108] : memref<4x32x32xf32, #tpu.memory_space<vmem>>, vector<1x32x32xf32>
    %96 = vector.shape_cast %95 : vector<1x32x32xf32> to vector<32x32xf32>
    %cst_109 = arith.constant dense<0.000000e+00> : vector<16x32xf32>
    %97 = tpu.matmul %94, %96, %cst_109 {dimension_numbers = #tpu.dot_dimension_numbers<[1], [0], [0], [1], [0, 0, 1, 1], [], []>} : vector<16x32xf32>, vector<32x32xf32>, vector<16x32xf32> -> vector<16x32xf32>
    %c32_110 = arith.constant 32 : index
    %c0_111 = arith.constant 0 : index
    %98 = vector.load %arg16[%c32_110, %c0_111] : memref<128x32xf32, #tpu.memory_space<vmem>>, vector<16x32xf32>
    %c48_112 = arith.constant 48 : index
    %c0_113 = arith.constant 0 : index
    %99 = vector.load %arg16[%c48_112, %c0_113] : memref<128x32xf32, #tpu.memory_space<vmem>>, vector<16x32xf32>
    %100 = arith.maximumf %98, %99 : vector<16x32xf32>
    %c1_114 = arith.constant 1 : index
    %c0_115 = arith.constant 0 : index
    %c0_116 = arith.constant 0 : index
    %101 = vector.load %arg8[%c1_114, %c0_115, %c0_116] : memref<4x32x32xf32, #tpu.memory_space<vmem>>, vector<1x32x32xf32>
    %102 = vector.shape_cast %101 : vector<1x32x32xf32> to vector<32x32xf32>
    %cst_117 = arith.constant dense<0.000000e+00> : vector<16x32xf32>
    %103 = tpu.matmul %100, %102, %cst_117 {dimension_numbers = #tpu.dot_dimension_numbers<[1], [0], [0], [1], [0, 0, 1, 1], [], []>} : vector<16x32xf32>, vector<32x32xf32>, vector<16x32xf32> -> vector<16x32xf32>
    %104 = arith.addf %97, %103 : vector<16x32xf32>
    %c64_118 = arith.constant 64 : index
    %c0_119 = arith.constant 0 : index
    %105 = vector.load %arg16[%c64_118, %c0_119] : memref<128x32xf32, #tpu.memory_space<vmem>>, vector<16x32xf32>
    %c80_120 = arith.constant 80 : index
    %c0_121 = arith.constant 0 : index
    %106 = vector.load %arg16[%c80_120, %c0_121] : memref<128x32xf32, #tpu.memory_space<vmem>>, vector<16x32xf32>
    %107 = arith.maximumf %105, %106 : vector<16x32xf32>
    %c2_122 = arith.constant 2 : index
    %c0_123 = arith.constant 0 : index
    %c0_124 = arith.constant 0 : index
    %108 = vector.load %arg8[%c2_122, %c0_123, %c0_124] : memref<4x32x32xf32, #tpu.memory_space<vmem>>, vector<1x32x32xf32>
    %109 = vector.shape_cast %108 : vector<1x32x32xf32> to vector<32x32xf32>
    %cst_125 = arith.constant dense<0.000000e+00> : vector<16x32xf32>
    %110 = tpu.matmul %107, %109, %cst_125 {dimension_numbers = #tpu.dot_dimension_numbers<[1], [0], [0], [1], [0, 0, 1, 1], [], []>} : vector<16x32xf32>, vector<32x32xf32>, vector<16x32xf32> -> vector<16x32xf32>
    %111 = arith.addf %104, %110 : vector<16x32xf32>
    %c96_126 = arith.constant 96 : index
    %c0_127 = arith.constant 0 : index
    %112 = vector.load %arg16[%c96_126, %c0_127] : memref<128x32xf32, #tpu.memory_space<vmem>>, vector<16x32xf32>
    %c112_128 = arith.constant 112 : index
    %c0_129 = arith.constant 0 : index
    %113 = vector.load %arg16[%c112_128, %c0_129] : memref<128x32xf32, #tpu.memory_space<vmem>>, vector<16x32xf32>
    %114 = arith.maximumf %112, %113 : vector<16x32xf32>
    %c3 = arith.constant 3 : index
    %c0_130 = arith.constant 0 : index
    %c0_131 = arith.constant 0 : index
    %115 = vector.load %arg8[%c3, %c0_130, %c0_131] : memref<4x32x32xf32, #tpu.memory_space<vmem>>, vector<1x32x32xf32>
    %116 = vector.shape_cast %115 : vector<1x32x32xf32> to vector<32x32xf32>
    %cst_132 = arith.constant dense<0.000000e+00> : vector<16x32xf32>
    %117 = tpu.matmul %114, %116, %cst_132 {dimension_numbers = #tpu.dot_dimension_numbers<[1], [0], [0], [1], [0, 0, 1, 1], [], []>} : vector<16x32xf32>, vector<32x32xf32>, vector<16x32xf32> -> vector<16x32xf32>
    %118 = arith.addf %111, %117 : vector<16x32xf32>
    %c0_133 = arith.constant 0 : index
    %c0_134 = arith.constant 0 : index
    %119 = vector.load %arg9[%c0_133, %c0_134] : memref<1x32xf32, #tpu.memory_space<vmem>>, vector<1x32xf32>
    %120 = vector.broadcast %119 : vector<1x32xf32> to vector<16x32xf32>
    %121 = arith.addf %118, %120 : vector<16x32xf32>
    %122 = math.tanh %121 : vector<16x32xf32>
    %c0_135 = arith.constant 0 : index
    %c0_136 = arith.constant 0 : index
    %123 = vector.load %arg10[%c0_135, %c0_136] : memref<32x10xf32, #tpu.memory_space<vmem>>, vector<32x10xf32>
    %cst_137 = arith.constant dense<0.000000e+00> : vector<16x10xf32>
    %124 = tpu.matmul %122, %123, %cst_137 {dimension_numbers = #tpu.dot_dimension_numbers<[1], [0], [0], [1], [0, 0, 1, 1], [], []>} : vector<16x32xf32>, vector<32x10xf32>, vector<16x10xf32> -> vector<16x10xf32>
    %c0_138 = arith.constant 0 : index
    %c0_139 = arith.constant 0 : index
    %125 = vector.load %arg11[%c0_138, %c0_139] : memref<1x10xf32, #tpu.memory_space<vmem>>, vector<1x10xf32>
    %126 = vector.broadcast %125 : vector<1x10xf32> to vector<16x10xf32>
    %127 = arith.addf %124, %126 : vector<16x10xf32>
    %c0_140 = arith.constant 0 : index
    %c0_141 = arith.constant 0 : index
    %128 = vector.load %arg12[%c0_140, %c0_141] : memref<16x10xf32, #tpu.memory_space<vmem>>, vector<16x10xf32>
    tpu.vector_store %arg12[%c0_140, %c0_141], %127 {strides = array<i32>} : memref<16x10xf32, #tpu.memory_space<vmem>>, vector<16x10xf32>,
    return
  }
  func.func @transform_0(%arg0: i32) -> (i32, i32) {
    %c0_i32 = arith.constant 0 : i32
    %c0_i32_0 = arith.constant 0 : i32
    return %arg0, %c0_i32 : i32, i32
  }
  func.func @transform_1(%arg0: i32) -> (i32, i32, i32) {
    %c0_i32 = arith.constant 0 : i32
    %c0_i32_0 = arith.constant 0 : i32
    %c0_i32_1 = arith.constant 0 : i32
    %c0_i32_2 = arith.constant 0 : i32
    return %c0_i32, %c0_i32_0, %c0_i32_1 : i32, i32, i32
  }
  func.func @transform_2(%arg0: i32) -> (i32, i32) {
    %c0_i32 = arith.constant 0 : i32
    %c0_i32_0 = arith.constant 0 : i32
    %c0_i32_1 = arith.constant 0 : i32
    return %c0_i32, %c0_i32_0 : i32, i32
  }
  func.func @transform_3(%arg0: i32) -> (i32, i32, i32) {
    %c0_i32 = arith.constant 0 : i32
    %c0_i32_0 = arith.constant 0 : i32
    %c0_i32_1 = arith.constant 0 : i32
    %c0_i32_2 = arith.constant 0 : i32
    return %c0_i32, %c0_i32_0, %c0_i32_1 : i32, i32, i32
  }
  func.func @transform_4(%arg0: i32) -> (i32, i32, i32) {
    %c0_i32 = arith.constant 0 : i32
    %c0_i32_0 = arith.constant 0 : i32
    %c0_i32_1 = arith.constant 0 : i32
    %c0_i32_2 = arith.constant 0 : i32
    return %c0_i32, %c0_i32_0, %c0_i32_1 : i32, i32, i32
  }
  func.func @transform_5(%arg0: i32) -> (i32, i32) {
    %c0_i32 = arith.constant 0 : i32
    %c0_i32_0 = arith.constant 0 : i32
    %c0_i32_1 = arith.constant 0 : i32
    return %c0_i32, %c0_i32_0 : i32, i32
  }
  func.func @transform_6(%arg0: i32) -> (i32, i32, i32) {
    %c0_i32 = arith.constant 0 : i32
    %c0_i32_0 = arith.constant 0 : i32
    %c0_i32_1 = arith.constant 0 : i32
    %c0_i32_2 = arith.constant 0 : i32
    return %c0_i32, %c0_i32_0, %c0_i32_1 : i32, i32, i32
  }
  func.func @transform_7(%arg0: i32) -> (i32, i32, i32) {
    %c0_i32 = arith.constant 0 : i32
    %c0_i32_0 = arith.constant 0 : i32
    %c0_i32_1 = arith.constant 0 : i32
    %c0_i32_2 = arith.constant 0 : i32
    return %c0_i32, %c0_i32_0, %c0_i32_1 : i32, i32, i32
  }
  func.func @transform_8(%arg0: i32) -> (i32, i32) {
    %c0_i32 = arith.constant 0 : i32
    %c0_i32_0 = arith.constant 0 : i32
    %c0_i32_1 = arith.constant 0 : i32
    return %c0_i32, %c0_i32_0 : i32, i32
  }
  func.func @transform_9(%arg0: i32) -> (i32, i32) {
    %c0_i32 = arith.constant 0 : i32
    %c0_i32_0 = arith.constant 0 : i32
    %c0_i32_1 = arith.constant 0 : i32
    return %c0_i32, %c0_i32_0 : i32, i32
  }
  func.func @transform_10(%arg0: i32) -> (i32, i32) {
    %c0_i32 = arith.constant 0 : i32
    %c0_i32_0 = arith.constant 0 : i32
    %c0_i32_1 = arith.constant 0 : i32
    return %c0_i32, %c0_i32_0 : i32, i32
  }
  func.func @transform_11(%arg0: i32) -> (i32, i32) {
    %c0_i32 = arith.constant 0 : i32
    %c0_i32_0 = arith.constant 0 : i32
    return %arg0, %c0_i32 : i32, i32
  }
}

</mosaic_0001>

<llo_original>
// kernel: tpu_custom_call.1
$region0: #{tpu_custom_call.1}
  #allocation0 [shape = 'u32[]', space=smem, size = 0x4, offset = 0x4, fixed_abs, tag = 'smem constant byte address 0x4 - core index']
  #allocation1 [shape = 'u32[72,128]{1,0:T(1,128)}', space=vmem, size = 0x9000, scoped, tag = 'internal scratch']
  #allocation2 [shape = 'f32[288,64]{1,0:T(8,128)}', space=vmem, size = 0x24000, scoped, tag = 'scratch operand']
  #allocation3 [shape = 'f32[256,128]{1,0:T(8,128)}', space=vmem, size = 0x20000, scoped, tag = 'scratch operand']
  #allocation4 [shape = 'f32[160,128]{1,0:T(8,128)}', space=vmem, size = 0x14000, scoped, tag = 'scratch operand']
  #allocation5 [shape = 'f32[128,32]{1,0:T(8,128)}', space=vmem, size = 0x10000, scoped, tag = 'scratch operand']
  %s0 = inlined_call_operand.vmem [shape: f32[512,64], index: 0, kind: input, shape index: {}]
  %s1 = inlined_call_operand.vmem [shape: f32[3,64,256], index: 1, kind: input, shape index: {}]
  %s2 = inlined_call_operand.vmem [shape: f32[1,256], index: 2, kind: input, shape index: {}]
  %s3 = inlined_call_operand.vmem [shape: f32[2,256,128], index: 3, kind: input, shape index: {}]
  %s4 = inlined_call_operand.vmem [shape: f32[3,128,64], index: 4, kind: input, shape index: {}]
  %s5 = inlined_call_operand.vmem [shape: f32[1,64], index: 5, kind: input, shape index: {}]
  %s6 = inlined_call_operand.vmem [shape: f32[2,64,32], index: 6, kind: input, shape index: {}]
  %s7 = inlined_call_operand.vmem [shape: f32[4,32,32], index: 7, kind: input, shape index: {}]
  %s8 = inlined_call_operand.vmem [shape: f32[1,32], index: 8, kind: input, shape index: {}]
  %s9 = inlined_call_operand.vmem [shape: f32[32,10], index: 9, kind: input, shape index: {}]
  %s10 = inlined_call_operand.vmem [shape: f32[1,10], index: 10, kind: input, shape index: {}]
  %s11 = inlined_call_operand.vmem [shape: f32[32,10], index: 11, kind: output, shape index: {}]
  %s12 = sld [smem:[#allocation0]]
  $region77: #{tpu_custom_call.1} parent=0
    _
  %s14 = ssub.s32 1, %s12
  %s15 = scalar_select 0, %s14, %s12
  loop: start=0, step=1, limit=4
  $region2: #{tpu_custom_call.1} parent=0 // loop_pre_header
    _
  $region3: #{tpu_custom_call.1} parent=0 // loop_header
    %s17 = sphi 0, %s21
    %p18 = scmp.ge.s32.totalorder %s17, 4
    %s27 = sphi 0, %s29
    %s30 = sphi 0, %s27
    %s31 = sphi 0, %s30
    %s47 = sphi 0, %s31
    %s51 = sphi 0, %s51
    %s53 = sphi 0, %s51
    %s54 = sphi 0, %s53
    %s68 = sphi 0, %s54
    %s72 = sphi 0, %s72
    %s74 = sphi 0, %s72
    %s75 = sphi 0, %s74
    %s89 = sphi 0, %s75
    %s93 = sphi 0, %s93
    %s95 = sphi 0, %s93
    %s96 = sphi 0, %s95
    %s110 = sphi 0, %s96
    %s114 = sphi 0, %s114
    %s116 = sphi 0, %s114
    %s117 = sphi 0, %s116
    %s131 = sphi 0, %s117
    %s135 = sphi 0, %s135
    %s137 = sphi 0, %s135
    %s138 = sphi 0, %s137
    %s152 = sphi 0, %s138
    %s156 = sphi 0, %s156
    %s158 = sphi 0, %s156
    %s159 = sphi 0, %s158
    %s173 = sphi 0, %s159
    %s177 = sphi 0, %s177
    %s179 = sphi 0, %s177
    %s180 = sphi 0, %s179
    %s194 = sphi 0, %s180
    %s198 = sphi 0, %s198
    %s200 = sphi 0, %s198
    %s201 = sphi 0, %s200
    %s215 = sphi 0, %s201
    %s219 = sphi 0, %s219
    %s221 = sphi 0, %s219
    %s222 = sphi 0, %s221
    %s236 = sphi 0, %s222
    %s240 = sphi 0, %s240
    %s242 = sphi 0, %s240
    %s243 = sphi 0, %s242
    %s257 = sphi 0, %s243
    %s263 = sphi 0, %s265
    %s266 = sphi 0, %s263
    %s267 = sphi 0, %s266
    %s283 = sphi 0, %s267
  $region4: #{tpu_custom_call.1} parent=0 // loop_header_branch
    %20 = sbr.rel (%p18) target = $region8
  $region5: #{tpu_custom_call.1} parent=0 // loop_body
    %s22 = ssub.s32 %s17, 1
    %s23 = ssub.s32 %s17, 2
    %s24 = sadd.s32 %s17, 1
    %s25 = ssub.s32 %s17, %s24
    %p26 = scmp.eq.s32.totalorder %s25, 0
    %s28 = sadd.s32 %s27, 1
    %s29 = scalar_select %p26, %s27, %s28
    %p32 = pneg %p26
    %p33 = scmp.eq.s32.totalorder %s17, 1
    %p34 = por %p32, %p33
    %p35 = scmp.ne.s32.totalorder %s27, %s30
    %p36 = scmp.eq.s32.totalorder %s17, 0
    %p37 = por %p35, %p36
    %p38 = scmp.ne.s32.totalorder %s27, %s30
    %p39 = scmp.eq.s32.totalorder %s22, 1
    %p40 = por %p38, %p39
    %p41 = scmp.ne.s32.totalorder %s30, %s31
    %p42 = scmp.eq.s32.totalorder %s22, 0
    %p43 = por %p41, %p42
    %p44 = scmp.ne.s32.totalorder %s30, %s31
    %p45 = scmp.eq.s32.totalorder %s23, 1
    %p46 = por %p44, %p45
    %p48 = scmp.ne.s32.totalorder %s31, %s47
    %p49 = scmp.eq.s32.totalorder %s23, 0
    %p50 = por %p48, %p49
    %s52 = sadd.s32 %s51, 1
    %p55 = scmp.eq.s32.totalorder %s17, 1
    %p56 = scmp.ne.s32.totalorder %s51, %s53
    %p57 = scmp.eq.s32.totalorder %s17, 0
    %p58 = por %p56, %p57
    %p59 = scmp.ne.s32.totalorder %s51, %s53
    %p60 = scmp.eq.s32.totalorder %s22, 1
    %p61 = por %p59, %p60
    %p62 = scmp.ne.s32.totalorder %s53, %s54
    %p63 = scmp.eq.s32.totalorder %s22, 0
    %p64 = por %p62, %p63
    %p65 = scmp.ne.s32.totalorder %s53, %s54
    %p66 = scmp.eq.s32.totalorder %s23, 1
    %p67 = por %p65, %p66
    %p69 = scmp.ne.s32.totalorder %s54, %s68
    %p70 = scmp.eq.s32.totalorder %s23, 0
    %p71 = por %p69, %p70
    %s73 = sadd.s32 %s72, 1
    %p76 = scmp.eq.s32.totalorder %s17, 1
    %p77 = scmp.ne.s32.totalorder %s72, %s74
    %p78 = scmp.eq.s32.totalorder %s17, 0
    %p79 = por %p77, %p78
    %p80 = scmp.ne.s32.totalorder %s72, %s74
    %p81 = scmp.eq.s32.totalorder %s22, 1
    %p82 = por %p80, %p81
    %p83 = scmp.ne.s32.totalorder %s74, %s75
    %p84 = scmp.eq.s32.totalorder %s22, 0
    %p85 = por %p83, %p84
    %p86 = scmp.ne.s32.totalorder %s74, %s75
    %p87 = scmp.eq.s32.totalorder %s23, 1
    %p88 = por %p86, %p87
    %p90 = scmp.ne.s32.totalorder %s75, %s89
    %p91 = scmp.eq.s32.totalorder %s23, 0
    %p92 = por %p90, %p91
    %s94 = sadd.s32 %s93, 1
    %p97 = scmp.eq.s32.totalorder %s17, 1
    %p98 = scmp.ne.s32.totalorder %s93, %s95
    %p99 = scmp.eq.s32.totalorder %s17, 0
    %p100 = por %p98, %p99
    %p101 = scmp.ne.s32.totalorder %s93, %s95
    %p102 = scmp.eq.s32.totalorder %s22, 1
    %p103 = por %p101, %p102
    %p104 = scmp.ne.s32.totalorder %s95, %s96
    %p105 = scmp.eq.s32.totalorder %s22, 0
    %p106 = por %p104, %p105
    %p107 = scmp.ne.s32.totalorder %s95, %s96
    %p108 = scmp.eq.s32.totalorder %s23, 1
    %p109 = por %p107, %p108
    %p111 = scmp.ne.s32.totalorder %s96, %s110
    %p112 = scmp.eq.s32.totalorder %s23, 0
    %p113 = por %p111, %p112
    %s115 = sadd.s32 %s114, 1
    %p118 = scmp.eq.s32.totalorder %s17, 1
    %p119 = scmp.ne.s32.totalorder %s114, %s116
    %p120 = scmp.eq.s32.totalorder %s17, 0
    %p121 = por %p119, %p120
    %p122 = scmp.ne.s32.totalorder %s114, %s116
    %p123 = scmp.eq.s32.totalorder %s22, 1
    %p124 = por %p122, %p123
    %p125 = scmp.ne.s32.totalorder %s116, %s117
    %p126 = scmp.eq.s32.totalorder %s22, 0
    %p127 = por %p125, %p126
    %p128 = scmp.ne.s32.totalorder %s116, %s117
    %p129 = scmp.eq.s32.totalorder %s23, 1
    %p130 = por %p128, %p129
    %p132 = scmp.ne.s32.totalorder %s117, %s131
    %p133 = scmp.eq.s32.totalorder %s23, 0
    %p134 = por %p132, %p133
    %s136 = sadd.s32 %s135, 1
    %p139 = scmp.eq.s32.totalorder %s17, 1
    %p140 = scmp.ne.s32.totalorder %s135, %s137
    %p141 = scmp.eq.s32.totalorder %s17, 0
    %p142 = por %p140, %p141
    %p143 = scmp.ne.s32.totalorder %s135, %s137
    %p144 = scmp.eq.s32.totalorder %s22, 1
    %p145 = por %p143, %p144
    %p146 = scmp.ne.s32.totalorder %s137, %s138
    %p147 = scmp.eq.s32.totalorder %s22, 0
    %p148 = por %p146, %p147
    %p149 = scmp.ne.s32.totalorder %s137, %s138
    %p150 = scmp.eq.s32.totalorder %s23, 1
    %p151 = por %p149, %p150
    %p153 = scmp.ne.s32.totalorder %s138, %s152
    %p154 = scmp.eq.s32.totalorder %s23, 0
    %p155 = por %p153, %p154
    %s157 = sadd.s32 %s156, 1
    %p160 = scmp.eq.s32.totalorder %s17, 1
    %p161 = scmp.ne.s32.totalorder %s156, %s158
    %p162 = scmp.eq.s32.totalorder %s17, 0
    %p163 = por %p161, %p162
    %p164 = scmp.ne.s32.totalorder %s156, %s158
    %p165 = scmp.eq.s32.totalorder %s22, 1
    %p166 = por %p164, %p165
    %p167 = scmp.ne.s32.totalorder %s158, %s159
    %p168 = scmp.eq.s32.totalorder %s22, 0
    %p169 = por %p167, %p168
    %p170 = scmp.ne.s32.totalorder %s158, %s159
    %p171 = scmp.eq.s32.totalorder %s23, 1
    %p172 = por %p170, %p171
    %p174 = scmp.ne.s32.totalorder %s159, %s173
    %p175 = scmp.eq.s32.totalorder %s23, 0
    %p176 = por %p174, %p175
    %s178 = sadd.s32 %s177, 1
    %p181 = scmp.eq.s32.totalorder %s17, 1
    %p182 = scmp.ne.s32.totalorder %s177, %s179
    %p183 = scmp.eq.s32.totalorder %s17, 0
    %p184 = por %p182, %p183
    %p185 = scmp.ne.s32.totalorder %s177, %s179
    %p186 = scmp.eq.s32.totalorder %s22, 1
    %p187 = por %p185, %p186
    %p188 = scmp.ne.s32.totalorder %s179, %s180
    %p189 = scmp.eq.s32.totalorder %s22, 0
    %p190 = por %p188, %p189
    %p191 = scmp.ne.s32.totalorder %s179, %s180
    %p192 = scmp.eq.s32.totalorder %s23, 1
    %p193 = por %p191, %p192
    %p195 = scmp.ne.s32.totalorder %s180, %s194
    %p196 = scmp.eq.s32.totalorder %s23, 0
    %p197 = por %p195, %p196
    %s199 = sadd.s32 %s198, 1
    %p202 = scmp.eq.s32.totalorder %s17, 1
    %p203 = scmp.ne.s32.totalorder %s198, %s200
    %p204 = scmp.eq.s32.totalorder %s17, 0
    %p205 = por %p203, %p204
    %p206 = scmp.ne.s32.totalorder %s198, %s200
    %p207 = scmp.eq.s32.totalorder %s22, 1
    %p208 = por %p206, %p207
    %p209 = scmp.ne.s32.totalorder %s200, %s201
    %p210 = scmp.eq.s32.totalorder %s22, 0
    %p211 = por %p209, %p210
    %p212 = scmp.ne.s32.totalorder %s200, %s201
    %p213 = scmp.eq.s32.totalorder %s23, 1
    %p214 = por %p212, %p213
    %p216 = scmp.ne.s32.totalorder %s201, %s215
    %p217 = scmp.eq.s32.totalorder %s23, 0
    %p218 = por %p216, %p217
    %s220 = sadd.s32 %s219, 1
    %p223 = scmp.eq.s32.totalorder %s17, 1
    %p224 = scmp.ne.s32.totalorder %s219, %s221
    %p225 = scmp.eq.s32.totalorder %s17, 0
    %p226 = por %p224, %p225
    %p227 = scmp.ne.s32.totalorder %s219, %s221
    %p228 = scmp.eq.s32.totalorder %s22, 1
    %p229 = por %p227, %p228
    %p230 = scmp.ne.s32.totalorder %s221, %s222
    %p231 = scmp.eq.s32.totalorder %s22, 0
    %p232 = por %p230, %p231
    %p233 = scmp.ne.s32.totalorder %s221, %s222
    %p234 = scmp.eq.s32.totalorder %s23, 1
    %p235 = por %p233, %p234
    %p237 = scmp.ne.s32.totalorder %s222, %s236
    %p238 = scmp.eq.s32.totalorder %s23, 0
    %p239 = por %p237, %p238
    %s241 = sadd.s32 %s240, 1
    %p244 = scmp.eq.s32.totalorder %s17, 1
    %p245 = scmp.ne.s32.totalorder %s240, %s242
    %p246 = scmp.eq.s32.totalorder %s17, 0
    %p247 = por %p245, %p246
    %p248 = scmp.ne.s32.totalorder %s240, %s242
    %p249 = scmp.eq.s32.totalorder %s22, 1
    %p250 = por %p248, %p249
    %p251 = scmp.ne.s32.totalorder %s242, %s243
    %p252 = scmp.eq.s32.totalorder %s22, 0
    %p253 = por %p251, %p252
    %p254 = scmp.ne.s32.totalorder %s242, %s243
    %p255 = scmp.eq.s32.totalorder %s23, 1
    %p256 = por %p254, %p255
    %p258 = scmp.ne.s32.totalorder %s243, %s257
    %p259 = scmp.eq.s32.totalorder %s23, 0
    %p260 = por %p258, %p259
    %s261 = ssub.s32 %s17, %s24
    %p262 = scmp.eq.s32.totalorder %s261, 0
    %s264 = sadd.s32 %s263, 1
    %s265 = scalar_select %p262, %s263, %s264
    %p268 = pneg %p262
    %p269 = scmp.eq.s32.totalorder %s17, 1
    %p270 = por %p268, %p269
    %p271 = scmp.ne.s32.totalorder %s263, %s266
    %p272 = scmp.eq.s32.totalorder %s17, 0
    %p273 = por %p271, %p272
    %p274 = scmp.ne.s32.totalorder %s263, %s266
    %p275 = scmp.eq.s32.totalorder %s22, 1
    %p276 = por %p274, %p275
    %p277 = scmp.ne.s32.totalorder %s266, %s267
    %p278 = scmp.eq.s32.totalorder %s22, 0
    %p279 = por %p277, %p278
    %p280 = scmp.ne.s32.totalorder %s266, %s267
    %p281 = scmp.eq.s32.totalorder %s23, 1
    %p282 = por %p280, %p281
    %p284 = scmp.ne.s32.totalorder %s267, %s283
    %p285 = scmp.eq.s32.totalorder %s23, 0
    %p286 = por %p284, %p285
    %p287 = scmp.le.s32.totalorder 1, %s17
    %p288 = scmp.lt.s32.totalorder %s17, 3
    %p289 = pnand %p287, %p288
    %p290 = pneg %p289
    // Predicated region
    $region9: #{tpu_custom_call.1} parent=5 // pred_check
      _
    $region10: #{tpu_custom_call.1} parent=5 // pred_check_branch
      %292 = sbr.rel (%p289) target = $region12
    $region11: #{tpu_custom_call.1} parent=5 // pred_region
      %s293 = ssub.s32 %s17, 1
      // Predicated region
      $region13: #{tpu_custom_call.1} parent=11 // pred_check
        %p294 = pneg %p64
      $region14: #{tpu_custom_call.1} parent=11 // pred_check_branch
        %296 = sbr.rel (%p294) target = $region16
      $region15: #{tpu_custom_call.1} parent=11 // pred_region
        _
      $region16: #{tpu_custom_call.1} parent=11 // pred_fallthru
        _
      // Predicated region
      $region17: #{tpu_custom_call.1} parent=11 // pred_check
        %p297 = pneg %p85
      $region18: #{tpu_custom_call.1} parent=11 // pred_check_branch
        %299 = sbr.rel (%p297) target = $region20
      $region19: #{tpu_custom_call.1} parent=11 // pred_region
        _
      $region20: #{tpu_custom_call.1} parent=11 // pred_fallthru
        _
      // Predicated region
      $region21: #{tpu_custom_call.1} parent=11 // pred_check
        %p300 = pneg %p106
      $region22: #{tpu_custom_call.1} parent=11 // pred_check_branch
        %302 = sbr.rel (%p300) target = $region24
      $region23: #{tpu_custom_call.1} parent=11 // pred_region
        _
      $region24: #{tpu_custom_call.1} parent=11 // pred_fallthru
        _
      // Predicated region
      $region25: #{tpu_custom_call.1} parent=11 // pred_check
        %p303 = pneg %p127
      $region26: #{tpu_custom_call.1} parent=11 // pred_check_branch
        %305 = sbr.rel (%p303) target = $region28
      $region27: #{tpu_custom_call.1} parent=11 // pred_region
        _
      $region28: #{tpu_custom_call.1} parent=11 // pred_fallthru
        _
      // Predicated region
      $region29: #{tpu_custom_call.1} parent=11 // pred_check
        %p306 = pneg %p148
      $region30: #{tpu_custom_call.1} parent=11 // pred_check_branch
        %308 = sbr.rel (%p306) target = $region32
      $region31: #{tpu_custom_call.1} parent=11 // pred_region
        _
      $region32: #{tpu_custom_call.1} parent=11 // pred_fallthru
        _
      // Predicated region
      $region33: #{tpu_custom_call.1} parent=11 // pred_check
        %p309 = pneg %p169
      $region34: #{tpu_custom_call.1} parent=11 // pred_check_branch
        %311 = sbr.rel (%p309) target = $region36
      $region35: #{tpu_custom_call.1} parent=11 // pred_region
        _
      $region36: #{tpu_custom_call.1} parent=11 // pred_fallthru
        _
      // Predicated region
      $region37: #{tpu_custom_call.1} parent=11 // pred_check
        %p312 = pneg %p190
      $region38: #{tpu_custom_call.1} parent=11 // pred_check_branch
        %314 = sbr.rel (%p312) target = $region40
      $region39: #{tpu_custom_call.1} parent=11 // pred_region
        _
      $region40: #{tpu_custom_call.1} parent=11 // pred_fallthru
        _
      // Predicated region
      $region41: #{tpu_custom_call.1} parent=11 // pred_check
        %p315 = pneg %p211
      $region42: #{tpu_custom_call.1} parent=11 // pred_check_branch
        %317 = sbr.rel (%p315) target = $region44
      $region43: #{tpu_custom_call.1} parent=11 // pred_region
        _
      $region44: #{tpu_custom_call.1} parent=11 // pred_fallthru
        _
      // Predicated region
      $region45: #{tpu_custom_call.1} parent=11 // pred_check
        %p318 = pneg %p232
      $region46: #{tpu_custom_call.1} parent=11 // pred_check_branch
        %320 = sbr.rel (%p318) target = $region48
      $region47: #{tpu_custom_call.1} parent=11 // pred_region
        _
      $region48: #{tpu_custom_call.1} parent=11 // pred_fallthru
        _
      // Predicated region
      $region49: #{tpu_custom_call.1} parent=11 // pred_check
        %p321 = pneg %p253
      $region50: #{tpu_custom_call.1} parent=11 // pred_check_branch
        %323 = sbr.rel (%p321) target = $region52
      $region51: #{tpu_custom_call.1} parent=11 // pred_region
        _
      $region52: #{tpu_custom_call.1} parent=11 // pred_fallthru
        _
    $region12: #{tpu_custom_call.1} parent=5 // pred_fallthru
      _
    %p324 = scmp.lt.s32.totalorder %s17, 2
    // Predicated region
    $region53: #{tpu_custom_call.1} parent=5 // pred_check
      %p325 = pneg %p324
    $region54: #{tpu_custom_call.1} parent=5 // pred_check_branch
      %327 = sbr.rel (%p325) target = $region56
    $region55: #{tpu_custom_call.1} parent=5 // pred_region
      // Predicated region
      $region57: #{tpu_custom_call.1} parent=55 // pred_check
        %p328 = pneg %p37
      $region58: #{tpu_custom_call.1} parent=55 // pred_check_branch
        %330 = sbr.rel (%p328) target = $region60
      $region59: #{tpu_custom_call.1} parent=55 // pred_region
        %s331 = smul.u32 32, %s17
        %p332 = scmp.lt.s32.totalorder %s331, 63
        %s333 = scalar_select %p332, %s331, 63
        %s334 = smul.addr %s333, 8
        %s335 = scalar_lea.vmem %s0, %s334
        %s336 = smul.u32 32, %s17
      $region60: #{tpu_custom_call.1} parent=55 // pred_fallthru
        _
    $region56: #{tpu_custom_call.1} parent=5 // pred_fallthru
      _
    %p337 = scmp.le.s32.totalorder 1, %s17
    %p338 = scmp.lt.s32.totalorder %s17, 3
    %p339 = pnand %p337, %p338
    %p340 = pneg %p339
    // Predicated region
    $region61: #{tpu_custom_call.1} parent=5 // pred_check
      _
    $region62: #{tpu_custom_call.1} parent=5 // pred_check_branch
      %342 = sbr.rel (%p339) target = $region64
    $region63: #{tpu_custom_call.1} parent=5 // pred_region
      %s343 = ssub.s32 %s17, 1
      %s344 = smul.u32 32, %s22
      %p345 = scmp.lt.s32.totalorder %s344, 63
      %s346 = scalar_select %p345, %s344, 63
      %s347 = smul.addr %s346, 8
      %s348 = scalar_lea.vmem %s0, %s347
      %p349 = pneg %p43
      %p350 = pneg %p40
      %p351 = pneg %p64
      %p352 = pneg %p61
      %p353 = pneg %p85
      %p354 = pneg %p82
      %p355 = pneg %p106
      %p356 = pneg %p103
      %p357 = pneg %p127
      %p358 = pneg %p124
      %p359 = pneg %p148
      %p360 = pneg %p145
      %p361 = pneg %p169
      %p362 = pneg %p166
      %p363 = pneg %p190
      %p364 = pneg %p187
      %p365 = pneg %p211
      %p366 = pneg %p208
      %p367 = pneg %p232
      %p368 = pneg %p229
      %p369 = pneg %p253
      %p370 = pneg %p250
      %p371 = pneg %p279
      %p372 = pneg %p276
      %s373 = smul.u32 2, %s22
      %p374 = scmp.lt.s32.totalorder %s373, 3
      %s375 = scalar_select %p374, %s373, 3
      %s376 = smul.addr %s375, 8
      %s377 = scalar_lea.vmem %s11, %s376
      %s378 = smul.u32 32, %s22
      %p379 = scmp.lt.s32.totalorder %s378, 63
      %s380 = scalar_select %p379, %s378, 63
      %s381 = smul.addr %s380, 8
      %s382 = scalar_lea.vmem %s0, %s381
      %s383 = smul.u32 32, %s22
      %s384 = smul.u32 2, %s22
      %p385 = scmp.lt.s32.totalorder %s384, 3
      %s386 = scalar_select %p385, %s384, 3
      %s387 = smul.addr %s386, 8
      %s388 = scalar_lea.vmem %s11, %s387
      %s389 = smul.u32 2, %s22
      %vm390 = vcmask 523264
      %391 = vst.msk [vmem:[#allocation2] sm:$0xff] %vm390, 0.0
      %392 = vst.msk [vmem:[#allocation2 + $0x8] sm:$0xff] %vm390, 0.0
      %393 = vst.msk [vmem:[#allocation2 + $0x110] sm:$0xff] %vm390, 0.0
      %394 = vst.msk [vmem:[#allocation2 + $0x118] sm:$0xff] %vm390, 0.0
      %v395 = vld [vmem:[%s382] sm:$0xff]
      %v396 = vld [vmem:[%s382 + $0x8] sm:$0xff]
      %v397 = vld [vmem:[%s382 + $0x10] sm:$0xff]
      %v398 = vld [vmem:[%s382 + $0x18] sm:$0xff]
      %v399 = vld [vmem:[%s382 + $0x20] sm:$0xff]
      %v400 = vld [vmem:[%s382 + $0x28] sm:$0xff]
      %v401 = vld [vmem:[%s382 + $0x30] sm:$0xff]
      %v402 = vld [vmem:[%s382 + $0x38] sm:$0xff]
      %v403 = vld [vmem:[%s382 + $0x40] sm:$0xff]
      %v404 = vld [vmem:[%s382 + $0x48] sm:$0xff]
      %v405 = vld [vmem:[%s382 + $0x50] sm:$0xff]
      %v406 = vld [vmem:[%s382 + $0x58] sm:$0xff]
      %v407 = vld [vmem:[%s382 + $0x60] sm:$0xff]
      %v408 = vld [vmem:[%s382 + $0x68] sm:$0xff]
      %v409 = vld [vmem:[%s382 + $0x70] sm:$0xff]
      %v410 = vld [vmem:[%s382 + $0x78] sm:$0xff]
      %v411 = vld [vmem:[%s382 + $0x80] sm:$0xff]
      %v412 = vld [vmem:[%s382 + $0x88] sm:$0xff]
      %v413 = vld [vmem:[%s382 + $0x90] sm:$0xff]
      %v414 = vld [vmem:[%s382 + $0x98] sm:$0xff]
      %v415 = vld [vmem:[%s382 + $0xa0] sm:$0xff]
      %v416 = vld [vmem:[%s382 + $0xa8] sm:$0xff]
      %v417 = vld [vmem:[%s382 + $0xb0] sm:$0xff]
      %v418 = vld [vmem:[%s382 + $0xb8] sm:$0xff]
      %v419 = vld [vmem:[%s382 + $0xc0] sm:$0xff]
      %v420 = vld [vmem:[%s382 + $0xc8] sm:$0xff]
      %v421 = vld [vmem:[%s382 + $0xd0] sm:$0xff]
      %v422 = vld [vmem:[%s382 + $0xd8] sm:$0xff]
      %v423 = vld [vmem:[%s382 + $0xe0] sm:$0xff]
      %v424 = vld [vmem:[%s382 + $0xe8] sm:$0xff]
      %v425 = vld [vmem:[%s382 + $0xf0] sm:$0xff]
      %v426 = vld [vmem:[%s382 + $0xf8] sm:$0xff]
      %427 = vst.msk [vmem:[#allocation2 + $0x10] sm:$0xff] %vm390, %v395
      %428 = vst.msk [vmem:[#allocation2 + $0x18] sm:$0xff] %vm390, %v396
      %429 = vst.msk [vmem:[#allocation2 + $0x20] sm:$0xff] %vm390, %v397
      %430 = vst.msk [vmem:[#allocation2 + $0x28] sm:$0xff] %vm390, %v398
      %431 = vst.msk [vmem:[#allocation2 + $0x30] sm:$0xff] %vm390, %v399
      %432 = vst.msk [vmem:[#allocation2 + $0x38] sm:$0xff] %vm390, %v400
      %433 = vst.msk [vmem:[#allocation2 + $0x40] sm:$0xff] %vm390, %v401
      %434 = vst.msk [vmem:[#allocation2 + $0x48] sm:$0xff] %vm390, %v402
      %435 = vst.msk [vmem:[#allocation2 + $0x50] sm:$0xff] %vm390, %v403
      %436 = vst.msk [vmem:[#allocation2 + $0x58] sm:$0xff] %vm390, %v404
      %437 = vst.msk [vmem:[#allocation2 + $0x60] sm:$0xff] %vm390, %v405
      %438 = vst.msk [vmem:[#allocation2 + $0x68] sm:$0xff] %vm390, %v406
      %439 = vst.msk [vmem:[#allocation2 + $0x70] sm:$0xff] %vm390, %v407
      %440 = vst.msk [vmem:[#allocation2 + $0x78] sm:$0xff] %vm390, %v408
      %441 = vst.msk [vmem:[#allocation2 + $0x80] sm:$0xff] %vm390, %v409
      %442 = vst.msk [vmem:[#allocation2 + $0x88] sm:$0xff] %vm390, %v410
      %443 = vst.msk [vmem:[#allocation2 + $0x90] sm:$0xff] %vm390, %v411
      %444 = vst.msk [vmem:[#allocation2 + $0x98] sm:$0xff] %vm390, %v412
      %445 = vst.msk [vmem:[#allocation2 + $0xa0] sm:$0xff] %vm390, %v413
      %446 = vst.msk [vmem:[#allocation2 + $0xa8] sm:$0xff] %vm390, %v414
      %447 = vst.msk [vmem:[#allocation2 + $0xb0] sm:$0xff] %vm390, %v415
      %448 = vst.msk [vmem:[#allocation2 + $0xb8] sm:$0xff] %vm390, %v416
      %449 = vst.msk [vmem:[#allocation2 + $0xc0] sm:$0xff] %vm390, %v417
      %450 = vst.msk [vmem:[#allocation2 + $0xc8] sm:$0xff] %vm390, %v418
      %451 = vst.msk [vmem:[#allocation2 + $0xd0] sm:$0xff] %vm390, %v419
      %452 = vst.msk [vmem:[#allocation2 + $0xd8] sm:$0xff] %vm390, %v420
      %453 = vst.msk [vmem:[#allocation2 + $0xe0] sm:$0xff] %vm390, %v421
      %454 = vst.msk [vmem:[#allocation2 + $0xe8] sm:$0xff] %vm390, %v422
      %455 = vst.msk [vmem:[#allocation2 + $0xf0] sm:$0xff] %vm390, %v423
      %456 = vst.msk [vmem:[#allocation2 + $0xf8] sm:$0xff] %vm390, %v424
      %457 = vst.msk [vmem:[#allocation2 + $0x100] sm:$0xff] %vm390, %v425
      %458 = vst.msk [vmem:[#allocation2 + $0x108] sm:$0xff] %vm390, %v426
      %v459 = vld [vmem:[#allocation2] sm:$0xff]
      %v460 = vld [vmem:[#allocation2 + $0x8] sm:$0xff]
      %v461 = vld [vmem:[#allocation2 + $0x10] sm:$0xff]
      %v462 = vld [vmem:[#allocation2 + $0x18] sm:$0xff]
      %v463 = vld [vmem:[#allocation2 + $0x20] sm:$0xff]
      %v464 = vld [vmem:[#allocation2 + $0x28] sm:$0xff]
      %v465 = vld [vmem:[#allocation2 + $0x30] sm:$0xff]
      %v466 = vld [vmem:[#allocation2 + $0x38] sm:$0xff]
      %v467 = vld [vmem:[#allocation2 + $0x40] sm:$0xff]
      %v468 = vld [vmem:[#allocation2 + $0x48] sm:$0xff]
      %v469 = vld [vmem:[#allocation2 + $0x50] sm:$0xff]
      %v470 = vld [vmem:[#allocation2 + $0x58] sm:$0xff]
      %v471 = vld [vmem:[#allocation2 + $0x60] sm:$0xff]
      %v472 = vld [vmem:[#allocation2 + $0x68] sm:$0xff]
      %v473 = vld [vmem:[#allocation2 + $0x70] sm:$0xff]
      %v474 = vld [vmem:[#allocation2 + $0x78] sm:$0xff]
      %v475 = vld [vmem:[#allocation2 + $0x80] sm:$0xff]
      %v476 = vld [vmem:[#allocation2 + $0x88] sm:$0xff]
      %v477 = vld [vmem:[#allocation2 + $0x90] sm:$0xff]
      %v478 = vld [vmem:[#allocation2 + $0x98] sm:$0xff]
      %v479 = vld [vmem:[#allocation2 + $0xa0] sm:$0xff]
      %v480 = vld [vmem:[#allocation2 + $0xa8] sm:$0xff]
      %v481 = vld [vmem:[#allocation2 + $0xb0] sm:$0xff]
      %v482 = vld [vmem:[#allocation2 + $0xb8] sm:$0xff]
      %v483 = vld [vmem:[#allocation2 + $0xc0] sm:$0xff]
      %v484 = vld [vmem:[#allocation2 + $0xc8] sm:$0xff]
      %v485 = vld [vmem:[#allocation2 + $0xd0] sm:$0xff]
      %v486 = vld [vmem:[#allocation2 + $0xd8] sm:$0xff]
      %v487 = vld [vmem:[#allocation2 + $0xe0] sm:$0xff]
      %v488 = vld [vmem:[#allocation2 + $0xe8] sm:$0xff]
      %v489 = vld [vmem:[#allocation2 + $0xf0] sm:$0xff]
      %v490 = vld [vmem:[#allocation2 + $0xf8] sm:$0xff]
      %v491 = vld [vmem:[%s1] sm:$0xff]
      %v492 = vld [vmem:[%s1 + $0x8] sm:$0xff]
      %v493 = vld [vmem:[%s1 + $0x10] sm:$0xff]
      %v494 = vld [vmem:[%s1 + $0x18] sm:$0xff]
      %v495 = vld [vmem:[%s1 + $0x20] sm:$0xff]
      %v496 = vld [vmem:[%s1 + $0x28] sm:$0xff]
      %v497 = vld [vmem:[%s1 + $0x30] sm:$0xff]
      %v498 = vld [vmem:[%s1 + $0x38] sm:$0xff]
      %v499 = vld [vmem:[%s1 + $0x40] sm:$0xff]
      %v500 = vld [vmem:[%s1 + $0x48] sm:$0xff]
      %v501 = vld [vmem:[%s1 + $0x50] sm:$0xff]
      %v502 = vld [vmem:[%s1 + $0x58] sm:$0xff]
      %v503 = vld [vmem:[%s1 + $0x60] sm:$0xff]
      %v504 = vld [vmem:[%s1 + $0x68] sm:$0xff]
      %v505 = vld [vmem:[%s1 + $0x70] sm:$0xff]
      %v506 = vld [vmem:[%s1 + $0x78] sm:$0xff]
      %v507 = vld [vmem:[#allocation2 + $0x100] sm:$0xff]
      %v508 = vld [vmem:[#allocation2 + $0x108] sm:$0xff]
      %s509 = scalar_lea.vmem %s1, 128
      %v510 = vld [vmem:[%s509] sm:$0xff]
      %v511 = vld [vmem:[%s509 + $0x8] sm:$0xff]
      %v512 = vld [vmem:[%s509 + $0x10] sm:$0xff]
      %v513 = vld [vmem:[%s509 + $0x18] sm:$0xff]
      %v514 = vld [vmem:[%s509 + $0x20] sm:$0xff]
      %v515 = vld [vmem:[%s509 + $0x28] sm:$0xff]
      %v516 = vld [vmem:[%s509 + $0x30] sm:$0xff]
      %v517 = vld [vmem:[%s509 + $0x38] sm:$0xff]
      %v518 = vld [vmem:[%s509 + $0x40] sm:$0xff]
      %v519 = vld [vmem:[%s509 + $0x48] sm:$0xff]
      %v520 = vld [vmem:[%s509 + $0x50] sm:$0xff]
      %v521 = vld [vmem:[%s509 + $0x58] sm:$0xff]
      %v522 = vld [vmem:[%s509 + $0x60] sm:$0xff]
      %v523 = vld [vmem:[%s509 + $0x68] sm:$0xff]
      %v524 = vld [vmem:[%s509 + $0x70] sm:$0xff]
      %v525 = vld [vmem:[%s509 + $0x78] sm:$0xff]
      %v527 = vsel %vm390, %v461, 0
      %v530 = vsel %vm390, %v462, 0
      %v533 = vsel %vm390, %v463, 0
      %v536 = vsel %vm390, %v464, 0
      %v539 = vsel %vm390, %v465, 0
      %v542 = vsel %vm390, %v466, 0
      %v545 = vsel %vm390, %v467, 0
      %v548 = vsel %vm390, %v468, 0
      %v551 = vsel %vm390, %v469, 0
      %v554 = vsel %vm390, %v470, 0
      %v557 = vsel %vm390, %v471, 0
      %v560 = vsel %vm390, %v472, 0
      %v563 = vsel %vm390, %v473, 0
      %v566 = vsel %vm390, %v474, 0
      %v569 = vsel %vm390, %v475, 0
      %v572 = vsel %vm390, %v476, 0
      %v575 = vsel %vm390, %v477, 0
      %v578 = vsel %vm390, %v478, 0
      %v581 = vsel %vm390, %v479, 0
      %v584 = vsel %vm390, %v480, 0
      %v587 = vsel %vm390, %v481, 0
      %v590 = vsel %vm390, %v482, 0
      %v593 = vsel %vm390, %v483, 0
      %v596 = vsel %vm390, %v484, 0
      %v599 = vsel %vm390, %v485, 0
      %v602 = vsel %vm390, %v486, 0
      %v605 = vsel %vm390, %v487, 0
      %v608 = vsel %vm390, %v488, 0
      %v611 = vsel %vm390, %v489, 0
      %v614 = vsel %vm390, %v490, 0
      %v617 = vsel %vm390, %v507, 0
      %v620 = vsel %vm390, %v508, 0
      %622 = vmatpush.msra.mxu0 0.0
      %623 = vmatpush.msra.mxu0 0.0
      %624 = vmatpush.msra.mxu0 0.0
      %625 = vmatpush.msra.mxu0 0.0
      %626 = vmatpush.msra.mxu0 0.0
      %627 = vmatpush.msra.mxu0 0.0
      %628 = vmatpush.msra.mxu0 0.0
      %629 = vmatpush.msra.mxu0 0.0
      %630 = vmatpush.msra.mxu0 %v524
      %631 = vmatpush.msra.mxu0 %v522
      %632 = vmatpush.msra.mxu0 %v520
      %633 = vmatpush.msra.mxu0 %v518
      %634 = vmatpush.msra.mxu0 %v516
      %635 = vmatpush.msra.mxu0 %v514
      %636 = vmatpush.msra.mxu0 %v512
      %637 = vmatpush.msra.mxu0 %v510
      %638 = vmatmul.f32.gmra.mxu0 %v527
      %v639 = vpop.f32.mrf.mxu0
      %v640 = vadd.f32 0.0, %v639
      %641 = vmatmul.f32.gmra.mxu0 %v530
      %v642 = vpop.f32.mrf.mxu0
      %v643 = vadd.f32 0.0, %v642
      %644 = vmatmul.f32.gmra.mxu0 %v533
      %v645 = vpop.f32.mrf.mxu0
      %v646 = vadd.f32 0.0, %v645
      %647 = vmatmul.f32.gmra.mxu0 %v536
      %v648 = vpop.f32.mrf.mxu0
      %v649 = vadd.f32 0.0, %v648
      %650 = vmatmul.f32.gmra.mxu0 %v539
      %v651 = vpop.f32.mrf.mxu0
      %v652 = vadd.f32 0.0, %v651
      %653 = vmatmul.f32.gmra.mxu0 %v542
      %v654 = vpop.f32.mrf.mxu0
      %v655 = vadd.f32 0.0, %v654
      %656 = vmatmul.f32.gmra.mxu0 %v545
      %v657 = vpop.f32.mrf.mxu0
      %v658 = vadd.f32 0.0, %v657
      %659 = vmatmul.f32.gmra.mxu0 %v548
      %v660 = vpop.f32.mrf.mxu0
      %v661 = vadd.f32 0.0, %v660
      %662 = vmatmul.f32.gmra.mxu0 %v551
      %v663 = vpop.f32.mrf.mxu0
      %v664 = vadd.f32 0.0, %v663
      %665 = vmatmul.f32.gmra.mxu0 %v554
      %v666 = vpop.f32.mrf.mxu0
      %v667 = vadd.f32 0.0, %v666
      %668 = vmatmul.f32.gmra.mxu0 %v557
      %v669 = vpop.f32.mrf.mxu0
      %v670 = vadd.f32 0.0, %v669
      %671 = vmatmul.f32.gmra.mxu0 %v560
      %v672 = vpop.f32.mrf.mxu0
      %v673 = vadd.f32 0.0, %v672
      %674 = vmatmul.f32.gmra.mxu0 %v563
      %v675 = vpop.f32.mrf.mxu0
      %v676 = vadd.f32 0.0, %v675
      %677 = vmatmul.f32.gmra.mxu0 %v566
      %v678 = vpop.f32.mrf.mxu0
      %v679 = vadd.f32 0.0, %v678
      %680 = vmatmul.f32.gmra.mxu0 %v569
      %v681 = vpop.f32.mrf.mxu0
      %v682 = vadd.f32 0.0, %v681
      %683 = vmatmul.f32.gmra.mxu0 %v572
      %v684 = vpop.f32.mrf.mxu0
      %v685 = vadd.f32 0.0, %v684
      %686 = vmatmul.f32.gmra.mxu0 %v575
      %v687 = vpop.f32.mrf.mxu0
      %v688 = vadd.f32 0.0, %v687
      %689 = vmatmul.f32.gmra.mxu0 %v578
      %v690 = vpop.f32.mrf.mxu0
      %v691 = vadd.f32 0.0, %v690
      %692 = vmatmul.f32.gmra.mxu0 %v581
      %v693 = vpop.f32.mrf.mxu0
      %v694 = vadd.f32 0.0, %v693
      %695 = vmatmul.f32.gmra.mxu0 %v584
      %v696 = vpop.f32.mrf.mxu0
      %v697 = vadd.f32 0.0, %v696
      %698 = vmatmul.f32.gmra.mxu0 %v587
      %v699 = vpop.f32.mrf.mxu0
      %v700 = vadd.f32 0.0, %v699
      %701 = vmatmul.f32.gmra.mxu0 %v590
      %v702 = vpop.f32.mrf.mxu0
      %v703 = vadd.f32 0.0, %v702
      %704 = vmatmul.f32.gmra.mxu0 %v593
      %v705 = vpop.f32.mrf.mxu0
      %v706 = vadd.f32 0.0, %v705
      %707 = vmatmul.f32.gmra.mxu0 %v596
      %v708 = vpop.f32.mrf.mxu0
      %v709 = vadd.f32 0.0, %v708
      %710 = vmatmul.f32.gmra.mxu0 %v599
      %v711 = vpop.f32.mrf.mxu0
      %v712 = vadd.f32 0.0, %v711
      %713 = vmatmul.f32.gmra.mxu0 %v602
      %v714 = vpop.f32.mrf.mxu0
      %v715 = vadd.f32 0.0, %v714
      %716 = vmatmul.f32.gmra.mxu0 %v605
      %v717 = vpop.f32.mrf.mxu0
      %v718 = vadd.f32 0.0, %v717
      %719 = vmatmul.f32.gmra.mxu0 %v608
      %v720 = vpop.f32.mrf.mxu0
      %v721 = vadd.f32 0.0, %v720
      %722 = vmatmul.f32.gmra.mxu0 %v611
      %v723 = vpop.f32.mrf.mxu0
      %v724 = vadd.f32 0.0, %v723
      %725 = vmatmul.f32.gmra.mxu0 %v614
      %v726 = vpop.f32.mrf.mxu0
      %v727 = vadd.f32 0.0, %v726
      %728 = vmatmul.f32.gmra.mxu0 %v617
      %v729 = vpop.f32.mrf.mxu0
      %v730 = vadd.f32 0.0, %v729
      %731 = vmatmul.f32.gmra.mxu0 %v620
      %v732 = vpop.f32.mrf.mxu0
      %v733 = vadd.f32 0.0, %v732
      %734 = vdwg.mxu0
      %735 = vmatpush.msra.mxu0 0.0
      %736 = vmatpush.msra.mxu0 0.0
      %737 = vmatpush.msra.mxu0 0.0
      %738 = vmatpush.msra.mxu0 0.0
      %739 = vmatpush.msra.mxu0 0.0
      %740 = vmatpush.msra.mxu0 0.0
      %741 = vmatpush.msra.mxu0 0.0
      %742 = vmatpush.msra.mxu0 0.0
      %743 = vmatpush.msra.mxu0 %v525
      %744 = vmatpush.msra.mxu0 %v523
      %745 = vmatpush.msra.mxu0 %v521
      %746 = vmatpush.msra.mxu0 %v519
      %747 = vmatpush.msra.mxu0 %v517
      %748 = vmatpush.msra.mxu0 %v515
      %749 = vmatpush.msra.mxu0 %v513
      %750 = vmatpush.msra.mxu0 %v511
      %751 = vmatmul.f32.gmra.mxu0 %v527
      %v752 = vpop.f32.mrf.mxu0
      %v753 = vadd.f32 0.0, %v752
      %754 = vmatmul.f32.gmra.mxu0 %v530
      %v755 = vpop.f32.mrf.mxu0
      %v756 = vadd.f32 0.0, %v755
      %757 = vmatmul.f32.gmra.mxu0 %v533
      %v758 = vpop.f32.mrf.mxu0
      %v759 = vadd.f32 0.0, %v758
      %760 = vmatmul.f32.gmra.mxu0 %v536
      %v761 = vpop.f32.mrf.mxu0
      %v762 = vadd.f32 0.0, %v761
      %763 = vmatmul.f32.gmra.mxu0 %v539
      %v764 = vpop.f32.mrf.mxu0
      %v765 = vadd.f32 0.0, %v764
      %766 = vmatmul.f32.gmra.mxu0 %v542
      %v767 = vpop.f32.mrf.mxu0
      %v768 = vadd.f32 0.0, %v767
      %769 = vmatmul.f32.gmra.mxu0 %v545
      %v770 = vpop.f32.mrf.mxu0
      %v771 = vadd.f32 0.0, %v770
      %772 = vmatmul.f32.gmra.mxu0 %v548
      %v773 = vpop.f32.mrf.mxu0
      %v774 = vadd.f32 0.0, %v773
      %775 = vmatmul.f32.gmra.mxu0 %v551
      %v776 = vpop.f32.mrf.mxu0
      %v777 = vadd.f32 0.0, %v776
      %778 = vmatmul.f32.gmra.mxu0 %v554
      %v779 = vpop.f32.mrf.mxu0
      %v780 = vadd.f32 0.0, %v779
      %781 = vmatmul.f32.gmra.mxu0 %v557
      %v782 = vpop.f32.mrf.mxu0
      %v783 = vadd.f32 0.0, %v782
      %784 = vmatmul.f32.gmra.mxu0 %v560
      %v785 = vpop.f32.mrf.mxu0
      %v786 = vadd.f32 0.0, %v785
      %787 = vmatmul.f32.gmra.mxu0 %v563
      %v788 = vpop.f32.mrf.mxu0
      %v789 = vadd.f32 0.0, %v788
      %790 = vmatmul.f32.gmra.mxu0 %v566
      %v791 = vpop.f32.mrf.mxu0
      %v792 = vadd.f32 0.0, %v791
      %793 = vmatmul.f32.gmra.mxu0 %v569
      %v794 = vpop.f32.mrf.mxu0
      %v795 = vadd.f32 0.0, %v794
      %796 = vmatmul.f32.gmra.mxu0 %v572
      %v797 = vpop.f32.mrf.mxu0
      %v798 = vadd.f32 0.0, %v797
      %799 = vmatmul.f32.gmra.mxu0 %v575
      %v800 = vpop.f32.mrf.mxu0
      %v801 = vadd.f32 0.0, %v800
      %802 = vmatmul.f32.gmra.mxu0 %v578
      %v803 = vpop.f32.mrf.mxu0
      %v804 = vadd.f32 0.0, %v803
      %805 = vmatmul.f32.gmra.mxu0 %v581
      %v806 = vpop.f32.mrf.mxu0
      %v807 = vadd.f32 0.0, %v806
      %808 = vmatmul.f32.gmra.mxu0 %v584
      %v809 = vpop.f32.mrf.mxu0
      %v810 = vadd.f32 0.0, %v809
      %811 = vmatmul.f32.gmra.mxu0 %v587
      %v812 = vpop.f32.mrf.mxu0
      %v813 = vadd.f32 0.0, %v812
      %814 = vmatmul.f32.gmra.mxu0 %v590
      %v815 = vpop.f32.mrf.mxu0
      %v816 = vadd.f32 0.0, %v815
      %817 = vmatmul.f32.gmra.mxu0 %v593
      %v818 = vpop.f32.mrf.mxu0
      %v819 = vadd.f32 0.0, %v818
      %820 = vmatmul.f32.gmra.mxu0 %v596
      %v821 = vpop.f32.mrf.mxu0
      %v822 = vadd.f32 0.0, %v821
      %823 = vmatmul.f32.gmra.mxu0 %v599
      %v824 = vpop.f32.mrf.mxu0
      %v825 = vadd.f32 0.0, %v824
      %826 = vmatmul.f32.gmra.mxu0 %v602
      %v827 = vpop.f32.mrf.mxu0
      %v828 = vadd.f32 0.0, %v827
      %829 = vmatmul.f32.gmra.mxu0 %v605
      %v830 = vpop.f32.mrf.mxu0
      %v831 = vadd.f32 0.0, %v830
      %832 = vmatmul.f32.gmra.mxu0 %v608
      %v833 = vpop.f32.mrf.mxu0
      %v834 = vadd.f32 0.0, %v833
      %835 = vmatmul.f32.gmra.mxu0 %v611
      %v836 = vpop.f32.mrf.mxu0
      %v837 = vadd.f32 0.0, %v836
      %838 = vmatmul.f32.gmra.mxu0 %v614
      %v839 = vpop.f32.mrf.mxu0
      %v840 = vadd.f32 0.0, %v839
      %841 = vmatmul.f32.gmra.mxu0 %v617
      %v842 = vpop.f32.mrf.mxu0
      %v843 = vadd.f32 0.0, %v842
      %844 = vmatmul.f32.gmra.mxu0 %v620
      %v845 = vpop.f32.mrf.mxu0
      %v846 = vadd.f32 0.0, %v845
      %847 = vdwg.mxu0
      %v849 = vsel %vm390, %v459, 0
      %v852 = vsel %vm390, %v460, 0
      %854 = vmatpush.msra.mxu0 0.0
      %855 = vmatpush.msra.mxu0 0.0
      %856 = vmatpush.msra.mxu0 0.0
      %857 = vmatpush.msra.mxu0 0.0
      %858 = vmatpush.msra.mxu0 0.0
      %859 = vmatpush.msra.mxu0 0.0
      %860 = vmatpush.msra.mxu0 0.0
      %861 = vmatpush.msra.mxu0 0.0
      %862 = vmatpush.msra.mxu0 %v505
      %863 = vmatpush.msra.mxu0 %v503
      %864 = vmatpush.msra.mxu0 %v501
      %865 = vmatpush.msra.mxu0 %v499
      %866 = vmatpush.msra.mxu0 %v497
      %867 = vmatpush.msra.mxu0 %v495
      %868 = vmatpush.msra.mxu0 %v493
      %869 = vmatpush.msra.mxu0 %v491
      %870 = vmatmul.f32.gmra.mxu0 %v849
      %v871 = vpop.f32.mrf.mxu0
      %v872 = vadd.f32 %v640, %v871
      %873 = vmatmul.f32.gmra.mxu0 %v852
      %v874 = vpop.f32.mrf.mxu0
      %v875 = vadd.f32 %v643, %v874
      %876 = vmatmul.f32.gmra.mxu0 %v527
      %v877 = vpop.f32.mrf.mxu0
      %v878 = vadd.f32 %v646, %v877
      %879 = vmatmul.f32.gmra.mxu0 %v530
      %v880 = vpop.f32.mrf.mxu0
      %v881 = vadd.f32 %v649, %v880
      %882 = vmatmul.f32.gmra.mxu0 %v533
      %v883 = vpop.f32.mrf.mxu0
      %v884 = vadd.f32 %v652, %v883
      %885 = vmatmul.f32.gmra.mxu0 %v536
      %v886 = vpop.f32.mrf.mxu0
      %v887 = vadd.f32 %v655, %v886
      %888 = vmatmul.f32.gmra.mxu0 %v539
      %v889 = vpop.f32.mrf.mxu0
      %v890 = vadd.f32 %v658, %v889
      %891 = vmatmul.f32.gmra.mxu0 %v542
      %v892 = vpop.f32.mrf.mxu0
      %v893 = vadd.f32 %v661, %v892
      %894 = vmatmul.f32.gmra.mxu0 %v545
      %v895 = vpop.f32.mrf.mxu0
      %v896 = vadd.f32 %v664, %v895
      %897 = vmatmul.f32.gmra.mxu0 %v548
      %v898 = vpop.f32.mrf.mxu0
      %v899 = vadd.f32 %v667, %v898
      %900 = vmatmul.f32.gmra.mxu0 %v551
      %v901 = vpop.f32.mrf.mxu0
      %v902 = vadd.f32 %v670, %v901
      %903 = vmatmul.f32.gmra.mxu0 %v554
      %v904 = vpop.f32.mrf.mxu0
      %v905 = vadd.f32 %v673, %v904
      %906 = vmatmul.f32.gmra.mxu0 %v557
      %v907 = vpop.f32.mrf.mxu0
      %v908 = vadd.f32 %v676, %v907
      %909 = vmatmul.f32.gmra.mxu0 %v560
      %v910 = vpop.f32.mrf.mxu0
      %v911 = vadd.f32 %v679, %v910
      %912 = vmatmul.f32.gmra.mxu0 %v563
      %v913 = vpop.f32.mrf.mxu0
      %v914 = vadd.f32 %v682, %v913
      %915 = vmatmul.f32.gmra.mxu0 %v566
      %v916 = vpop.f32.mrf.mxu0
      %v917 = vadd.f32 %v685, %v916
      %918 = vmatmul.f32.gmra.mxu0 %v569
      %v919 = vpop.f32.mrf.mxu0
      %v920 = vadd.f32 %v688, %v919
      %921 = vmatmul.f32.gmra.mxu0 %v572
      %v922 = vpop.f32.mrf.mxu0
      %v923 = vadd.f32 %v691, %v922
      %924 = vmatmul.f32.gmra.mxu0 %v575
      %v925 = vpop.f32.mrf.mxu0
      %v926 = vadd.f32 %v694, %v925
      %927 = vmatmul.f32.gmra.mxu0 %v578
      %v928 = vpop.f32.mrf.mxu0
      %v929 = vadd.f32 %v697, %v928
      %930 = vmatmul.f32.gmra.mxu0 %v581
      %v931 = vpop.f32.mrf.mxu0
      %v932 = vadd.f32 %v700, %v931
      %933 = vmatmul.f32.gmra.mxu0 %v584
      %v934 = vpop.f32.mrf.mxu0
      %v935 = vadd.f32 %v703, %v934
      %936 = vmatmul.f32.gmra.mxu0 %v587
      %v937 = vpop.f32.mrf.mxu0
      %v938 = vadd.f32 %v706, %v937
      %939 = vmatmul.f32.gmra.mxu0 %v590
      %v940 = vpop.f32.mrf.mxu0
      %v941 = vadd.f32 %v709, %v940
      %942 = vmatmul.f32.gmra.mxu0 %v593
      %v943 = vpop.f32.mrf.mxu0
      %v944 = vadd.f32 %v712, %v943
      %945 = vmatmul.f32.gmra.mxu0 %v596
      %v946 = vpop.f32.mrf.mxu0
      %v947 = vadd.f32 %v715, %v946
      %948 = vmatmul.f32.gmra.mxu0 %v599
      %v949 = vpop.f32.mrf.mxu0
      %v950 = vadd.f32 %v718, %v949
      %951 = vmatmul.f32.gmra.mxu0 %v602
      %v952 = vpop.f32.mrf.mxu0
      %v953 = vadd.f32 %v721, %v952
      %954 = vmatmul.f32.gmra.mxu0 %v605
      %v955 = vpop.f32.mrf.mxu0
      %v956 = vadd.f32 %v724, %v955
      %957 = vmatmul.f32.gmra.mxu0 %v608
      %v958 = vpop.f32.mrf.mxu0
      %v959 = vadd.f32 %v727, %v958
      %960 = vmatmul.f32.gmra.mxu0 %v611
      %v961 = vpop.f32.mrf.mxu0
      %v962 = vadd.f32 %v730, %v961
      %963 = vmatmul.f32.gmra.mxu0 %v614
      %v964 = vpop.f32.mrf.mxu0
      %v965 = vadd.f32 %v733, %v964
      %966 = vdwg.mxu0
      %967 = vmatpush.msra.mxu0 0.0
      %968 = vmatpush.msra.mxu0 0.0
      %969 = vmatpush.msra.mxu0 0.0
      %970 = vmatpush.msra.mxu0 0.0
      %971 = vmatpush.msra.mxu0 0.0
      %972 = vmatpush.msra.mxu0 0.0
      %973 = vmatpush.msra.mxu0 0.0
      %974 = vmatpush.msra.mxu0 0.0
      %975 = vmatpush.msra.mxu0 %v506
      %976 = vmatpush.msra.mxu0 %v504
      %977 = vmatpush.msra.mxu0 %v502
      %978 = vmatpush.msra.mxu0 %v500
      %979 = vmatpush.msra.mxu0 %v498
      %980 = vmatpush.msra.mxu0 %v496
      %981 = vmatpush.msra.mxu0 %v494
      %982 = vmatpush.msra.mxu0 %v492
      %983 = vmatmul.f32.gmra.mxu0 %v849
      %v984 = vpop.f32.mrf.mxu0
      %v985 = vadd.f32 %v753, %v984
      %986 = vmatmul.f32.gmra.mxu0 %v852
      %v987 = vpop.f32.mrf.mxu0
      %v988 = vadd.f32 %v756, %v987
      %989 = vmatmul.f32.gmra.mxu0 %v527
      %v990 = vpop.f32.mrf.mxu0
      %v991 = vadd.f32 %v759, %v990
      %992 = vmatmul.f32.gmra.mxu0 %v530
      %v993 = vpop.f32.mrf.mxu0
      %v994 = vadd.f32 %v762, %v993
      %995 = vmatmul.f32.gmra.mxu0 %v533
      %v996 = vpop.f32.mrf.mxu0
      %v997 = vadd.f32 %v765, %v996
      %998 = vmatmul.f32.gmra.mxu0 %v536
      %v999 = vpop.f32.mrf.mxu0
      %v1000 = vadd.f32 %v768, %v999
      %1001 = vmatmul.f32.gmra.mxu0 %v539
      %v1002 = vpop.f32.mrf.mxu0
      %v1003 = vadd.f32 %v771, %v1002
      %1004 = vmatmul.f32.gmra.mxu0 %v542
      %v1005 = vpop.f32.mrf.mxu0
      %v1006 = vadd.f32 %v774, %v1005
      %1007 = vmatmul.f32.gmra.mxu0 %v545
      %v1008 = vpop.f32.mrf.mxu0
      %v1009 = vadd.f32 %v777, %v1008
      %1010 = vmatmul.f32.gmra.mxu0 %v548
      %v1011 = vpop.f32.mrf.mxu0
      %v1012 = vadd.f32 %v780, %v1011
      %1013 = vmatmul.f32.gmra.mxu0 %v551
      %v1014 = vpop.f32.mrf.mxu0
      %v1015 = vadd.f32 %v783, %v1014
      %1016 = vmatmul.f32.gmra.mxu0 %v554
      %v1017 = vpop.f32.mrf.mxu0
      %v1018 = vadd.f32 %v786, %v1017
      %1019 = vmatmul.f32.gmra.mxu0 %v557
      %v1020 = vpop.f32.mrf.mxu0
      %v1021 = vadd.f32 %v789, %v1020
      %1022 = vmatmul.f32.gmra.mxu0 %v560
      %v1023 = vpop.f32.mrf.mxu0
      %v1024 = vadd.f32 %v792, %v1023
      %1025 = vmatmul.f32.gmra.mxu0 %v563
      %v1026 = vpop.f32.mrf.mxu0
      %v1027 = vadd.f32 %v795, %v1026
      %1028 = vmatmul.f32.gmra.mxu0 %v566
      %v1029 = vpop.f32.mrf.mxu0
      %v1030 = vadd.f32 %v798, %v1029
      %1031 = vmatmul.f32.gmra.mxu0 %v569
      %v1032 = vpop.f32.mrf.mxu0
      %v1033 = vadd.f32 %v801, %v1032
      %1034 = vmatmul.f32.gmra.mxu0 %v572
      %v1035 = vpop.f32.mrf.mxu0
      %v1036 = vadd.f32 %v804, %v1035
      %1037 = vmatmul.f32.gmra.mxu0 %v575
      %v1038 = vpop.f32.mrf.mxu0
      %v1039 = vadd.f32 %v807, %v1038
      %1040 = vmatmul.f32.gmra.mxu0 %v578
      %v1041 = vpop.f32.mrf.mxu0
      %v1042 = vadd.f32 %v810, %v1041
      %1043 = vmatmul.f32.gmra.mxu0 %v581
      %v1044 = vpop.f32.mrf.mxu0
      %v1045 = vadd.f32 %v813, %v1044
      %1046 = vmatmul.f32.gmra.mxu0 %v584
      %v1047 = vpop.f32.mrf.mxu0
      %v1048 = vadd.f32 %v816, %v1047
      %1049 = vmatmul.f32.gmra.mxu0 %v587
      %v1050 = vpop.f32.mrf.mxu0
      %v1051 = vadd.f32 %v819, %v1050
      %1052 = vmatmul.f32.gmra.mxu0 %v590
      %v1053 = vpop.f32.mrf.mxu0
      %v1054 = vadd.f32 %v822, %v1053
      %1055 = vmatmul.f32.gmra.mxu0 %v593
      %v1056 = vpop.f32.mrf.mxu0
      %v1057 = vadd.f32 %v825, %v1056
      %1058 = vmatmul.f32.gmra.mxu0 %v596
      %v1059 = vpop.f32.mrf.mxu0
      %v1060 = vadd.f32 %v828, %v1059
      %1061 = vmatmul.f32.gmra.mxu0 %v599
      %v1062 = vpop.f32.mrf.mxu0
      %v1063 = vadd.f32 %v831, %v1062
      %1064 = vmatmul.f32.gmra.mxu0 %v602
      %v1065 = vpop.f32.mrf.mxu0
      %v1066 = vadd.f32 %v834, %v1065
      %1067 = vmatmul.f32.gmra.mxu0 %v605
      %v1068 = vpop.f32.mrf.mxu0
      %v1069 = vadd.f32 %v837, %v1068
      %1070 = vmatmul.f32.gmra.mxu0 %v608
      %v1071 = vpop.f32.mrf.mxu0
      %v1072 = vadd.f32 %v840, %v1071
      %1073 = vmatmul.f32.gmra.mxu0 %v611
      %v1074 = vpop.f32.mrf.mxu0
      %v1075 = vadd.f32 %v843, %v1074
      %1076 = vmatmul.f32.gmra.mxu0 %v614
      %v1077 = vpop.f32.mrf.mxu0
      %v1078 = vadd.f32 %v846, %v1077
      %1079 = vdwg.mxu0
      %v1080 = vld [vmem:[#allocation2 + $0x20] sm:$0xff]
      %v1081 = vld [vmem:[#allocation2 + $0x28] sm:$0xff]
      %v1082 = vld [vmem:[#allocation2 + $0x30] sm:$0xff]
      %v1083 = vld [vmem:[#allocation2 + $0x38] sm:$0xff]
      %v1084 = vld [vmem:[#allocation2 + $0x40] sm:$0xff]
      %v1085 = vld [vmem:[#allocation2 + $0x48] sm:$0xff]
      %v1086 = vld [vmem:[#allocation2 + $0x50] sm:$0xff]
      %v1087 = vld [vmem:[#allocation2 + $0x58] sm:$0xff]
      %v1088 = vld [vmem:[#allocation2 + $0x60] sm:$0xff]
      %v1089 = vld [vmem:[#allocation2 + $0x68] sm:$0xff]
      %v1090 = vld [vmem:[#allocation2 + $0x70] sm:$0xff]
      %v1091 = vld [vmem:[#allocation2 + $0x78] sm:$0xff]
      %v1092 = vld [vmem:[#allocation2 + $0x80] sm:$0xff]
      %v1093 = vld [vmem:[#allocation2 + $0x88] sm:$0xff]
      %v1094 = vld [vmem:[#allocation2 + $0x90] sm:$0xff]
      %v1095 = vld [vmem:[#allocation2 + $0x98] sm:$0xff]
      %v1096 = vld [vmem:[#allocation2 + $0xa0] sm:$0xff]
      %v1097 = vld [vmem:[#allocation2 + $0xa8] sm:$0xff]
      %v1098 = vld [vmem:[#allocation2 + $0xb0] sm:$0xff]
      %v1099 = vld [vmem:[#allocation2 + $0xb8] sm:$0xff]
      %v1100 = vld [vmem:[#allocation2 + $0xc0] sm:$0xff]
      %v1101 = vld [vmem:[#allocation2 + $0xc8] sm:$0xff]
      %v1102 = vld [vmem:[#allocation2 + $0xd0] sm:$0xff]
      %v1103 = vld [vmem:[#allocation2 + $0xd8] sm:$0xff]
      %v1104 = vld [vmem:[#allocation2 + $0xe0] sm:$0xff]
      %v1105 = vld [vmem:[#allocation2 + $0xe8] sm:$0xff]
      %v1106 = vld [vmem:[#allocation2 + $0xf0] sm:$0xff]
      %v1107 = vld [vmem:[#allocation2 + $0xf8] sm:$0xff]
      %v1108 = vld [vmem:[#allocation2 + $0x100] sm:$0xff]
      %v1109 = vld [vmem:[#allocation2 + $0x108] sm:$0xff]
      %v1110 = vld [vmem:[#allocation2 + $0x110] sm:$0xff]
      %v1111 = vld [vmem:[#allocation2 + $0x118] sm:$0xff]
      %s1112 = scalar_lea.vmem %s1, 256
      %v1113 = vld [vmem:[%s1112] sm:$0xff]
      %v1114 = vld [vmem:[%s1112 + $0x8] sm:$0xff]
      %v1115 = vld [vmem:[%s1112 + $0x10] sm:$0xff]
      %v1116 = vld [vmem:[%s1112 + $0x18] sm:$0xff]
      %v1117 = vld [vmem:[%s1112 + $0x20] sm:$0xff]
      %v1118 = vld [vmem:[%s1112 + $0x28] sm:$0xff]
      %v1119 = vld [vmem:[%s1112 + $0x30] sm:$0xff]
      %v1120 = vld [vmem:[%s1112 + $0x38] sm:$0xff]
      %v1121 = vld [vmem:[%s1112 + $0x40] sm:$0xff]
      %v1122 = vld [vmem:[%s1112 + $0x48] sm:$0xff]
      %v1123 = vld [vmem:[%s1112 + $0x50] sm:$0xff]
      %v1124 = vld [vmem:[%s1112 + $0x58] sm:$0xff]
      %v1125 = vld [vmem:[%s1112 + $0x60] sm:$0xff]
      %v1126 = vld [vmem:[%s1112 + $0x68] sm:$0xff]
      %v1127 = vld [vmem:[%s1112 + $0x70] sm:$0xff]
      %v1128 = vld [vmem:[%s1112 + $0x78] sm:$0xff]
      %v1130 = vsel %vm390, %v1080, 0
      %v1133 = vsel %vm390, %v1081, 0
      %v1136 = vsel %vm390, %v1082, 0
      %v1139 = vsel %vm390, %v1083, 0
      %v1142 = vsel %vm390, %v1084, 0
      %v1145 = vsel %vm390, %v1085, 0
      %v1148 = vsel %vm390, %v1086, 0
      %v1151 = vsel %vm390, %v1087, 0
      %v1154 = vsel %vm390, %v1088, 0
      %v1157 = vsel %vm390, %v1089, 0
      %v1160 = vsel %vm390, %v1090, 0
      %v1163 = vsel %vm390, %v1091, 0
      %v1166 = vsel %vm390, %v1092, 0
      %v1169 = vsel %vm390, %v1093, 0
      %v1172 = vsel %vm390, %v1094, 0
      %v1175 = vsel %vm390, %v1095, 0
      %v1178 = vsel %vm390, %v1096, 0
      %v1181 = vsel %vm390, %v1097, 0
      %v1184 = vsel %vm390, %v1098, 0
      %v1187 = vsel %vm390, %v1099, 0
      %v1190 = vsel %vm390, %v1100, 0
      %v1193 = vsel %vm390, %v1101, 0
      %v1196 = vsel %vm390, %v1102, 0
      %v1199 = vsel %vm390, %v1103, 0
      %v1202 = vsel %vm390, %v1104, 0
      %v1205 = vsel %vm390, %v1105, 0
      %v1208 = vsel %vm390, %v1106, 0
      %v1211 = vsel %vm390, %v1107, 0
      %v1214 = vsel %vm390, %v1108, 0
      %v1217 = vsel %vm390, %v1109, 0
      %v1220 = vsel %vm390, %v1110, 0
      %v1223 = vsel %vm390, %v1111, 0
      %1225 = vmatpush.msra.mxu0 0.0
      %1226 = vmatpush.msra.mxu0 0.0
      %1227 = vmatpush.msra.mxu0 0.0
      %1228 = vmatpush.msra.mxu0 0.0
      %1229 = vmatpush.msra.mxu0 0.0
      %1230 = vmatpush.msra.mxu0 0.0
      %1231 = vmatpush.msra.mxu0 0.0
      %1232 = vmatpush.msra.mxu0 0.0
      %1233 = vmatpush.msra.mxu0 %v1127
      %1234 = vmatpush.msra.mxu0 %v1125
      %1235 = vmatpush.msra.mxu0 %v1123
      %1236 = vmatpush.msra.mxu0 %v1121
      %1237 = vmatpush.msra.mxu0 %v1119
      %1238 = vmatpush.msra.mxu0 %v1117
      %1239 = vmatpush.msra.mxu0 %v1115
      %1240 = vmatpush.msra.mxu0 %v1113
      %1241 = vmatmul.f32.gmra.mxu0 %v1130
      %v1242 = vpop.f32.mrf.mxu0
      %v1243 = vadd.f32 0.0, %v1242
      %1244 = vmatmul.f32.gmra.mxu0 %v1133
      %v1245 = vpop.f32.mrf.mxu0
      %v1246 = vadd.f32 0.0, %v1245
      %1247 = vmatmul.f32.gmra.mxu0 %v1136
      %v1248 = vpop.f32.mrf.mxu0
      %v1249 = vadd.f32 0.0, %v1248
      %1250 = vmatmul.f32.gmra.mxu0 %v1139
      %v1251 = vpop.f32.mrf.mxu0
      %v1252 = vadd.f32 0.0, %v1251
      %1253 = vmatmul.f32.gmra.mxu0 %v1142
      %v1254 = vpop.f32.mrf.mxu0
      %v1255 = vadd.f32 0.0, %v1254
      %1256 = vmatmul.f32.gmra.mxu0 %v1145
      %v1257 = vpop.f32.mrf.mxu0
      %v1258 = vadd.f32 0.0, %v1257
      %1259 = vmatmul.f32.gmra.mxu0 %v1148
      %v1260 = vpop.f32.mrf.mxu0
      %v1261 = vadd.f32 0.0, %v1260
      %1262 = vmatmul.f32.gmra.mxu0 %v1151
      %v1263 = vpop.f32.mrf.mxu0
      %v1264 = vadd.f32 0.0, %v1263
      %1265 = vmatmul.f32.gmra.mxu0 %v1154
      %v1266 = vpop.f32.mrf.mxu0
      %v1267 = vadd.f32 0.0, %v1266
      %1268 = vmatmul.f32.gmra.mxu0 %v1157
      %v1269 = vpop.f32.mrf.mxu0
      %v1270 = vadd.f32 0.0, %v1269
      %1271 = vmatmul.f32.gmra.mxu0 %v1160
      %v1272 = vpop.f32.mrf.mxu0
      %v1273 = vadd.f32 0.0, %v1272
      %1274 = vmatmul.f32.gmra.mxu0 %v1163
      %v1275 = vpop.f32.mrf.mxu0
      %v1276 = vadd.f32 0.0, %v1275
      %1277 = vmatmul.f32.gmra.mxu0 %v1166
      %v1278 = vpop.f32.mrf.mxu0
      %v1279 = vadd.f32 0.0, %v1278
      %1280 = vmatmul.f32.gmra.mxu0 %v1169
      %v1281 = vpop.f32.mrf.mxu0
      %v1282 = vadd.f32 0.0, %v1281
      %1283 = vmatmul.f32.gmra.mxu0 %v1172
      %v1284 = vpop.f32.mrf.mxu0
      %v1285 = vadd.f32 0.0, %v1284
      %1286 = vmatmul.f32.gmra.mxu0 %v1175
      %v1287 = vpop.f32.mrf.mxu0
      %v1288 = vadd.f32 0.0, %v1287
      %1289 = vmatmul.f32.gmra.mxu0 %v1178
      %v1290 = vpop.f32.mrf.mxu0
      %v1291 = vadd.f32 0.0, %v1290
      %1292 = vmatmul.f32.gmra.mxu0 %v1181
      %v1293 = vpop.f32.mrf.mxu0
      %v1294 = vadd.f32 0.0, %v1293
      %1295 = vmatmul.f32.gmra.mxu0 %v1184
      %v1296 = vpop.f32.mrf.mxu0
      %v1297 = vadd.f32 0.0, %v1296
      %1298 = vmatmul.f32.gmra.mxu0 %v1187
      %v1299 = vpop.f32.mrf.mxu0
      %v1300 = vadd.f32 0.0, %v1299
      %1301 = vmatmul.f32.gmra.mxu0 %v1190
      %v1302 = vpop.f32.mrf.mxu0
      %v1303 = vadd.f32 0.0, %v1302
      %1304 = vmatmul.f32.gmra.mxu0 %v1193
      %v1305 = vpop.f32.mrf.mxu0
      %v1306 = vadd.f32 0.0, %v1305
      %1307 = vmatmul.f32.gmra.mxu0 %v1196
      %v1308 = vpop.f32.mrf.mxu0
      %v1309 = vadd.f32 0.0, %v1308
      %1310 = vmatmul.f32.gmra.mxu0 %v1199
      %v1311 = vpop.f32.mrf.mxu0
      %v1312 = vadd.f32 0.0, %v1311
      %1313 = vmatmul.f32.gmra.mxu0 %v1202
      %v1314 = vpop.f32.mrf.mxu0
      %v1315 = vadd.f32 0.0, %v1314
      %1316 = vmatmul.f32.gmra.mxu0 %v1205
      %v1317 = vpop.f32.mrf.mxu0
      %v1318 = vadd.f32 0.0, %v1317
      %1319 = vmatmul.f32.gmra.mxu0 %v1208
      %v1320 = vpop.f32.mrf.mxu0
      %v1321 = vadd.f32 0.0, %v1320
      %1322 = vmatmul.f32.gmra.mxu0 %v1211
      %v1323 = vpop.f32.mrf.mxu0
      %v1324 = vadd.f32 0.0, %v1323
      %1325 = vmatmul.f32.gmra.mxu0 %v1214
      %v1326 = vpop.f32.mrf.mxu0
      %v1327 = vadd.f32 0.0, %v1326
      %1328 = vmatmul.f32.gmra.mxu0 %v1217
      %v1329 = vpop.f32.mrf.mxu0
      %v1330 = vadd.f32 0.0, %v1329
      %1331 = vmatmul.f32.gmra.mxu0 %v1220
      %v1332 = vpop.f32.mrf.mxu0
      %v1333 = vadd.f32 0.0, %v1332
      %1334 = vmatmul.f32.gmra.mxu0 %v1223
      %v1335 = vpop.f32.mrf.mxu0
      %v1336 = vadd.f32 0.0, %v1335
      %1337 = vdwg.mxu0
      %1338 = vmatpush.msra.mxu0 0.0
      %1339 = vmatpush.msra.mxu0 0.0
      %1340 = vmatpush.msra.mxu0 0.0
      %1341 = vmatpush.msra.mxu0 0.0
      %1342 = vmatpush.msra.mxu0 0.0
      %1343 = vmatpush.msra.mxu0 0.0
      %1344 = vmatpush.msra.mxu0 0.0
      %1345 = vmatpush.msra.mxu0 0.0
      %1346 = vmatpush.msra.mxu0 %v1128
      %1347 = vmatpush.msra.mxu0 %v1126
      %1348 = vmatpush.msra.mxu0 %v1124
      %1349 = vmatpush.msra.mxu0 %v1122
      %1350 = vmatpush.msra.mxu0 %v1120
      %1351 = vmatpush.msra.mxu0 %v1118
      %1352 = vmatpush.msra.mxu0 %v1116
      %1353 = vmatpush.msra.mxu0 %v1114
      %1354 = vmatmul.f32.gmra.mxu0 %v1130
      %v1355 = vpop.f32.mrf.mxu0
      %v1356 = vadd.f32 0.0, %v1355
      %1357 = vmatmul.f32.gmra.mxu0 %v1133
      %v1358 = vpop.f32.mrf.mxu0
      %v1359 = vadd.f32 0.0, %v1358
      %1360 = vmatmul.f32.gmra.mxu0 %v1136
      %v1361 = vpop.f32.mrf.mxu0
      %v1362 = vadd.f32 0.0, %v1361
      %1363 = vmatmul.f32.gmra.mxu0 %v1139
      %v1364 = vpop.f32.mrf.mxu0
      %v1365 = vadd.f32 0.0, %v1364
      %1366 = vmatmul.f32.gmra.mxu0 %v1142
      %v1367 = vpop.f32.mrf.mxu0
      %v1368 = vadd.f32 0.0, %v1367
      %1369 = vmatmul.f32.gmra.mxu0 %v1145
      %v1370 = vpop.f32.mrf.mxu0
      %v1371 = vadd.f32 0.0, %v1370
      %1372 = vmatmul.f32.gmra.mxu0 %v1148
      %v1373 = vpop.f32.mrf.mxu0
      %v1374 = vadd.f32 0.0, %v1373
      %1375 = vmatmul.f32.gmra.mxu0 %v1151
      %v1376 = vpop.f32.mrf.mxu0
      %v1377 = vadd.f32 0.0, %v1376
      %1378 = vmatmul.f32.gmra.mxu0 %v1154
      %v1379 = vpop.f32.mrf.mxu0
      %v1380 = vadd.f32 0.0, %v1379
      %1381 = vmatmul.f32.gmra.mxu0 %v1157
      %v1382 = vpop.f32.mrf.mxu0
      %v1383 = vadd.f32 0.0, %v1382
      %1384 = vmatmul.f32.gmra.mxu0 %v1160
      %v1385 = vpop.f32.mrf.mxu0
      %v1386 = vadd.f32 0.0, %v1385
      %1387 = vmatmul.f32.gmra.mxu0 %v1163
      %v1388 = vpop.f32.mrf.mxu0
      %v1389 = vadd.f32 0.0, %v1388
      %1390 = vmatmul.f32.gmra.mxu0 %v1166
      %v1391 = vpop.f32.mrf.mxu0
      %v1392 = vadd.f32 0.0, %v1391
      %1393 = vmatmul.f32.gmra.mxu0 %v1169
      %v1394 = vpop.f32.mrf.mxu0
      %v1395 = vadd.f32 0.0, %v1394
      %1396 = vmatmul.f32.gmra.mxu0 %v1172
      %v1397 = vpop.f32.mrf.mxu0
      %v1398 = vadd.f32 0.0, %v1397
      %1399 = vmatmul.f32.gmra.mxu0 %v1175
      %v1400 = vpop.f32.mrf.mxu0
      %v1401 = vadd.f32 0.0, %v1400
      %1402 = vmatmul.f32.gmra.mxu0 %v1178
      %v1403 = vpop.f32.mrf.mxu0
      %v1404 = vadd.f32 0.0, %v1403
      %1405 = vmatmul.f32.gmra.mxu0 %v1181
      %v1406 = vpop.f32.mrf.mxu0
      %v1407 = vadd.f32 0.0, %v1406
      %1408 = vmatmul.f32.gmra.mxu0 %v1184
      %v1409 = vpop.f32.mrf.mxu0
      %v1410 = vadd.f32 0.0, %v1409
      %1411 = vmatmul.f32.gmra.mxu0 %v1187
      %v1412 = vpop.f32.mrf.mxu0
      %v1413 = vadd.f32 0.0, %v1412
      %1414 = vmatmul.f32.gmra.mxu0 %v1190
      %v1415 = vpop.f32.mrf.mxu0
      %v1416 = vadd.f32 0.0, %v1415
      %1417 = vmatmul.f32.gmra.mxu0 %v1193
      %v1418 = vpop.f32.mrf.mxu0
      %v1419 = vadd.f32 0.0, %v1418
      %1420 = vmatmul.f32.gmra.mxu0 %v1196
      %v1421 = vpop.f32.mrf.mxu0
      %v1422 = vadd.f32 0.0, %v1421
      %1423 = vmatmul.f32.gmra.mxu0 %v1199
      %v1424 = vpop.f32.mrf.mxu0
      %v1425 = vadd.f32 0.0, %v1424
      %1426 = vmatmul.f32.gmra.mxu0 %v1202
      %v1427 = vpop.f32.mrf.mxu0
      %v1428 = vadd.f32 0.0, %v1427
      %1429 = vmatmul.f32.gmra.mxu0 %v1205
      %v1430 = vpop.f32.mrf.mxu0
      %v1431 = vadd.f32 0.0, %v1430
      %1432 = vmatmul.f32.gmra.mxu0 %v1208
      %v1433 = vpop.f32.mrf.mxu0
      %v1434 = vadd.f32 0.0, %v1433
      %1435 = vmatmul.f32.gmra.mxu0 %v1211
      %v1436 = vpop.f32.mrf.mxu0
      %v1437 = vadd.f32 0.0, %v1436
      %1438 = vmatmul.f32.gmra.mxu0 %v1214
      %v1439 = vpop.f32.mrf.mxu0
      %v1440 = vadd.f32 0.0, %v1439
      %1441 = vmatmul.f32.gmra.mxu0 %v1217
      %v1442 = vpop.f32.mrf.mxu0
      %v1443 = vadd.f32 0.0, %v1442
      %1444 = vmatmul.f32.gmra.mxu0 %v1220
      %v1445 = vpop.f32.mrf.mxu0
      %v1446 = vadd.f32 0.0, %v1445
      %1447 = vmatmul.f32.gmra.mxu0 %v1223
      %v1448 = vpop.f32.mrf.mxu0
      %v1449 = vadd.f32 0.0, %v1448
      %1450 = vdwg.mxu0
      %v1451 = vadd.f32 %v872, %v1243
      %v1452 = vadd.f32 %v985, %v1356
      %v1453 = vadd.f32 %v875, %v1246
      %v1454 = vadd.f32 %v988, %v1359
      %v1455 = vadd.f32 %v878, %v1249
      %v1456 = vadd.f32 %v991, %v1362
      %v1457 = vadd.f32 %v881, %v1252
      %v1458 = vadd.f32 %v994, %v1365
      %v1459 = vadd.f32 %v884, %v1255
      %v1460 = vadd.f32 %v997, %v1368
      %v1461 = vadd.f32 %v887, %v1258
      %v1462 = vadd.f32 %v1000, %v1371
      %v1463 = vadd.f32 %v890, %v1261
      %v1464 = vadd.f32 %v1003, %v1374
      %v1465 = vadd.f32 %v893, %v1264
      %v1466 = vadd.f32 %v1006, %v1377
      %v1467 = vadd.f32 %v896, %v1267
      %v1468 = vadd.f32 %v1009, %v1380
      %v1469 = vadd.f32 %v899, %v1270
      %v1470 = vadd.f32 %v1012, %v1383
      %v1471 = vadd.f32 %v902, %v1273
      %v1472 = vadd.f32 %v1015, %v1386
      %v1473 = vadd.f32 %v905, %v1276
      %v1474 = vadd.f32 %v1018, %v1389
      %v1475 = vadd.f32 %v908, %v1279
      %v1476 = vadd.f32 %v1021, %v1392
      %v1477 = vadd.f32 %v911, %v1282
      %v1478 = vadd.f32 %v1024, %v1395
      %v1479 = vadd.f32 %v914, %v1285
      %v1480 = vadd.f32 %v1027, %v1398
      %v1481 = vadd.f32 %v917, %v1288
      %v1482 = vadd.f32 %v1030, %v1401
      %v1483 = vadd.f32 %v920, %v1291
      %v1484 = vadd.f32 %v1033, %v1404
      %v1485 = vadd.f32 %v923, %v1294
      %v1486 = vadd.f32 %v1036, %v1407
      %v1487 = vadd.f32 %v926, %v1297
      %v1488 = vadd.f32 %v1039, %v1410
      %v1489 = vadd.f32 %v929, %v1300
      %v1490 = vadd.f32 %v1042, %v1413
      %v1491 = vadd.f32 %v932, %v1303
      %v1492 = vadd.f32 %v1045, %v1416
      %v1493 = vadd.f32 %v935, %v1306
      %v1494 = vadd.f32 %v1048, %v1419
      %v1495 = vadd.f32 %v938, %v1309
      %v1496 = vadd.f32 %v1051, %v1422
      %v1497 = vadd.f32 %v941, %v1312
      %v1498 = vadd.f32 %v1054, %v1425
      %v1499 = vadd.f32 %v944, %v1315
      %v1500 = vadd.f32 %v1057, %v1428
      %v1501 = vadd.f32 %v947, %v1318
      %v1502 = vadd.f32 %v1060, %v1431
      %v1503 = vadd.f32 %v950, %v1321
      %v1504 = vadd.f32 %v1063, %v1434
      %v1505 = vadd.f32 %v953, %v1324
      %v1506 = vadd.f32 %v1066, %v1437
      %v1507 = vadd.f32 %v956, %v1327
      %v1508 = vadd.f32 %v1069, %v1440
      %v1509 = vadd.f32 %v959, %v1330
      %v1510 = vadd.f32 %v1072, %v1443
      %v1511 = vadd.f32 %v962, %v1333
      %v1512 = vadd.f32 %v1075, %v1446
      %v1513 = vadd.f32 %v965, %v1336
      %v1514 = vadd.f32 %v1078, %v1449
      %v1515 = vld [vmem:[%s2] sm:$0x3]
      %v1517 = vperm.slane %v1515, 0
      %v1518 = vperm.slane %v1515, 1
      %v1521 = vadd.f32 %v1451, %v1517
      %v1522 = vadd.f32 %v1452, %v1518
      %v1523 = vadd.f32 %v1453, %v1517
      %v1524 = vadd.f32 %v1454, %v1518
      %v1525 = vadd.f32 %v1455, %v1517
      %v1526 = vadd.f32 %v1456, %v1518
      %v1527 = vadd.f32 %v1457, %v1517
      %v1528 = vadd.f32 %v1458, %v1518
      %v1529 = vadd.f32 %v1459, %v1517
      %v1530 = vadd.f32 %v1460, %v1518
      %v1531 = vadd.f32 %v1461, %v1517
      %v1532 = vadd.f32 %v1462, %v1518
      %v1533 = vadd.f32 %v1463, %v1517
      %v1534 = vadd.f32 %v1464, %v1518
      %v1535 = vadd.f32 %v1465, %v1517
      %v1536 = vadd.f32 %v1466, %v1518
      %v1537 = vadd.f32 %v1467, %v1517
      %v1538 = vadd.f32 %v1468, %v1518
      %v1539 = vadd.f32 %v1469, %v1517
      %v1540 = vadd.f32 %v1470, %v1518
      %v1541 = vadd.f32 %v1471, %v1517
      %v1542 = vadd.f32 %v1472, %v1518
      %v1543 = vadd.f32 %v1473, %v1517
      %v1544 = vadd.f32 %v1474, %v1518
      %v1545 = vadd.f32 %v1475, %v1517
      %v1546 = vadd.f32 %v1476, %v1518
      %v1547 = vadd.f32 %v1477, %v1517
      %v1548 = vadd.f32 %v1478, %v1518
      %v1549 = vadd.f32 %v1479, %v1517
      %v1550 = vadd.f32 %v1480, %v1518
      %v1551 = vadd.f32 %v1481, %v1517
      %v1552 = vadd.f32 %v1482, %v1518
      %v1553 = vadd.f32 %v1483, %v1517
      %v1554 = vadd.f32 %v1484, %v1518
      %v1555 = vadd.f32 %v1485, %v1517
      %v1556 = vadd.f32 %v1486, %v1518
      %v1557 = vadd.f32 %v1487, %v1517
      %v1558 = vadd.f32 %v1488, %v1518
      %v1559 = vadd.f32 %v1489, %v1517
      %v1560 = vadd.f32 %v1490, %v1518
      %v1561 = vadd.f32 %v1491, %v1517
      %v1562 = vadd.f32 %v1492, %v1518
      %v1563 = vadd.f32 %v1493, %v1517
      %v1564 = vadd.f32 %v1494, %v1518
      %v1565 = vadd.f32 %v1495, %v1517
      %v1566 = vadd.f32 %v1496, %v1518
      %v1567 = vadd.f32 %v1497, %v1517
      %v1568 = vadd.f32 %v1498, %v1518
      %v1569 = vadd.f32 %v1499, %v1517
      %v1570 = vadd.f32 %v1500, %v1518
      %v1571 = vadd.f32 %v1501, %v1517
      %v1572 = vadd.f32 %v1502, %v1518
      %v1573 = vadd.f32 %v1503, %v1517
      %v1574 = vadd.f32 %v1504, %v1518
      %v1575 = vadd.f32 %v1505, %v1517
      %v1576 = vadd.f32 %v1506, %v1518
      %v1577 = vadd.f32 %v1507, %v1517
      %v1578 = vadd.f32 %v1508, %v1518
      %v1579 = vadd.f32 %v1509, %v1517
      %v1580 = vadd.f32 %v1510, %v1518
      %v1581 = vadd.f32 %v1511, %v1517
      %v1582 = vadd.f32 %v1512, %v1518
      %v1583 = vadd.f32 %v1513, %v1517
      %v1584 = vadd.f32 %v1514, %v1518
      %v1585 = vtanh.pop %v1521
      %v1586 = vtanh.pop %v1522
      %v1587 = vtanh.pop %v1523
      %v1588 = vtanh.pop %v1524
      %v1589 = vtanh.pop %v1525
      %v1590 = vtanh.pop %v1526
      %v1591 = vtanh.pop %v1527
      %v1592 = vtanh.pop %v1528
      %v1593 = vtanh.pop %v1529
      %v1594 = vtanh.pop %v1530
      %v1595 = vtanh.pop %v1531
      %v1596 = vtanh.pop %v1532
      %v1597 = vtanh.pop %v1533
      %v1598 = vtanh.pop %v1534
      %v1599 = vtanh.pop %v1535
      %v1600 = vtanh.pop %v1536
      %v1601 = vtanh.pop %v1537
      %v1602 = vtanh.pop %v1538
      %v1603 = vtanh.pop %v1539
      %v1604 = vtanh.pop %v1540
      %v1605 = vtanh.pop %v1541
      %v1606 = vtanh.pop %v1542
      %v1607 = vtanh.pop %v1543
      %v1608 = vtanh.pop %v1544
      %v1609 = vtanh.pop %v1545
      %v1610 = vtanh.pop %v1546
      %v1611 = vtanh.pop %v1547
      %v1612 = vtanh.pop %v1548
      %v1613 = vtanh.pop %v1549
      %v1614 = vtanh.pop %v1550
      %v1615 = vtanh.pop %v1551
      %v1616 = vtanh.pop %v1552
      %v1617 = vtanh.pop %v1553
      %v1618 = vtanh.pop %v1554
      %v1619 = vtanh.pop %v1555
      %v1620 = vtanh.pop %v1556
      %v1621 = vtanh.pop %v1557
      %v1622 = vtanh.pop %v1558
      %v1623 = vtanh.pop %v1559
      %v1624 = vtanh.pop %v1560
      %v1625 = vtanh.pop %v1561
      %v1626 = vtanh.pop %v1562
      %v1627 = vtanh.pop %v1563
      %v1628 = vtanh.pop %v1564
      %v1629 = vtanh.pop %v1565
      %v1630 = vtanh.pop %v1566
      %v1631 = vtanh.pop %v1567
      %v1632 = vtanh.pop %v1568
      %v1633 = vtanh.pop %v1569
      %v1634 = vtanh.pop %v1570
      %v1635 = vtanh.pop %v1571
      %v1636 = vtanh.pop %v1572
      %v1637 = vtanh.pop %v1573
      %v1638 = vtanh.pop %v1574
      %v1639 = vtanh.pop %v1575
      %v1640 = vtanh.pop %v1576
      %v1641 = vtanh.pop %v1577
      %v1642 = vtanh.pop %v1578
      %v1643 = vtanh.pop %v1579
      %v1644 = vtanh.pop %v1580
      %v1645 = vtanh.pop %v1581
      %v1646 = vtanh.pop %v1582
      %v1647 = vtanh.pop %v1583
      %v1648 = vtanh.pop %v1584
      %v1649 = vld [vmem:[%s3] sm:$0xff]
      %v1650 = vld [vmem:[%s3 + $0x8] sm:$0xff]
      %v1651 = vld [vmem:[%s3 + $0x10] sm:$0xff]
      %v1652 = vld [vmem:[%s3 + $0x18] sm:$0xff]
      %v1653 = vld [vmem:[%s3 + $0x20] sm:$0xff]
      %v1654 = vld [vmem:[%s3 + $0x28] sm:$0xff]
      %v1655 = vld [vmem:[%s3 + $0x30] sm:$0xff]
      %v1656 = vld [vmem:[%s3 + $0x38] sm:$0xff]
      %v1657 = vld [vmem:[%s3 + $0x40] sm:$0xff]
      %v1658 = vld [vmem:[%s3 + $0x48] sm:$0xff]
      %v1659 = vld [vmem:[%s3 + $0x50] sm:$0xff]
      %v1660 = vld [vmem:[%s3 + $0x58] sm:$0xff]
      %v1661 = vld [vmem:[%s3 + $0x60] sm:$0xff]
      %v1662 = vld [vmem:[%s3 + $0x68] sm:$0xff]
      %v1663 = vld [vmem:[%s3 + $0x70] sm:$0xff]
      %v1664 = vld [vmem:[%s3 + $0x78] sm:$0xff]
      %v1665 = vld [vmem:[%s3 + $0x80] sm:$0xff]
      %v1666 = vld [vmem:[%s3 + $0x88] sm:$0xff]
      %v1667 = vld [vmem:[%s3 + $0x90] sm:$0xff]
      %v1668 = vld [vmem:[%s3 + $0x98] sm:$0xff]
      %v1669 = vld [vmem:[%s3 + $0xa0] sm:$0xff]
      %v1670 = vld [vmem:[%s3 + $0xa8] sm:$0xff]
      %v1671 = vld [vmem:[%s3 + $0xb0] sm:$0xff]
      %v1672 = vld [vmem:[%s3 + $0xb8] sm:$0xff]
      %v1673 = vld [vmem:[%s3 + $0xc0] sm:$0xff]
      %v1674 = vld [vmem:[%s3 + $0xc8] sm:$0xff]
      %v1675 = vld [vmem:[%s3 + $0xd0] sm:$0xff]
      %v1676 = vld [vmem:[%s3 + $0xd8] sm:$0xff]
      %v1677 = vld [vmem:[%s3 + $0xe0] sm:$0xff]
      %v1678 = vld [vmem:[%s3 + $0xe8] sm:$0xff]
      %v1679 = vld [vmem:[%s3 + $0xf0] sm:$0xff]
      %v1680 = vld [vmem:[%s3 + $0xf8] sm:$0xff]
      %1681 = vmatpush.msra.mxu0 %v1664
      %1682 = vmatpush.msra.mxu0 %v1663
      %1683 = vmatpush.msra.mxu0 %v1662
      %1684 = vmatpush.msra.mxu0 %v1661
      %1685 = vmatpush.msra.mxu0 %v1660
      %1686 = vmatpush.msra.mxu0 %v1659
      %1687 = vmatpush.msra.mxu0 %v1658
      %1688 = vmatpush.msra.mxu0 %v1657
      %1689 = vmatpush.msra.mxu0 %v1656
      %1690 = vmatpush.msra.mxu0 %v1655
      %1691 = vmatpush.msra.mxu0 %v1654
      %1692 = vmatpush.msra.mxu0 %v1653
      %1693 = vmatpush.msra.mxu0 %v1652
      %1694 = vmatpush.msra.mxu0 %v1651
      %1695 = vmatpush.msra.mxu0 %v1650
      %1696 = vmatpush.msra.mxu0 %v1649
      %1697 = vmatmul.f32.gmra.mxu0 %v1585
      %v1698 = vpop.f32.mrf.mxu0
      %v1699 = vadd.f32 0.0, %v1698
      %1700 = vmatmul.f32.gmra.mxu0 %v1587
      %v1701 = vpop.f32.mrf.mxu0
      %v1702 = vadd.f32 0.0, %v1701
      %1703 = vmatmul.f32.gmra.mxu0 %v1589
      %v1704 = vpop.f32.mrf.mxu0
      %v1705 = vadd.f32 0.0, %v1704
      %1706 = vmatmul.f32.gmra.mxu0 %v1591
      %v1707 = vpop.f32.mrf.mxu0
      %v1708 = vadd.f32 0.0, %v1707
      %1709 = vmatmul.f32.gmra.mxu0 %v1593
      %v1710 = vpop.f32.mrf.mxu0
      %v1711 = vadd.f32 0.0, %v1710
      %1712 = vmatmul.f32.gmra.mxu0 %v1595
      %v1713 = vpop.f32.mrf.mxu0
      %v1714 = vadd.f32 0.0, %v1713
      %1715 = vmatmul.f32.gmra.mxu0 %v1597
      %v1716 = vpop.f32.mrf.mxu0
      %v1717 = vadd.f32 0.0, %v1716
      %1718 = vmatmul.f32.gmra.mxu0 %v1599
      %v1719 = vpop.f32.mrf.mxu0
      %v1720 = vadd.f32 0.0, %v1719
      %1721 = vmatmul.f32.gmra.mxu0 %v1601
      %v1722 = vpop.f32.mrf.mxu0
      %v1723 = vadd.f32 0.0, %v1722
      %1724 = vmatmul.f32.gmra.mxu0 %v1603
      %v1725 = vpop.f32.mrf.mxu0
      %v1726 = vadd.f32 0.0, %v1725
      %1727 = vmatmul.f32.gmra.mxu0 %v1605
      %v1728 = vpop.f32.mrf.mxu0
      %v1729 = vadd.f32 0.0, %v1728
      %1730 = vmatmul.f32.gmra.mxu0 %v1607
      %v1731 = vpop.f32.mrf.mxu0
      %v1732 = vadd.f32 0.0, %v1731
      %1733 = vmatmul.f32.gmra.mxu0 %v1609
      %v1734 = vpop.f32.mrf.mxu0
      %v1735 = vadd.f32 0.0, %v1734
      %1736 = vmatmul.f32.gmra.mxu0 %v1611
      %v1737 = vpop.f32.mrf.mxu0
      %v1738 = vadd.f32 0.0, %v1737
      %1739 = vmatmul.f32.gmra.mxu0 %v1613
      %v1740 = vpop.f32.mrf.mxu0
      %v1741 = vadd.f32 0.0, %v1740
      %1742 = vmatmul.f32.gmra.mxu0 %v1615
      %v1743 = vpop.f32.mrf.mxu0
      %v1744 = vadd.f32 0.0, %v1743
      %1745 = vmatmul.f32.gmra.mxu0 %v1617
      %v1746 = vpop.f32.mrf.mxu0
      %v1747 = vadd.f32 0.0, %v1746
      %1748 = vmatmul.f32.gmra.mxu0 %v1619
      %v1749 = vpop.f32.mrf.mxu0
      %v1750 = vadd.f32 0.0, %v1749
      %1751 = vmatmul.f32.gmra.mxu0 %v1621
      %v1752 = vpop.f32.mrf.mxu0
      %v1753 = vadd.f32 0.0, %v1752
      %1754 = vmatmul.f32.gmra.mxu0 %v1623
      %v1755 = vpop.f32.mrf.mxu0
      %v1756 = vadd.f32 0.0, %v1755
      %1757 = vmatmul.f32.gmra.mxu0 %v1625
      %v1758 = vpop.f32.mrf.mxu0
      %v1759 = vadd.f32 0.0, %v1758
      %1760 = vmatmul.f32.gmra.mxu0 %v1627
      %v1761 = vpop.f32.mrf.mxu0
      %v1762 = vadd.f32 0.0, %v1761
      %1763 = vmatmul.f32.gmra.mxu0 %v1629
      %v1764 = vpop.f32.mrf.mxu0
      %v1765 = vadd.f32 0.0, %v1764
      %1766 = vmatmul.f32.gmra.mxu0 %v1631
      %v1767 = vpop.f32.mrf.mxu0
      %v1768 = vadd.f32 0.0, %v1767
      %1769 = vmatmul.f32.gmra.mxu0 %v1633
      %v1770 = vpop.f32.mrf.mxu0
      %v1771 = vadd.f32 0.0, %v1770
      %1772 = vmatmul.f32.gmra.mxu0 %v1635
      %v1773 = vpop.f32.mrf.mxu0
      %v1774 = vadd.f32 0.0, %v1773
      %1775 = vmatmul.f32.gmra.mxu0 %v1637
      %v1776 = vpop.f32.mrf.mxu0
      %v1777 = vadd.f32 0.0, %v1776
      %1778 = vmatmul.f32.gmra.mxu0 %v1639
      %v1779 = vpop.f32.mrf.mxu0
      %v1780 = vadd.f32 0.0, %v1779
      %1781 = vmatmul.f32.gmra.mxu0 %v1641
      %v1782 = vpop.f32.mrf.mxu0
      %v1783 = vadd.f32 0.0, %v1782
      %1784 = vmatmul.f32.gmra.mxu0 %v1643
      %v1785 = vpop.f32.mrf.mxu0
      %v1786 = vadd.f32 0.0, %v1785
      %1787 = vmatmul.f32.gmra.mxu0 %v1645
      %v1788 = vpop.f32.mrf.mxu0
      %v1789 = vadd.f32 0.0, %v1788
      %1790 = vmatmul.f32.gmra.mxu0 %v1647
      %v1791 = vpop.f32.mrf.mxu0
      %v1792 = vadd.f32 0.0, %v1791
      %1793 = vdwg.mxu0
      %1794 = vmatpush.msra.mxu0 %v1680
      %1795 = vmatpush.msra.mxu0 %v1679
      %1796 = vmatpush.msra.mxu0 %v1678
      %1797 = vmatpush.msra.mxu0 %v1677
      %1798 = vmatpush.msra.mxu0 %v1676
      %1799 = vmatpush.msra.mxu0 %v1675
      %1800 = vmatpush.msra.mxu0 %v1674
      %1801 = vmatpush.msra.mxu0 %v1673
      %1802 = vmatpush.msra.mxu0 %v1672
      %1803 = vmatpush.msra.mxu0 %v1671
      %1804 = vmatpush.msra.mxu0 %v1670
      %1805 = vmatpush.msra.mxu0 %v1669
      %1806 = vmatpush.msra.mxu0 %v1668
      %1807 = vmatpush.msra.mxu0 %v1667
      %1808 = vmatpush.msra.mxu0 %v1666
      %1809 = vmatpush.msra.mxu0 %v1665
      %1810 = vmatmul.f32.gmra.mxu0 %v1586
      %v1811 = vpop.f32.mrf.mxu0
      %v1812 = vadd.f32 %v1699, %v1811
      %1813 = vmatmul.f32.gmra.mxu0 %v1588
      %v1814 = vpop.f32.mrf.mxu0
      %v1815 = vadd.f32 %v1702, %v1814
      %1816 = vmatmul.f32.gmra.mxu0 %v1590
      %v1817 = vpop.f32.mrf.mxu0
      %v1818 = vadd.f32 %v1705, %v1817
      %1819 = vmatmul.f32.gmra.mxu0 %v1592
      %v1820 = vpop.f32.mrf.mxu0
      %v1821 = vadd.f32 %v1708, %v1820
      %1822 = vmatmul.f32.gmra.mxu0 %v1594
      %v1823 = vpop.f32.mrf.mxu0
      %v1824 = vadd.f32 %v1711, %v1823
      %1825 = vmatmul.f32.gmra.mxu0 %v1596
      %v1826 = vpop.f32.mrf.mxu0
      %v1827 = vadd.f32 %v1714, %v1826
      %1828 = vmatmul.f32.gmra.mxu0 %v1598
      %v1829 = vpop.f32.mrf.mxu0
      %v1830 = vadd.f32 %v1717, %v1829
      %1831 = vmatmul.f32.gmra.mxu0 %v1600
      %v1832 = vpop.f32.mrf.mxu0
      %v1833 = vadd.f32 %v1720, %v1832
      %1834 = vmatmul.f32.gmra.mxu0 %v1602
      %v1835 = vpop.f32.mrf.mxu0
      %v1836 = vadd.f32 %v1723, %v1835
      %1837 = vmatmul.f32.gmra.mxu0 %v1604
      %v1838 = vpop.f32.mrf.mxu0
      %v1839 = vadd.f32 %v1726, %v1838
      %1840 = vmatmul.f32.gmra.mxu0 %v1606
      %v1841 = vpop.f32.mrf.mxu0
      %v1842 = vadd.f32 %v1729, %v1841
      %1843 = vmatmul.f32.gmra.mxu0 %v1608
      %v1844 = vpop.f32.mrf.mxu0
      %v1845 = vadd.f32 %v1732, %v1844
      %1846 = vmatmul.f32.gmra.mxu0 %v1610
      %v1847 = vpop.f32.mrf.mxu0
      %v1848 = vadd.f32 %v1735, %v1847
      %1849 = vmatmul.f32.gmra.mxu0 %v1612
      %v1850 = vpop.f32.mrf.mxu0
      %v1851 = vadd.f32 %v1738, %v1850
      %1852 = vmatmul.f32.gmra.mxu0 %v1614
      %v1853 = vpop.f32.mrf.mxu0
      %v1854 = vadd.f32 %v1741, %v1853
      %1855 = vmatmul.f32.gmra.mxu0 %v1616
      %v1856 = vpop.f32.mrf.mxu0
      %v1857 = vadd.f32 %v1744, %v1856
      %1858 = vmatmul.f32.gmra.mxu0 %v1618
      %v1859 = vpop.f32.mrf.mxu0
      %v1860 = vadd.f32 %v1747, %v1859
      %1861 = vmatmul.f32.gmra.mxu0 %v1620
      %v1862 = vpop.f32.mrf.mxu0
      %v1863 = vadd.f32 %v1750, %v1862
      %1864 = vmatmul.f32.gmra.mxu0 %v1622
      %v1865 = vpop.f32.mrf.mxu0
      %v1866 = vadd.f32 %v1753, %v1865
      %1867 = vmatmul.f32.gmra.mxu0 %v1624
      %v1868 = vpop.f32.mrf.mxu0
      %v1869 = vadd.f32 %v1756, %v1868
      %1870 = vmatmul.f32.gmra.mxu0 %v1626
      %v1871 = vpop.f32.mrf.mxu0
      %v1872 = vadd.f32 %v1759, %v1871
      %1873 = vmatmul.f32.gmra.mxu0 %v1628
      %v1874 = vpop.f32.mrf.mxu0
      %v1875 = vadd.f32 %v1762, %v1874
      %1876 = vmatmul.f32.gmra.mxu0 %v1630
      %v1877 = vpop.f32.mrf.mxu0
      %v1878 = vadd.f32 %v1765, %v1877
      %1879 = vmatmul.f32.gmra.mxu0 %v1632
      %v1880 = vpop.f32.mrf.mxu0
      %v1881 = vadd.f32 %v1768, %v1880
      %1882 = vmatmul.f32.gmra.mxu0 %v1634
      %v1883 = vpop.f32.mrf.mxu0
      %v1884 = vadd.f32 %v1771, %v1883
      %1885 = vmatmul.f32.gmra.mxu0 %v1636
      %v1886 = vpop.f32.mrf.mxu0
      %v1887 = vadd.f32 %v1774, %v1886
      %1888 = vmatmul.f32.gmra.mxu0 %v1638
      %v1889 = vpop.f32.mrf.mxu0
      %v1890 = vadd.f32 %v1777, %v1889
      %1891 = vmatmul.f32.gmra.mxu0 %v1640
      %v1892 = vpop.f32.mrf.mxu0
      %v1893 = vadd.f32 %v1780, %v1892
      %1894 = vmatmul.f32.gmra.mxu0 %v1642
      %v1895 = vpop.f32.mrf.mxu0
      %v1896 = vadd.f32 %v1783, %v1895
      %1897 = vmatmul.f32.gmra.mxu0 %v1644
      %v1898 = vpop.f32.mrf.mxu0
      %v1899 = vadd.f32 %v1786, %v1898
      %1900 = vmatmul.f32.gmra.mxu0 %v1646
      %v1901 = vpop.f32.mrf.mxu0
      %v1902 = vadd.f32 %v1789, %v1901
      %1903 = vmatmul.f32.gmra.mxu0 %v1648
      %v1904 = vpop.f32.mrf.mxu0
      %v1905 = vadd.f32 %v1792, %v1904
      %1906 = vdwg.mxu0
      %s1907 = scalar_lea.vmem %s3, 256
      %v1908 = vld [vmem:[%s1907] sm:$0xff]
      %v1909 = vld [vmem:[%s1907 + $0x8] sm:$0xff]
      %v1910 = vld [vmem:[%s1907 + $0x10] sm:$0xff]
      %v1911 = vld [vmem:[%s1907 + $0x18] sm:$0xff]
      %v1912 = vld [vmem:[%s1907 + $0x20] sm:$0xff]
      %v1913 = vld [vmem:[%s1907 + $0x28] sm:$0xff]
      %v1914 = vld [vmem:[%s1907 + $0x30] sm:$0xff]
      %v1915 = vld [vmem:[%s1907 + $0x38] sm:$0xff]
      %v1916 = vld [vmem:[%s1907 + $0x40] sm:$0xff]
      %v1917 = vld [vmem:[%s1907 + $0x48] sm:$0xff]
      %v1918 = vld [vmem:[%s1907 + $0x50] sm:$0xff]
      %v1919 = vld [vmem:[%s1907 + $0x58] sm:$0xff]
      %v1920 = vld [vmem:[%s1907 + $0x60] sm:$0xff]
      %v1921 = vld [vmem:[%s1907 + $0x68] sm:$0xff]
      %v1922 = vld [vmem:[%s1907 + $0x70] sm:$0xff]
      %v1923 = vld [vmem:[%s1907 + $0x78] sm:$0xff]
      %v1924 = vld [vmem:[%s1907 + $0x80] sm:$0xff]
      %v1925 = vld [vmem:[%s1907 + $0x88] sm:$0xff]
      %v1926 = vld [vmem:[%s1907 + $0x90] sm:$0xff]
      %v1927 = vld [vmem:[%s1907 + $0x98] sm:$0xff]
      %v1928 = vld [vmem:[%s1907 + $0xa0] sm:$0xff]
      %v1929 = vld [vmem:[%s1907 + $0xa8] sm:$0xff]
      %v1930 = vld [vmem:[%s1907 + $0xb0] sm:$0xff]
      %v1931 = vld [vmem:[%s1907 + $0xb8] sm:$0xff]
      %v1932 = vld [vmem:[%s1907 + $0xc0] sm:$0xff]
      %v1933 = vld [vmem:[%s1907 + $0xc8] sm:$0xff]
      %v1934 = vld [vmem:[%s1907 + $0xd0] sm:$0xff]
      %v1935 = vld [vmem:[%s1907 + $0xd8] sm:$0xff]
      %v1936 = vld [vmem:[%s1907 + $0xe0] sm:$0xff]
      %v1937 = vld [vmem:[%s1907 + $0xe8] sm:$0xff]
      %v1938 = vld [vmem:[%s1907 + $0xf0] sm:$0xff]
      %v1939 = vld [vmem:[%s1907 + $0xf8] sm:$0xff]
      %1940 = vmatpush.msra.mxu0 %v1923
      %1941 = vmatpush.msra.mxu0 %v1922
      %1942 = vmatpush.msra.mxu0 %v1921
      %1943 = vmatpush.msra.mxu0 %v1920
      %1944 = vmatpush.msra.mxu0 %v1919
      %1945 = vmatpush.msra.mxu0 %v1918
      %1946 = vmatpush.msra.mxu0 %v1917
      %1947 = vmatpush.msra.mxu0 %v1916
      %1948 = vmatpush.msra.mxu0 %v1915
      %1949 = vmatpush.msra.mxu0 %v1914
      %1950 = vmatpush.msra.mxu0 %v1913
      %1951 = vmatpush.msra.mxu0 %v1912
      %1952 = vmatpush.msra.mxu0 %v1911
      %1953 = vmatpush.msra.mxu0 %v1910
      %1954 = vmatpush.msra.mxu0 %v1909
      %1955 = vmatpush.msra.mxu0 %v1908
      %1956 = vmatmul.f32.gmra.mxu0 %v1585
      %v1957 = vpop.f32.mrf.mxu0
      %v1958 = vadd.f32 0.0, %v1957
      %1959 = vmatmul.f32.gmra.mxu0 %v1587
      %v1960 = vpop.f32.mrf.mxu0
      %v1961 = vadd.f32 0.0, %v1960
      %1962 = vmatmul.f32.gmra.mxu0 %v1589
      %v1963 = vpop.f32.mrf.mxu0
      %v1964 = vadd.f32 0.0, %v1963
      %1965 = vmatmul.f32.gmra.mxu0 %v1591
      %v1966 = vpop.f32.mrf.mxu0
      %v1967 = vadd.f32 0.0, %v1966
      %1968 = vmatmul.f32.gmra.mxu0 %v1593
      %v1969 = vpop.f32.mrf.mxu0
      %v1970 = vadd.f32 0.0, %v1969
      %1971 = vmatmul.f32.gmra.mxu0 %v1595
      %v1972 = vpop.f32.mrf.mxu0
      %v1973 = vadd.f32 0.0, %v1972
      %1974 = vmatmul.f32.gmra.mxu0 %v1597
      %v1975 = vpop.f32.mrf.mxu0
      %v1976 = vadd.f32 0.0, %v1975
      %1977 = vmatmul.f32.gmra.mxu0 %v1599
      %v1978 = vpop.f32.mrf.mxu0
      %v1979 = vadd.f32 0.0, %v1978
      %1980 = vmatmul.f32.gmra.mxu0 %v1601
      %v1981 = vpop.f32.mrf.mxu0
      %v1982 = vadd.f32 0.0, %v1981
      %1983 = vmatmul.f32.gmra.mxu0 %v1603
      %v1984 = vpop.f32.mrf.mxu0
      %v1985 = vadd.f32 0.0, %v1984
      %1986 = vmatmul.f32.gmra.mxu0 %v1605
      %v1987 = vpop.f32.mrf.mxu0
      %v1988 = vadd.f32 0.0, %v1987
      %1989 = vmatmul.f32.gmra.mxu0 %v1607
      %v1990 = vpop.f32.mrf.mxu0
      %v1991 = vadd.f32 0.0, %v1990
      %1992 = vmatmul.f32.gmra.mxu0 %v1609
      %v1993 = vpop.f32.mrf.mxu0
      %v1994 = vadd.f32 0.0, %v1993
      %1995 = vmatmul.f32.gmra.mxu0 %v1611
      %v1996 = vpop.f32.mrf.mxu0
      %v1997 = vadd.f32 0.0, %v1996
      %1998 = vmatmul.f32.gmra.mxu0 %v1613
      %v1999 = vpop.f32.mrf.mxu0
      %v2000 = vadd.f32 0.0, %v1999
      %2001 = vmatmul.f32.gmra.mxu0 %v1615
      %v2002 = vpop.f32.mrf.mxu0
      %v2003 = vadd.f32 0.0, %v2002
      %2004 = vmatmul.f32.gmra.mxu0 %v1617
      %v2005 = vpop.f32.mrf.mxu0
      %v2006 = vadd.f32 0.0, %v2005
      %2007 = vmatmul.f32.gmra.mxu0 %v1619
      %v2008 = vpop.f32.mrf.mxu0
      %v2009 = vadd.f32 0.0, %v2008
      %2010 = vmatmul.f32.gmra.mxu0 %v1621
      %v2011 = vpop.f32.mrf.mxu0
      %v2012 = vadd.f32 0.0, %v2011
      %2013 = vmatmul.f32.gmra.mxu0 %v1623
      %v2014 = vpop.f32.mrf.mxu0
      %v2015 = vadd.f32 0.0, %v2014
      %2016 = vmatmul.f32.gmra.mxu0 %v1625
      %v2017 = vpop.f32.mrf.mxu0
      %v2018 = vadd.f32 0.0, %v2017
      %2019 = vmatmul.f32.gmra.mxu0 %v1627
      %v2020 = vpop.f32.mrf.mxu0
      %v2021 = vadd.f32 0.0, %v2020
      %2022 = vmatmul.f32.gmra.mxu0 %v1629
      %v2023 = vpop.f32.mrf.mxu0
      %v2024 = vadd.f32 0.0, %v2023
      %2025 = vmatmul.f32.gmra.mxu0 %v1631
      %v2026 = vpop.f32.mrf.mxu0
      %v2027 = vadd.f32 0.0, %v2026
      %2028 = vmatmul.f32.gmra.mxu0 %v1633
      %v2029 = vpop.f32.mrf.mxu0
      %v2030 = vadd.f32 0.0, %v2029
      %2031 = vmatmul.f32.gmra.mxu0 %v1635
      %v2032 = vpop.f32.mrf.mxu0
      %v2033 = vadd.f32 0.0, %v2032
      %2034 = vmatmul.f32.gmra.mxu0 %v1637
      %v2035 = vpop.f32.mrf.mxu0
      %v2036 = vadd.f32 0.0, %v2035
      %2037 = vmatmul.f32.gmra.mxu0 %v1639
      %v2038 = vpop.f32.mrf.mxu0
      %v2039 = vadd.f32 0.0, %v2038
      %2040 = vmatmul.f32.gmra.mxu0 %v1641
      %v2041 = vpop.f32.mrf.mxu0
      %v2042 = vadd.f32 0.0, %v2041
      %2043 = vmatmul.f32.gmra.mxu0 %v1643
      %v2044 = vpop.f32.mrf.mxu0
      %v2045 = vadd.f32 0.0, %v2044
      %2046 = vmatmul.f32.gmra.mxu0 %v1645
      %v2047 = vpop.f32.mrf.mxu0
      %v2048 = vadd.f32 0.0, %v2047
      %2049 = vmatmul.f32.gmra.mxu0 %v1647
      %v2050 = vpop.f32.mrf.mxu0
      %v2051 = vadd.f32 0.0, %v2050
      %2052 = vdwg.mxu0
      %2053 = vmatpush.msra.mxu0 %v1939
      %2054 = vmatpush.msra.mxu0 %v1938
      %2055 = vmatpush.msra.mxu0 %v1937
      %2056 = vmatpush.msra.mxu0 %v1936
      %2057 = vmatpush.msra.mxu0 %v1935
      %2058 = vmatpush.msra.mxu0 %v1934
      %2059 = vmatpush.msra.mxu0 %v1933
      %2060 = vmatpush.msra.mxu0 %v1932
      %2061 = vmatpush.msra.mxu0 %v1931
      %2062 = vmatpush.msra.mxu0 %v1930
      %2063 = vmatpush.msra.mxu0 %v1929
      %2064 = vmatpush.msra.mxu0 %v1928
      %2065 = vmatpush.msra.mxu0 %v1927
      %2066 = vmatpush.msra.mxu0 %v1926
      %2067 = vmatpush.msra.mxu0 %v1925
      %2068 = vmatpush.msra.mxu0 %v1924
      %2069 = vmatmul.f32.gmra.mxu0 %v1586
      %v2070 = vpop.f32.mrf.mxu0
      %v2071 = vadd.f32 %v1958, %v2070
      %2072 = vmatmul.f32.gmra.mxu0 %v1588
      %v2073 = vpop.f32.mrf.mxu0
      %v2074 = vadd.f32 %v1961, %v2073
      %2075 = vmatmul.f32.gmra.mxu0 %v1590
      %v2076 = vpop.f32.mrf.mxu0
      %v2077 = vadd.f32 %v1964, %v2076
      %2078 = vmatmul.f32.gmra.mxu0 %v1592
      %v2079 = vpop.f32.mrf.mxu0
      %v2080 = vadd.f32 %v1967, %v2079
      %2081 = vmatmul.f32.gmra.mxu0 %v1594
      %v2082 = vpop.f32.mrf.mxu0
      %v2083 = vadd.f32 %v1970, %v2082
      %2084 = vmatmul.f32.gmra.mxu0 %v1596
      %v2085 = vpop.f32.mrf.mxu0
      %v2086 = vadd.f32 %v1973, %v2085
      %2087 = vmatmul.f32.gmra.mxu0 %v1598
      %v2088 = vpop.f32.mrf.mxu0
      %v2089 = vadd.f32 %v1976, %v2088
      %2090 = vmatmul.f32.gmra.mxu0 %v1600
      %v2091 = vpop.f32.mrf.mxu0
      %v2092 = vadd.f32 %v1979, %v2091
      %2093 = vmatmul.f32.gmra.mxu0 %v1602
      %v2094 = vpop.f32.mrf.mxu0
      %v2095 = vadd.f32 %v1982, %v2094
      %2096 = vmatmul.f32.gmra.mxu0 %v1604
      %v2097 = vpop.f32.mrf.mxu0
      %v2098 = vadd.f32 %v1985, %v2097
      %2099 = vmatmul.f32.gmra.mxu0 %v1606
      %v2100 = vpop.f32.mrf.mxu0
      %v2101 = vadd.f32 %v1988, %v2100
      %2102 = vmatmul.f32.gmra.mxu0 %v1608
      %v2103 = vpop.f32.mrf.mxu0
      %v2104 = vadd.f32 %v1991, %v2103
      %2105 = vmatmul.f32.gmra.mxu0 %v1610
      %v2106 = vpop.f32.mrf.mxu0
      %v2107 = vadd.f32 %v1994, %v2106
      %2108 = vmatmul.f32.gmra.mxu0 %v1612
      %v2109 = vpop.f32.mrf.mxu0
      %v2110 = vadd.f32 %v1997, %v2109
      %2111 = vmatmul.f32.gmra.mxu0 %v1614
      %v2112 = vpop.f32.mrf.mxu0
      %v2113 = vadd.f32 %v2000, %v2112
      %2114 = vmatmul.f32.gmra.mxu0 %v1616
      %v2115 = vpop.f32.mrf.mxu0
      %v2116 = vadd.f32 %v2003, %v2115
      %2117 = vmatmul.f32.gmra.mxu0 %v1618
      %v2118 = vpop.f32.mrf.mxu0
      %v2119 = vadd.f32 %v2006, %v2118
      %2120 = vmatmul.f32.gmra.mxu0 %v1620
      %v2121 = vpop.f32.mrf.mxu0
      %v2122 = vadd.f32 %v2009, %v2121
      %2123 = vmatmul.f32.gmra.mxu0 %v1622
      %v2124 = vpop.f32.mrf.mxu0
      %v2125 = vadd.f32 %v2012, %v2124
      %2126 = vmatmul.f32.gmra.mxu0 %v1624
      %v2127 = vpop.f32.mrf.mxu0
      %v2128 = vadd.f32 %v2015, %v2127
      %2129 = vmatmul.f32.gmra.mxu0 %v1626
      %v2130 = vpop.f32.mrf.mxu0
      %v2131 = vadd.f32 %v2018, %v2130
      %2132 = vmatmul.f32.gmra.mxu0 %v1628
      %v2133 = vpop.f32.mrf.mxu0
      %v2134 = vadd.f32 %v2021, %v2133
      %2135 = vmatmul.f32.gmra.mxu0 %v1630
      %v2136 = vpop.f32.mrf.mxu0
      %v2137 = vadd.f32 %v2024, %v2136
      %2138 = vmatmul.f32.gmra.mxu0 %v1632
      %v2139 = vpop.f32.mrf.mxu0
      %v2140 = vadd.f32 %v2027, %v2139
      %2141 = vmatmul.f32.gmra.mxu0 %v1634
      %v2142 = vpop.f32.mrf.mxu0
      %v2143 = vadd.f32 %v2030, %v2142
      %2144 = vmatmul.f32.gmra.mxu0 %v1636
      %v2145 = vpop.f32.mrf.mxu0
      %v2146 = vadd.f32 %v2033, %v2145
      %2147 = vmatmul.f32.gmra.mxu0 %v1638
      %v2148 = vpop.f32.mrf.mxu0
      %v2149 = vadd.f32 %v2036, %v2148
      %2150 = vmatmul.f32.gmra.mxu0 %v1640
      %v2151 = vpop.f32.mrf.mxu0
      %v2152 = vadd.f32 %v2039, %v2151
      %2153 = vmatmul.f32.gmra.mxu0 %v1642
      %v2154 = vpop.f32.mrf.mxu0
      %v2155 = vadd.f32 %v2042, %v2154
      %2156 = vmatmul.f32.gmra.mxu0 %v1644
      %v2157 = vpop.f32.mrf.mxu0
      %v2158 = vadd.f32 %v2045, %v2157
      %2159 = vmatmul.f32.gmra.mxu0 %v1646
      %v2160 = vpop.f32.mrf.mxu0
      %v2161 = vadd.f32 %v2048, %v2160
      %2162 = vmatmul.f32.gmra.mxu0 %v1648
      %v2163 = vpop.f32.mrf.mxu0
      %v2164 = vadd.f32 %v2051, %v2163
      %2165 = vdwg.mxu0
      %v2166 = vmax.f32 %v1812, %v2071
      %v2167 = vmax.f32 %v1815, %v2074
      %v2168 = vmax.f32 %v1818, %v2077
      %v2169 = vmax.f32 %v1821, %v2080
      %v2170 = vmax.f32 %v1824, %v2083
      %v2171 = vmax.f32 %v1827, %v2086
      %v2172 = vmax.f32 %v1830, %v2089
      %v2173 = vmax.f32 %v1833, %v2092
      %v2174 = vmax.f32 %v1836, %v2095
      %v2175 = vmax.f32 %v1839, %v2098
      %v2176 = vmax.f32 %v1842, %v2101
      %v2177 = vmax.f32 %v1845, %v2104
      %v2178 = vmax.f32 %v1848, %v2107
      %v2179 = vmax.f32 %v1851, %v2110
      %v2180 = vmax.f32 %v1854, %v2113
      %v2181 = vmax.f32 %v1857, %v2116
      %v2182 = vmax.f32 %v1860, %v2119
      %v2183 = vmax.f32 %v1863, %v2122
      %v2184 = vmax.f32 %v1866, %v2125
      %v2185 = vmax.f32 %v1869, %v2128
      %v2186 = vmax.f32 %v1872, %v2131
      %v2187 = vmax.f32 %v1875, %v2134
      %v2188 = vmax.f32 %v1878, %v2137
      %v2189 = vmax.f32 %v1881, %v2140
      %v2190 = vmax.f32 %v1884, %v2143
      %v2191 = vmax.f32 %v1887, %v2146
      %v2192 = vmax.f32 %v1890, %v2149
      %v2193 = vmax.f32 %v1893, %v2152
      %v2194 = vmax.f32 %v1896, %v2155
      %v2195 = vmax.f32 %v1899, %v2158
      %v2196 = vmax.f32 %v1902, %v2161
      %v2197 = vmax.f32 %v1905, %v2164
      %2198 = vst [vmem:[#allocation3] sm:$0xff] %v2166
      %2199 = vst [vmem:[#allocation3 + $0x8] sm:$0xff] %v2167
      %2200 = vst [vmem:[#allocation3 + $0x10] sm:$0xff] %v2168
      %2201 = vst [vmem:[#allocation3 + $0x18] sm:$0xff] %v2169
      %2202 = vst [vmem:[#allocation3 + $0x20] sm:$0xff] %v2170
      %2203 = vst [vmem:[#allocation3 + $0x28] sm:$0xff] %v2171
      %2204 = vst [vmem:[#allocation3 + $0x30] sm:$0xff] %v2172
      %2205 = vst [vmem:[#allocation3 + $0x38] sm:$0xff] %v2173
      %2206 = vst [vmem:[#allocation3 + $0x40] sm:$0xff] %v2174
      %2207 = vst [vmem:[#allocation3 + $0x48] sm:$0xff] %v2175
      %2208 = vst [vmem:[#allocation3 + $0x50] sm:$0xff] %v2176
      %2209 = vst [vmem:[#allocation3 + $0x58] sm:$0xff] %v2177
      %2210 = vst [vmem:[#allocation3 + $0x60] sm:$0xff] %v2178
      %2211 = vst [vmem:[#allocation3 + $0x68] sm:$0xff] %v2179
      %2212 = vst [vmem:[#allocation3 + $0x70] sm:$0xff] %v2180
      %2213 = vst [vmem:[#allocation3 + $0x78] sm:$0xff] %v2181
      %2214 = vst [vmem:[#allocation3 + $0x80] sm:$0xff] %v2182
      %2215 = vst [vmem:[#allocation3 + $0x88] sm:$0xff] %v2183
      %2216 = vst [vmem:[#allocation3 + $0x90] sm:$0xff] %v2184
      %2217 = vst [vmem:[#allocation3 + $0x98] sm:$0xff] %v2185
      %2218 = vst [vmem:[#allocation3 + $0xa0] sm:$0xff] %v2186
      %2219 = vst [vmem:[#allocation3 + $0xa8] sm:$0xff] %v2187
      %2220 = vst [vmem:[#allocation3 + $0xb0] sm:$0xff] %v2188
      %2221 = vst [vmem:[#allocation3 + $0xb8] sm:$0xff] %v2189
      %2222 = vst [vmem:[#allocation3 + $0xc0] sm:$0xff] %v2190
      %2223 = vst [vmem:[#allocation3 + $0xc8] sm:$0xff] %v2191
      %2224 = vst [vmem:[#allocation3 + $0xd0] sm:$0xff] %v2192
      %2225 = vst [vmem:[#allocation3 + $0xd8] sm:$0xff] %v2193
      %2226 = vst [vmem:[#allocation3 + $0xe0] sm:$0xff] %v2194
      %2227 = vst [vmem:[#allocation3 + $0xe8] sm:$0xff] %v2195
      %2228 = vst [vmem:[#allocation3 + $0xf0] sm:$0xff] %v2196
      %2229 = vst [vmem:[#allocation3 + $0xf8] sm:$0xff] %v2197
      %2230 = vst [vmem:[#allocation4] sm:$0xff] 0.0
      %2231 = vst [vmem:[#allocation4 + $0x8] sm:$0xff] 0.0
      %2232 = vst [vmem:[#allocation4 + $0x90] sm:$0xff] 0.0
      %2233 = vst [vmem:[#allocation4 + $0x98] sm:$0xff] 0.0
      %v2234 = vld [vmem:[#allocation3] sm:$0xff]
      %v2235 = vld [vmem:[#allocation3 + $0x8] sm:$0xff]
      %v2236 = vld [vmem:[#allocation3 + $0x10] sm:$0xff]
      %v2237 = vld [vmem:[#allocation3 + $0x18] sm:$0xff]
      %v2238 = vmax.f32 %v2234, %v2236
      %v2239 = vmax.f32 %v2235, %v2237
      %2240 = vst [vmem:[#allocation4 + $0x10] sm:$0xff] %v2238
      %2241 = vst [vmem:[#allocation4 + $0x18] sm:$0xff] %v2239
      %v2242 = vld [vmem:[#allocation3 + $0x20] sm:$0xff]
      %v2243 = vld [vmem:[#allocation3 + $0x28] sm:$0xff]
      %v2244 = vld [vmem:[#allocation3 + $0x30] sm:$0xff]
      %v2245 = vld [vmem:[#allocation3 + $0x38] sm:$0xff]
      %v2246 = vmax.f32 %v2242, %v2244
      %v2247 = vmax.f32 %v2243, %v2245
      %2248 = vst [vmem:[#allocation4 + $0x20] sm:$0xff] %v2246
      %2249 = vst [vmem:[#allocation4 + $0x28] sm:$0xff] %v2247
      %v2250 = vld [vmem:[#allocation3 + $0x40] sm:$0xff]
      %v2251 = vld [vmem:[#allocation3 + $0x48] sm:$0xff]
      %v2252 = vld [vmem:[#allocation3 + $0x50] sm:$0xff]
      %v2253 = vld [vmem:[#allocation3 + $0x58] sm:$0xff]
      %v2254 = vmax.f32 %v2250, %v2252
      %v2255 = vmax.f32 %v2251, %v2253
      %2256 = vst [vmem:[#allocation4 + $0x30] sm:$0xff] %v2254
      %2257 = vst [vmem:[#allocation4 + $0x38] sm:$0xff] %v2255
      %v2258 = vld [vmem:[#allocation3 + $0x60] sm:$0xff]
      %v2259 = vld [vmem:[#allocation3 + $0x68] sm:$0xff]
      %v2260 = vld [vmem:[#allocation3 + $0x70] sm:$0xff]
      %v2261 = vld [vmem:[#allocation3 + $0x78] sm:$0xff]
      %v2262 = vmax.f32 %v2258, %v2260
      %v2263 = vmax.f32 %v2259, %v2261
      %2264 = vst [vmem:[#allocation4 + $0x40] sm:$0xff] %v2262
      %2265 = vst [vmem:[#allocation4 + $0x48] sm:$0xff] %v2263
      %v2266 = vld [vmem:[#allocation3 + $0x80] sm:$0xff]
      %v2267 = vld [vmem:[#allocation3 + $0x88] sm:$0xff]
      %v2268 = vld [vmem:[#allocation3 + $0x90] sm:$0xff]
      %v2269 = vld [vmem:[#allocation3 + $0x98] sm:$0xff]
      %v2270 = vmax.f32 %v2266, %v2268
      %v2271 = vmax.f32 %v2267, %v2269
      %2272 = vst [vmem:[#allocation4 + $0x50] sm:$0xff] %v2270
      %2273 = vst [vmem:[#allocation4 + $0x58] sm:$0xff] %v2271
      %v2274 = vld [vmem:[#allocation3 + $0xa0] sm:$0xff]
      %v2275 = vld [vmem:[#allocation3 + $0xa8] sm:$0xff]
      %v2276 = vld [vmem:[#allocation3 + $0xb0] sm:$0xff]
      %v2277 = vld [vmem:[#allocation3 + $0xb8] sm:$0xff]
      %v2278 = vmax.f32 %v2274, %v2276
      %v2279 = vmax.f32 %v2275, %v2277
      %2280 = vst [vmem:[#allocation4 + $0x60] sm:$0xff] %v2278
      %2281 = vst [vmem:[#allocation4 + $0x68] sm:$0xff] %v2279
      %v2282 = vld [vmem:[#allocation3 + $0xc0] sm:$0xff]
      %v2283 = vld [vmem:[#allocation3 + $0xc8] sm:$0xff]
      %v2284 = vld [vmem:[#allocation3 + $0xd0] sm:$0xff]
      %v2285 = vld [vmem:[#allocation3 + $0xd8] sm:$0xff]
      %v2286 = vmax.f32 %v2282, %v2284
      %v2287 = vmax.f32 %v2283, %v2285
      %2288 = vst [vmem:[#allocation4 + $0x70] sm:$0xff] %v2286
      %2289 = vst [vmem:[#allocation4 + $0x78] sm:$0xff] %v2287
      %v2290 = vld [vmem:[#allocation3 + $0xe0] sm:$0xff]
      %v2291 = vld [vmem:[#allocation3 + $0xe8] sm:$0xff]
      %v2292 = vld [vmem:[#allocation3 + $0xf0] sm:$0xff]
      %v2293 = vld [vmem:[#allocation3 + $0xf8] sm:$0xff]
      %v2294 = vmax.f32 %v2290, %v2292
      %v2295 = vmax.f32 %v2291, %v2293
      %2296 = vst [vmem:[#allocation4 + $0x80] sm:$0xff] %v2294
      %2297 = vst [vmem:[#allocation4 + $0x88] sm:$0xff] %v2295
      %v2298 = vld [vmem:[#allocation4] sm:$0xff]
      %v2299 = vld [vmem:[#allocation4 + $0x8] sm:$0xff]
      %v2300 = vld [vmem:[#allocation4 + $0x10] sm:$0xff]
      %v2301 = vld [vmem:[#allocation4 + $0x18] sm:$0xff]
      %v2302 = vld [vmem:[#allocation4 + $0x20] sm:$0xff]
      %v2303 = vld [vmem:[#allocation4 + $0x28] sm:$0xff]
      %v2304 = vld [vmem:[#allocation4 + $0x30] sm:$0xff]
      %v2305 = vld [vmem:[#allocation4 + $0x38] sm:$0xff]
      %v2306 = vld [vmem:[#allocation4 + $0x40] sm:$0xff]
      %v2307 = vld [vmem:[#allocation4 + $0x48] sm:$0xff]
      %v2308 = vld [vmem:[#allocation4 + $0x50] sm:$0xff]
      %v2309 = vld [vmem:[#allocation4 + $0x58] sm:$0xff]
      %v2310 = vld [vmem:[#allocation4 + $0x60] sm:$0xff]
      %v2311 = vld [vmem:[#allocation4 + $0x68] sm:$0xff]
      %v2312 = vld [vmem:[#allocation4 + $0x70] sm:$0xff]
      %v2313 = vld [vmem:[#allocation4 + $0x78] sm:$0xff]
      %v2314 = vld [vmem:[%s4] sm:$0xff]
      %v2315 = vld [vmem:[%s4 + $0x8] sm:$0xff]
      %v2316 = vld [vmem:[%s4 + $0x10] sm:$0xff]
      %v2317 = vld [vmem:[%s4 + $0x18] sm:$0xff]
      %v2318 = vld [vmem:[%s4 + $0x20] sm:$0xff]
      %v2319 = vld [vmem:[%s4 + $0x28] sm:$0xff]
      %v2320 = vld [vmem:[%s4 + $0x30] sm:$0xff]
      %v2321 = vld [vmem:[%s4 + $0x38] sm:$0xff]
      %v2322 = vld [vmem:[%s4 + $0x40] sm:$0xff]
      %v2323 = vld [vmem:[%s4 + $0x48] sm:$0xff]
      %v2324 = vld [vmem:[%s4 + $0x50] sm:$0xff]
      %v2325 = vld [vmem:[%s4 + $0x58] sm:$0xff]
      %v2326 = vld [vmem:[%s4 + $0x60] sm:$0xff]
      %v2327 = vld [vmem:[%s4 + $0x68] sm:$0xff]
      %v2328 = vld [vmem:[%s4 + $0x70] sm:$0xff]
      %v2329 = vld [vmem:[%s4 + $0x78] sm:$0xff]
      %v2330 = vld [vmem:[#allocation4 + $0x80] sm:$0xff]
      %v2331 = vld [vmem:[#allocation4 + $0x88] sm:$0xff]
      %s2332 = scalar_lea.vmem %s4, 128
      %v2333 = vld [vmem:[%s2332] sm:$0xff]
      %v2334 = vld [vmem:[%s2332 + $0x8] sm:$0xff]
      %v2335 = vld [vmem:[%s2332 + $0x10] sm:$0xff]
      %v2336 = vld [vmem:[%s2332 + $0x18] sm:$0xff]
      %v2337 = vld [vmem:[%s2332 + $0x20] sm:$0xff]
      %v2338 = vld [vmem:[%s2332 + $0x28] sm:$0xff]
      %v2339 = vld [vmem:[%s2332 + $0x30] sm:$0xff]
      %v2340 = vld [vmem:[%s2332 + $0x38] sm:$0xff]
      %v2341 = vld [vmem:[%s2332 + $0x40] sm:$0xff]
      %v2342 = vld [vmem:[%s2332 + $0x48] sm:$0xff]
      %v2343 = vld [vmem:[%s2332 + $0x50] sm:$0xff]
      %v2344 = vld [vmem:[%s2332 + $0x58] sm:$0xff]
      %v2345 = vld [vmem:[%s2332 + $0x60] sm:$0xff]
      %v2346 = vld [vmem:[%s2332 + $0x68] sm:$0xff]
      %v2347 = vld [vmem:[%s2332 + $0x70] sm:$0xff]
      %v2348 = vld [vmem:[%s2332 + $0x78] sm:$0xff]
      %2349 = vmatpush.msra.mxu0 %v2348
      %2350 = vmatpush.msra.mxu0 %v2347
      %2351 = vmatpush.msra.mxu0 %v2346
      %2352 = vmatpush.msra.mxu0 %v2345
      %2353 = vmatpush.msra.mxu0 %v2344
      %2354 = vmatpush.msra.mxu0 %v2343
      %2355 = vmatpush.msra.mxu0 %v2342
      %2356 = vmatpush.msra.mxu0 %v2341
      %2357 = vmatpush.msra.mxu0 %v2340
      %2358 = vmatpush.msra.mxu0 %v2339
      %2359 = vmatpush.msra.mxu0 %v2338
      %2360 = vmatpush.msra.mxu0 %v2337
      %2361 = vmatpush.msra.mxu0 %v2336
      %2362 = vmatpush.msra.mxu0 %v2335
      %2363 = vmatpush.msra.mxu0 %v2334
      %2364 = vmatpush.msra.mxu0 %v2333
      %2365 = vmatmul.f32.gmra.mxu0 %v2300
      %v2366 = vpop.f32.mrf.mxu0
      %v2367 = vadd.f32 0.0, %v2366
      %2368 = vmatmul.f32.gmra.mxu0 %v2301
      %v2369 = vpop.f32.mrf.mxu0
      %v2370 = vadd.f32 0.0, %v2369
      %2371 = vmatmul.f32.gmra.mxu0 %v2302
      %v2372 = vpop.f32.mrf.mxu0
      %v2373 = vadd.f32 0.0, %v2372
      %2374 = vmatmul.f32.gmra.mxu0 %v2303
      %v2375 = vpop.f32.mrf.mxu0
      %v2376 = vadd.f32 0.0, %v2375
      %2377 = vmatmul.f32.gmra.mxu0 %v2304
      %v2378 = vpop.f32.mrf.mxu0
      %v2379 = vadd.f32 0.0, %v2378
      %2380 = vmatmul.f32.gmra.mxu0 %v2305
      %v2381 = vpop.f32.mrf.mxu0
      %v2382 = vadd.f32 0.0, %v2381
      %2383 = vmatmul.f32.gmra.mxu0 %v2306
      %v2384 = vpop.f32.mrf.mxu0
      %v2385 = vadd.f32 0.0, %v2384
      %2386 = vmatmul.f32.gmra.mxu0 %v2307
      %v2387 = vpop.f32.mrf.mxu0
      %v2388 = vadd.f32 0.0, %v2387
      %2389 = vmatmul.f32.gmra.mxu0 %v2308
      %v2390 = vpop.f32.mrf.mxu0
      %v2391 = vadd.f32 0.0, %v2390
      %2392 = vmatmul.f32.gmra.mxu0 %v2309
      %v2393 = vpop.f32.mrf.mxu0
      %v2394 = vadd.f32 0.0, %v2393
      %2395 = vmatmul.f32.gmra.mxu0 %v2310
      %v2396 = vpop.f32.mrf.mxu0
      %v2397 = vadd.f32 0.0, %v2396
      %2398 = vmatmul.f32.gmra.mxu0 %v2311
      %v2399 = vpop.f32.mrf.mxu0
      %v2400 = vadd.f32 0.0, %v2399
      %2401 = vmatmul.f32.gmra.mxu0 %v2312
      %v2402 = vpop.f32.mrf.mxu0
      %v2403 = vadd.f32 0.0, %v2402
      %2404 = vmatmul.f32.gmra.mxu0 %v2313
      %v2405 = vpop.f32.mrf.mxu0
      %v2406 = vadd.f32 0.0, %v2405
      %2407 = vmatmul.f32.gmra.mxu0 %v2330
      %v2408 = vpop.f32.mrf.mxu0
      %v2409 = vadd.f32 0.0, %v2408
      %2410 = vmatmul.f32.gmra.mxu0 %v2331
      %v2411 = vpop.f32.mrf.mxu0
      %v2412 = vadd.f32 0.0, %v2411
      %2413 = vdwg.mxu0
      %2414 = vmatpush.msra.mxu0 %v2329
      %2415 = vmatpush.msra.mxu0 %v2328
      %2416 = vmatpush.msra.mxu0 %v2327
      %2417 = vmatpush.msra.mxu0 %v2326
      %2418 = vmatpush.msra.mxu0 %v2325
      %2419 = vmatpush.msra.mxu0 %v2324
      %2420 = vmatpush.msra.mxu0 %v2323
      %2421 = vmatpush.msra.mxu0 %v2322
      %2422 = vmatpush.msra.mxu0 %v2321
      %2423 = vmatpush.msra.mxu0 %v2320
      %2424 = vmatpush.msra.mxu0 %v2319
      %2425 = vmatpush.msra.mxu0 %v2318
      %2426 = vmatpush.msra.mxu0 %v2317
      %2427 = vmatpush.msra.mxu0 %v2316
      %2428 = vmatpush.msra.mxu0 %v2315
      %2429 = vmatpush.msra.mxu0 %v2314
      %2430 = vmatmul.f32.gmra.mxu0 %v2298
      %v2431 = vpop.f32.mrf.mxu0
      %v2432 = vadd.f32 %v2367, %v2431
      %2433 = vmatmul.f32.gmra.mxu0 %v2299
      %v2434 = vpop.f32.mrf.mxu0
      %v2435 = vadd.f32 %v2370, %v2434
      %2436 = vmatmul.f32.gmra.mxu0 %v2300
      %v2437 = vpop.f32.mrf.mxu0
      %v2438 = vadd.f32 %v2373, %v2437
      %2439 = vmatmul.f32.gmra.mxu0 %v2301
      %v2440 = vpop.f32.mrf.mxu0
      %v2441 = vadd.f32 %v2376, %v2440
      %2442 = vmatmul.f32.gmra.mxu0 %v2302
      %v2443 = vpop.f32.mrf.mxu0
      %v2444 = vadd.f32 %v2379, %v2443
      %2445 = vmatmul.f32.gmra.mxu0 %v2303
      %v2446 = vpop.f32.mrf.mxu0
      %v2447 = vadd.f32 %v2382, %v2446
      %2448 = vmatmul.f32.gmra.mxu0 %v2304
      %v2449 = vpop.f32.mrf.mxu0
      %v2450 = vadd.f32 %v2385, %v2449
      %2451 = vmatmul.f32.gmra.mxu0 %v2305
      %v2452 = vpop.f32.mrf.mxu0
      %v2453 = vadd.f32 %v2388, %v2452
      %2454 = vmatmul.f32.gmra.mxu0 %v2306
      %v2455 = vpop.f32.mrf.mxu0
      %v2456 = vadd.f32 %v2391, %v2455
      %2457 = vmatmul.f32.gmra.mxu0 %v2307
      %v2458 = vpop.f32.mrf.mxu0
      %v2459 = vadd.f32 %v2394, %v2458
      %2460 = vmatmul.f32.gmra.mxu0 %v2308
      %v2461 = vpop.f32.mrf.mxu0
      %v2462 = vadd.f32 %v2397, %v2461
      %2463 = vmatmul.f32.gmra.mxu0 %v2309
      %v2464 = vpop.f32.mrf.mxu0
      %v2465 = vadd.f32 %v2400, %v2464
      %2466 = vmatmul.f32.gmra.mxu0 %v2310
      %v2467 = vpop.f32.mrf.mxu0
      %v2468 = vadd.f32 %v2403, %v2467
      %2469 = vmatmul.f32.gmra.mxu0 %v2311
      %v2470 = vpop.f32.mrf.mxu0
      %v2471 = vadd.f32 %v2406, %v2470
      %2472 = vmatmul.f32.gmra.mxu0 %v2312
      %v2473 = vpop.f32.mrf.mxu0
      %v2474 = vadd.f32 %v2409, %v2473
      %2475 = vmatmul.f32.gmra.mxu0 %v2313
      %v2476 = vpop.f32.mrf.mxu0
      %v2477 = vadd.f32 %v2412, %v2476
      %2478 = vdwg.mxu0
      %v2479 = vld [vmem:[#allocation4 + $0x20] sm:$0xff]
      %v2480 = vld [vmem:[#allocation4 + $0x28] sm:$0xff]
      %v2481 = vld [vmem:[#allocation4 + $0x30] sm:$0xff]
      %v2482 = vld [vmem:[#allocation4 + $0x38] sm:$0xff]
      %v2483 = vld [vmem:[#allocation4 + $0x40] sm:$0xff]
      %v2484 = vld [vmem:[#allocation4 + $0x48] sm:$0xff]
      %v2485 = vld [vmem:[#allocation4 + $0x50] sm:$0xff]
      %v2486 = vld [vmem:[#allocation4 + $0x58] sm:$0xff]
      %v2487 = vld [vmem:[#allocation4 + $0x60] sm:$0xff]
      %v2488 = vld [vmem:[#allocation4 + $0x68] sm:$0xff]
      %v2489 = vld [vmem:[#allocation4 + $0x70] sm:$0xff]
      %v2490 = vld [vmem:[#allocation4 + $0x78] sm:$0xff]
      %v2491 = vld [vmem:[#allocation4 + $0x80] sm:$0xff]
      %v2492 = vld [vmem:[#allocation4 + $0x88] sm:$0xff]
      %v2493 = vld [vmem:[#allocation4 + $0x90] sm:$0xff]
      %v2494 = vld [vmem:[#allocation4 + $0x98] sm:$0xff]
      %s2495 = scalar_lea.vmem %s4, 256
      %v2496 = vld [vmem:[%s2495] sm:$0xff]
      %v2497 = vld [vmem:[%s2495 + $0x8] sm:$0xff]
      %v2498 = vld [vmem:[%s2495 + $0x10] sm:$0xff]
      %v2499 = vld [vmem:[%s2495 + $0x18] sm:$0xff]
      %v2500 = vld [vmem:[%s2495 + $0x20] sm:$0xff]
      %v2501 = vld [vmem:[%s2495 + $0x28] sm:$0xff]
      %v2502 = vld [vmem:[%s2495 + $0x30] sm:$0xff]
      %v2503 = vld [vmem:[%s2495 + $0x38] sm:$0xff]
      %v2504 = vld [vmem:[%s2495 + $0x40] sm:$0xff]
      %v2505 = vld [vmem:[%s2495 + $0x48] sm:$0xff]
      %v2506 = vld [vmem:[%s2495 + $0x50] sm:$0xff]
      %v2507 = vld [vmem:[%s2495 + $0x58] sm:$0xff]
      %v2508 = vld [vmem:[%s2495 + $0x60] sm:$0xff]
      %v2509 = vld [vmem:[%s2495 + $0x68] sm:$0xff]
      %v2510 = vld [vmem:[%s2495 + $0x70] sm:$0xff]
      %v2511 = vld [vmem:[%s2495 + $0x78] sm:$0xff]
      %2512 = vmatpush.msra.mxu0 %v2511
      %2513 = vmatpush.msra.mxu0 %v2510
      %2514 = vmatpush.msra.mxu0 %v2509
      %2515 = vmatpush.msra.mxu0 %v2508
      %2516 = vmatpush.msra.mxu0 %v2507
      %2517 = vmatpush.msra.mxu0 %v2506
      %2518 = vmatpush.msra.mxu0 %v2505
      %2519 = vmatpush.msra.mxu0 %v2504
      %2520 = vmatpush.msra.mxu0 %v2503
      %2521 = vmatpush.msra.mxu0 %v2502
      %2522 = vmatpush.msra.mxu0 %v2501
      %2523 = vmatpush.msra.mxu0 %v2500
      %2524 = vmatpush.msra.mxu0 %v2499
      %2525 = vmatpush.msra.mxu0 %v2498
      %2526 = vmatpush.msra.mxu0 %v2497
      %2527 = vmatpush.msra.mxu0 %v2496
      %2528 = vmatmul.f32.gmra.mxu0 %v2479
      %v2529 = vpop.f32.mrf.mxu0
      %v2530 = vadd.f32 0.0, %v2529
      %2531 = vmatmul.f32.gmra.mxu0 %v2480
      %v2532 = vpop.f32.mrf.mxu0
      %v2533 = vadd.f32 0.0, %v2532
      %2534 = vmatmul.f32.gmra.mxu0 %v2481
      %v2535 = vpop.f32.mrf.mxu0
      %v2536 = vadd.f32 0.0, %v2535
      %2537 = vmatmul.f32.gmra.mxu0 %v2482
      %v2538 = vpop.f32.mrf.mxu0
      %v2539 = vadd.f32 0.0, %v2538
      %2540 = vmatmul.f32.gmra.mxu0 %v2483
      %v2541 = vpop.f32.mrf.mxu0
      %v2542 = vadd.f32 0.0, %v2541
      %2543 = vmatmul.f32.gmra.mxu0 %v2484
      %v2544 = vpop.f32.mrf.mxu0
      %v2545 = vadd.f32 0.0, %v2544
      %2546 = vmatmul.f32.gmra.mxu0 %v2485
      %v2547 = vpop.f32.mrf.mxu0
      %v2548 = vadd.f32 0.0, %v2547
      %2549 = vmatmul.f32.gmra.mxu0 %v2486
      %v2550 = vpop.f32.mrf.mxu0
      %v2551 = vadd.f32 0.0, %v2550
      %2552 = vmatmul.f32.gmra.mxu0 %v2487
      %v2553 = vpop.f32.mrf.mxu0
      %v2554 = vadd.f32 0.0, %v2553
      %2555 = vmatmul.f32.gmra.mxu0 %v2488
      %v2556 = vpop.f32.mrf.mxu0
      %v2557 = vadd.f32 0.0, %v2556
      %2558 = vmatmul.f32.gmra.mxu0 %v2489
      %v2559 = vpop.f32.mrf.mxu0
      %v2560 = vadd.f32 0.0, %v2559
      %2561 = vmatmul.f32.gmra.mxu0 %v2490
      %v2562 = vpop.f32.mrf.mxu0
      %v2563 = vadd.f32 0.0, %v2562
      %2564 = vmatmul.f32.gmra.mxu0 %v2491
      %v2565 = vpop.f32.mrf.mxu0
      %v2566 = vadd.f32 0.0, %v2565
      %2567 = vmatmul.f32.gmra.mxu0 %v2492
      %v2568 = vpop.f32.mrf.mxu0
      %v2569 = vadd.f32 0.0, %v2568
      %2570 = vmatmul.f32.gmra.mxu0 %v2493
      %v2571 = vpop.f32.mrf.mxu0
      %v2572 = vadd.f32 0.0, %v2571
      %2573 = vmatmul.f32.gmra.mxu0 %v2494
      %v2574 = vpop.f32.mrf.mxu0
      %v2575 = vadd.f32 0.0, %v2574
      %2576 = vdwg.mxu0
      %v2577 = vadd.f32 %v2432, %v2530
      %v2578 = vadd.f32 %v2435, %v2533
      %v2579 = vadd.f32 %v2438, %v2536
      %v2580 = vadd.f32 %v2441, %v2539
      %v2581 = vadd.f32 %v2444, %v2542
      %v2582 = vadd.f32 %v2447, %v2545
      %v2583 = vadd.f32 %v2450, %v2548
      %v2584 = vadd.f32 %v2453, %v2551
      %v2585 = vadd.f32 %v2456, %v2554
      %v2586 = vadd.f32 %v2459, %v2557
      %v2587 = vadd.f32 %v2462, %v2560
      %v2588 = vadd.f32 %v2465, %v2563
      %v2589 = vadd.f32 %v2468, %v2566
      %v2590 = vadd.f32 %v2471, %v2569
      %v2591 = vadd.f32 %v2474, %v2572
      %v2592 = vadd.f32 %v2477, %v2575
      %v2593 = vld [vmem:[%s5] sm:$0x1]
      %v2595 = vperm.slane %v2593, 0
      %v2597 = vadd.f32 %v2577, %v2595
      %v2598 = vadd.f32 %v2578, %v2595
      %v2599 = vadd.f32 %v2579, %v2595
      %v2600 = vadd.f32 %v2580, %v2595
      %v2601 = vadd.f32 %v2581, %v2595
      %v2602 = vadd.f32 %v2582, %v2595
      %v2603 = vadd.f32 %v2583, %v2595
      %v2604 = vadd.f32 %v2584, %v2595
      %v2605 = vadd.f32 %v2585, %v2595
      %v2606 = vadd.f32 %v2586, %v2595
      %v2607 = vadd.f32 %v2587, %v2595
      %v2608 = vadd.f32 %v2588, %v2595
      %v2609 = vadd.f32 %v2589, %v2595
      %v2610 = vadd.f32 %v2590, %v2595
      %v2611 = vadd.f32 %v2591, %v2595
      %v2612 = vadd.f32 %v2592, %v2595
      %v2613 = vtanh.pop %v2597
      %v2614 = vtanh.pop %v2598
      %v2615 = vtanh.pop %v2599
      %v2616 = vtanh.pop %v2600
      %v2617 = vtanh.pop %v2601
      %v2618 = vtanh.pop %v2602
      %v2619 = vtanh.pop %v2603
      %v2620 = vtanh.pop %v2604
      %v2621 = vtanh.pop %v2605
      %v2622 = vtanh.pop %v2606
      %v2623 = vtanh.pop %v2607
      %v2624 = vtanh.pop %v2608
      %v2625 = vtanh.pop %v2609
      %v2626 = vtanh.pop %v2610
      %v2627 = vtanh.pop %v2611
      %v2628 = vtanh.pop %v2612
      %v2629 = vld [vmem:[%s6] sm:$0xff]
      %v2630 = vld [vmem:[%s6 + $0x8] sm:$0xff]
      %v2631 = vld [vmem:[%s6 + $0x10] sm:$0xff]
      %v2632 = vld [vmem:[%s6 + $0x18] sm:$0xff]
      %v2633 = vld [vmem:[%s6 + $0x20] sm:$0xff]
      %v2634 = vld [vmem:[%s6 + $0x28] sm:$0xff]
      %v2635 = vld [vmem:[%s6 + $0x30] sm:$0xff]
      %v2636 = vld [vmem:[%s6 + $0x38] sm:$0xff]
      %v2638 = vsel %vm390, %v2613, 0
      %v2641 = vsel %vm390, %v2614, 0
      %v2644 = vsel %vm390, %v2615, 0
      %v2647 = vsel %vm390, %v2616, 0
      %v2650 = vsel %vm390, %v2617, 0
      %v2653 = vsel %vm390, %v2618, 0
      %v2656 = vsel %vm390, %v2619, 0
      %v2659 = vsel %vm390, %v2620, 0
      %v2662 = vsel %vm390, %v2621, 0
      %v2665 = vsel %vm390, %v2622, 0
      %v2668 = vsel %vm390, %v2623, 0
      %v2671 = vsel %vm390, %v2624, 0
      %v2674 = vsel %vm390, %v2625, 0
      %v2677 = vsel %vm390, %v2626, 0
      %v2680 = vsel %vm390, %v2627, 0
      %v2683 = vsel %vm390, %v2628, 0
      %2685 = vmatpush.msra.mxu0 0.0
      %2686 = vmatpush.msra.mxu0 0.0
      %2687 = vmatpush.msra.mxu0 0.0
      %2688 = vmatpush.msra.mxu0 0.0
      %2689 = vmatpush.msra.mxu0 0.0
      %2690 = vmatpush.msra.mxu0 0.0
      %2691 = vmatpush.msra.mxu0 0.0
      %2692 = vmatpush.msra.mxu0 0.0
      %2693 = vmatpush.msra.mxu0 %v2636
      %2694 = vmatpush.msra.mxu0 %v2635
      %2695 = vmatpush.msra.mxu0 %v2634
      %2696 = vmatpush.msra.mxu0 %v2633
      %2697 = vmatpush.msra.mxu0 %v2632
      %2698 = vmatpush.msra.mxu0 %v2631
      %2699 = vmatpush.msra.mxu0 %v2630
      %2700 = vmatpush.msra.mxu0 %v2629
      %2701 = vmatmul.f32.gmra.mxu0 %v2638
      %v2702 = vpop.f32.mrf.mxu0
      %v2703 = vadd.f32 0.0, %v2702
      %2704 = vmatmul.f32.gmra.mxu0 %v2641
      %v2705 = vpop.f32.mrf.mxu0
      %v2706 = vadd.f32 0.0, %v2705
      %2707 = vmatmul.f32.gmra.mxu0 %v2644
      %v2708 = vpop.f32.mrf.mxu0
      %v2709 = vadd.f32 0.0, %v2708
      %2710 = vmatmul.f32.gmra.mxu0 %v2647
      %v2711 = vpop.f32.mrf.mxu0
      %v2712 = vadd.f32 0.0, %v2711
      %2713 = vmatmul.f32.gmra.mxu0 %v2650
      %v2714 = vpop.f32.mrf.mxu0
      %v2715 = vadd.f32 0.0, %v2714
      %2716 = vmatmul.f32.gmra.mxu0 %v2653
      %v2717 = vpop.f32.mrf.mxu0
      %v2718 = vadd.f32 0.0, %v2717
      %2719 = vmatmul.f32.gmra.mxu0 %v2656
      %v2720 = vpop.f32.mrf.mxu0
      %v2721 = vadd.f32 0.0, %v2720
      %2722 = vmatmul.f32.gmra.mxu0 %v2659
      %v2723 = vpop.f32.mrf.mxu0
      %v2724 = vadd.f32 0.0, %v2723
      %2725 = vmatmul.f32.gmra.mxu0 %v2662
      %v2726 = vpop.f32.mrf.mxu0
      %v2727 = vadd.f32 0.0, %v2726
      %2728 = vmatmul.f32.gmra.mxu0 %v2665
      %v2729 = vpop.f32.mrf.mxu0
      %v2730 = vadd.f32 0.0, %v2729
      %2731 = vmatmul.f32.gmra.mxu0 %v2668
      %v2732 = vpop.f32.mrf.mxu0
      %v2733 = vadd.f32 0.0, %v2732
      %2734 = vmatmul.f32.gmra.mxu0 %v2671
      %v2735 = vpop.f32.mrf.mxu0
      %v2736 = vadd.f32 0.0, %v2735
      %2737 = vmatmul.f32.gmra.mxu0 %v2674
      %v2738 = vpop.f32.mrf.mxu0
      %v2739 = vadd.f32 0.0, %v2738
      %2740 = vmatmul.f32.gmra.mxu0 %v2677
      %v2741 = vpop.f32.mrf.mxu0
      %v2742 = vadd.f32 0.0, %v2741
      %2743 = vmatmul.f32.gmra.mxu0 %v2680
      %v2744 = vpop.f32.mrf.mxu0
      %v2745 = vadd.f32 0.0, %v2744
      %2746 = vmatmul.f32.gmra.mxu0 %v2683
      %v2747 = vpop.f32.mrf.mxu0
      %v2748 = vadd.f32 0.0, %v2747
      %2749 = vdwg.mxu0
      %s2750 = scalar_lea.vmem %s6, 64
      %v2751 = vld [vmem:[%s2750] sm:$0xff]
      %v2752 = vld [vmem:[%s2750 + $0x8] sm:$0xff]
      %v2753 = vld [vmem:[%s2750 + $0x10] sm:$0xff]
      %v2754 = vld [vmem:[%s2750 + $0x18] sm:$0xff]
      %v2755 = vld [vmem:[%s2750 + $0x20] sm:$0xff]
      %v2756 = vld [vmem:[%s2750 + $0x28] sm:$0xff]
      %v2757 = vld [vmem:[%s2750 + $0x30] sm:$0xff]
      %v2758 = vld [vmem:[%s2750 + $0x38] sm:$0xff]
      %2759 = vmatpush.msra.mxu0 0.0
      %2760 = vmatpush.msra.mxu0 0.0
      %2761 = vmatpush.msra.mxu0 0.0
      %2762 = vmatpush.msra.mxu0 0.0
      %2763 = vmatpush.msra.mxu0 0.0
      %2764 = vmatpush.msra.mxu0 0.0
      %2765 = vmatpush.msra.mxu0 0.0
      %2766 = vmatpush.msra.mxu0 0.0
      %2767 = vmatpush.msra.mxu0 %v2758
      %2768 = vmatpush.msra.mxu0 %v2757
      %2769 = vmatpush.msra.mxu0 %v2756
      %2770 = vmatpush.msra.mxu0 %v2755
      %2771 = vmatpush.msra.mxu0 %v2754
      %2772 = vmatpush.msra.mxu0 %v2753
      %2773 = vmatpush.msra.mxu0 %v2752
      %2774 = vmatpush.msra.mxu0 %v2751
      %2775 = vmatmul.f32.gmra.mxu0 %v2638
      %v2776 = vpop.f32.mrf.mxu0
      %v2777 = vadd.f32 0.0, %v2776
      %2778 = vmatmul.f32.gmra.mxu0 %v2641
      %v2779 = vpop.f32.mrf.mxu0
      %v2780 = vadd.f32 0.0, %v2779
      %2781 = vmatmul.f32.gmra.mxu0 %v2644
      %v2782 = vpop.f32.mrf.mxu0
      %v2783 = vadd.f32 0.0, %v2782
      %2784 = vmatmul.f32.gmra.mxu0 %v2647
      %v2785 = vpop.f32.mrf.mxu0
      %v2786 = vadd.f32 0.0, %v2785
      %2787 = vmatmul.f32.gmra.mxu0 %v2650
      %v2788 = vpop.f32.mrf.mxu0
      %v2789 = vadd.f32 0.0, %v2788
      %2790 = vmatmul.f32.gmra.mxu0 %v2653
      %v2791 = vpop.f32.mrf.mxu0
      %v2792 = vadd.f32 0.0, %v2791
      %2793 = vmatmul.f32.gmra.mxu0 %v2656
      %v2794 = vpop.f32.mrf.mxu0
      %v2795 = vadd.f32 0.0, %v2794
      %2796 = vmatmul.f32.gmra.mxu0 %v2659
      %v2797 = vpop.f32.mrf.mxu0
      %v2798 = vadd.f32 0.0, %v2797
      %2799 = vmatmul.f32.gmra.mxu0 %v2662
      %v2800 = vpop.f32.mrf.mxu0
      %v2801 = vadd.f32 0.0, %v2800
      %2802 = vmatmul.f32.gmra.mxu0 %v2665
      %v2803 = vpop.f32.mrf.mxu0
      %v2804 = vadd.f32 0.0, %v2803
      %2805 = vmatmul.f32.gmra.mxu0 %v2668
      %v2806 = vpop.f32.mrf.mxu0
      %v2807 = vadd.f32 0.0, %v2806
      %2808 = vmatmul.f32.gmra.mxu0 %v2671
      %v2809 = vpop.f32.mrf.mxu0
      %v2810 = vadd.f32 0.0, %v2809
      %2811 = vmatmul.f32.gmra.mxu0 %v2674
      %v2812 = vpop.f32.mrf.mxu0
      %v2813 = vadd.f32 0.0, %v2812
      %2814 = vmatmul.f32.gmra.mxu0 %v2677
      %v2815 = vpop.f32.mrf.mxu0
      %v2816 = vadd.f32 0.0, %v2815
      %2817 = vmatmul.f32.gmra.mxu0 %v2680
      %v2818 = vpop.f32.mrf.mxu0
      %v2819 = vadd.f32 0.0, %v2818
      %2820 = vmatmul.f32.gmra.mxu0 %v2683
      %v2821 = vpop.f32.mrf.mxu0
      %v2822 = vadd.f32 0.0, %v2821
      %2823 = vdwg.mxu0
      %v2824 = vmax.f32 %v2703, %v2777
      %v2825 = vmax.f32 %v2706, %v2780
      %v2826 = vmax.f32 %v2709, %v2783
      %v2827 = vmax.f32 %v2712, %v2786
      %v2828 = vmax.f32 %v2715, %v2789
      %v2829 = vmax.f32 %v2718, %v2792
      %v2830 = vmax.f32 %v2721, %v2795
      %v2831 = vmax.f32 %v2724, %v2798
      %v2832 = vmax.f32 %v2727, %v2801
      %v2833 = vmax.f32 %v2730, %v2804
      %v2834 = vmax.f32 %v2733, %v2807
      %v2835 = vmax.f32 %v2736, %v2810
      %v2836 = vmax.f32 %v2739, %v2813
      %v2837 = vmax.f32 %v2742, %v2816
      %v2838 = vmax.f32 %v2745, %v2819
      %v2839 = vmax.f32 %v2748, %v2822
      %vm2840 = vcmask 261120
      %2841 = vst.msk [vmem:[#allocation5] sm:$0xff] %vm2840, %v2824
      %2842 = vst.msk [vmem:[#allocation5 + $0x8] sm:$0xff] %vm2840, %v2825
      %2843 = vst.msk [vmem:[#allocation5 + $0x10] sm:$0xff] %vm2840, %v2826
      %2844 = vst.msk [vmem:[#allocation5 + $0x18] sm:$0xff] %vm2840, %v2827
      %2845 = vst.msk [vmem:[#allocation5 + $0x20] sm:$0xff] %vm2840, %v2828
      %2846 = vst.msk [vmem:[#allocation5 + $0x28] sm:$0xff] %vm2840, %v2829
      %2847 = vst.msk [vmem:[#allocation5 + $0x30] sm:$0xff] %vm2840, %v2830
      %2848 = vst.msk [vmem:[#allocation5 + $0x38] sm:$0xff] %vm2840, %v2831
      %2849 = vst.msk [vmem:[#allocation5 + $0x40] sm:$0xff] %vm2840, %v2832
      %2850 = vst.msk [vmem:[#allocation5 + $0x48] sm:$0xff] %vm2840, %v2833
      %2851 = vst.msk [vmem:[#allocation5 + $0x50] sm:$0xff] %vm2840, %v2834
      %2852 = vst.msk [vmem:[#allocation5 + $0x58] sm:$0xff] %vm2840, %v2835
      %2853 = vst.msk [vmem:[#allocation5 + $0x60] sm:$0xff] %vm2840, %v2836
      %2854 = vst.msk [vmem:[#allocation5 + $0x68] sm:$0xff] %vm2840, %v2837
      %2855 = vst.msk [vmem:[#allocation5 + $0x70] sm:$0xff] %vm2840, %v2838
      %2856 = vst.msk [vmem:[#allocation5 + $0x78] sm:$0xff] %vm2840, %v2839
      %v2857 = vld [vmem:[#allocation5] sm:$0xff]
      %v2858 = vld [vmem:[#allocation5 + $0x8] sm:$0xff]
      %v2859 = vld [vmem:[#allocation5 + $0x10] sm:$0xff]
      %v2860 = vld [vmem:[#allocation5 + $0x18] sm:$0xff]
      %v2861 = vmax.f32 %v2857, %v2859
      %v2862 = vmax.f32 %v2858, %v2860
      %v2863 = vld [vmem:[%s7] sm:$0xff]
      %v2864 = vld [vmem:[%s7 + $0x8] sm:$0xff]
      %v2865 = vld [vmem:[%s7 + $0x10] sm:$0xff]
      %v2866 = vld [vmem:[%s7 + $0x18] sm:$0xff]
      %v2867 = vld [vmem:[#allocation5 + $0x20] sm:$0xff]
      %v2868 = vld [vmem:[#allocation5 + $0x28] sm:$0xff]
      %v2869 = vld [vmem:[#allocation5 + $0x30] sm:$0xff]
      %v2870 = vld [vmem:[#allocation5 + $0x38] sm:$0xff]
      %v2871 = vmax.f32 %v2867, %v2869
      %v2872 = vmax.f32 %v2868, %v2870
      %s2873 = scalar_lea.vmem %s7, 32
      %v2874 = vld [vmem:[%s2873] sm:$0xff]
      %v2875 = vld [vmem:[%s2873 + $0x8] sm:$0xff]
      %v2876 = vld [vmem:[%s2873 + $0x10] sm:$0xff]
      %v2877 = vld [vmem:[%s2873 + $0x18] sm:$0xff]
      %v2879 = vsel %vm2840, %v2871, 0
      %v2882 = vsel %vm2840, %v2872, 0
      %2884 = vmatpush.msra.mxu0 0.0
      %2885 = vmatpush.msra.mxu0 0.0
      %2886 = vmatpush.msra.mxu0 0.0
      %2887 = vmatpush.msra.mxu0 0.0
      %2888 = vmatpush.msra.mxu0 0.0
      %2889 = vmatpush.msra.mxu0 0.0
      %2890 = vmatpush.msra.mxu0 0.0
      %2891 = vmatpush.msra.mxu0 0.0
      %2892 = vmatpush.msra.mxu0 0.0
      %2893 = vmatpush.msra.mxu0 0.0
      %2894 = vmatpush.msra.mxu0 0.0
      %2895 = vmatpush.msra.mxu0 0.0
      %2896 = vmatpush.msra.mxu0 %v2877
      %2897 = vmatpush.msra.mxu0 %v2876
      %2898 = vmatpush.msra.mxu0 %v2875
      %2899 = vmatpush.msra.mxu0 %v2874
      %2900 = vmatmul.f32.gmra.mxu0 %v2879
      %v2901 = vpop.f32.mrf.mxu0
      %v2902 = vadd.f32 0.0, %v2901
      %2903 = vmatmul.f32.gmra.mxu0 %v2882
      %v2904 = vpop.f32.mrf.mxu0
      %v2905 = vadd.f32 0.0, %v2904
      %2906 = vdwg.mxu0
      %v2908 = vsel %vm2840, %v2861, 0
      %v2911 = vsel %vm2840, %v2862, 0
      %2913 = vmatpush.msra.mxu0 0.0
      %2914 = vmatpush.msra.mxu0 0.0
      %2915 = vmatpush.msra.mxu0 0.0
      %2916 = vmatpush.msra.mxu0 0.0
      %2917 = vmatpush.msra.mxu0 0.0
      %2918 = vmatpush.msra.mxu0 0.0
      %2919 = vmatpush.msra.mxu0 0.0
      %2920 = vmatpush.msra.mxu0 0.0
      %2921 = vmatpush.msra.mxu0 0.0
      %2922 = vmatpush.msra.mxu0 0.0
      %2923 = vmatpush.msra.mxu0 0.0
      %2924 = vmatpush.msra.mxu0 0.0
      %2925 = vmatpush.msra.mxu0 %v2866
      %2926 = vmatpush.msra.mxu0 %v2865
      %2927 = vmatpush.msra.mxu0 %v2864
      %2928 = vmatpush.msra.mxu0 %v2863
      %2929 = vmatmul.f32.gmra.mxu0 %v2908
      %v2930 = vpop.f32.mrf.mxu0
      %v2931 = vadd.f32 %v2902, %v2930
      %2932 = vmatmul.f32.gmra.mxu0 %v2911
      %v2933 = vpop.f32.mrf.mxu0
      %v2934 = vadd.f32 %v2905, %v2933
      %2935 = vdwg.mxu0
      %v2936 = vld [vmem:[#allocation5 + $0x40] sm:$0xff]
      %v2937 = vld [vmem:[#allocation5 + $0x48] sm:$0xff]
      %v2938 = vld [vmem:[#allocation5 + $0x50] sm:$0xff]
      %v2939 = vld [vmem:[#allocation5 + $0x58] sm:$0xff]
      %v2940 = vmax.f32 %v2936, %v2938
      %v2941 = vmax.f32 %v2937, %v2939
      %s2942 = scalar_lea.vmem %s7, 64
      %v2943 = vld [vmem:[%s2942] sm:$0xff]
      %v2944 = vld [vmem:[%s2942 + $0x8] sm:$0xff]
      %v2945 = vld [vmem:[%s2942 + $0x10] sm:$0xff]
      %v2946 = vld [vmem:[%s2942 + $0x18] sm:$0xff]
      %v2948 = vsel %vm2840, %v2940, 0
      %v2951 = vsel %vm2840, %v2941, 0
      %2953 = vmatpush.msra.mxu0 0.0
      %2954 = vmatpush.msra.mxu0 0.0
      %2955 = vmatpush.msra.mxu0 0.0
      %2956 = vmatpush.msra.mxu0 0.0
      %2957 = vmatpush.msra.mxu0 0.0
      %2958 = vmatpush.msra.mxu0 0.0
      %2959 = vmatpush.msra.mxu0 0.0
      %2960 = vmatpush.msra.mxu0 0.0
      %2961 = vmatpush.msra.mxu0 0.0
      %2962 = vmatpush.msra.mxu0 0.0
      %2963 = vmatpush.msra.mxu0 0.0
      %2964 = vmatpush.msra.mxu0 0.0
      %2965 = vmatpush.msra.mxu0 %v2946
      %2966 = vmatpush.msra.mxu0 %v2945
      %2967 = vmatpush.msra.mxu0 %v2944
      %2968 = vmatpush.msra.mxu0 %v2943
      %2969 = vmatmul.f32.gmra.mxu0 %v2948
      %v2970 = vpop.f32.mrf.mxu0
      %v2971 = vadd.f32 0.0, %v2970
      %2972 = vmatmul.f32.gmra.mxu0 %v2951
      %v2973 = vpop.f32.mrf.mxu0
      %v2974 = vadd.f32 0.0, %v2973
      %2975 = vdwg.mxu0
      %v2976 = vadd.f32 %v2931, %v2971
      %v2977 = vadd.f32 %v2934, %v2974
      %v2978 = vld [vmem:[#allocation5 + $0x60] sm:$0xff]
      %v2979 = vld [vmem:[#allocation5 + $0x68] sm:$0xff]
      %v2980 = vld [vmem:[#allocation5 + $0x70] sm:$0xff]
      %v2981 = vld [vmem:[#allocation5 + $0x78] sm:$0xff]
      %v2982 = vmax.f32 %v2978, %v2980
      %v2983 = vmax.f32 %v2979, %v2981
      %s2984 = scalar_lea.vmem %s7, 96
      %v2985 = vld [vmem:[%s2984] sm:$0xff]
      %v2986 = vld [vmem:[%s2984 + $0x8] sm:$0xff]
      %v2987 = vld [vmem:[%s2984 + $0x10] sm:$0xff]
      %v2988 = vld [vmem:[%s2984 + $0x18] sm:$0xff]
      %v2990 = vsel %vm2840, %v2982, 0
      %v2993 = vsel %vm2840, %v2983, 0
      %2995 = vmatpush.msra.mxu0 0.0
      %2996 = vmatpush.msra.mxu0 0.0
      %2997 = vmatpush.msra.mxu0 0.0
      %2998 = vmatpush.msra.mxu0 0.0
      %2999 = vmatpush.msra.mxu0 0.0
      %3000 = vmatpush.msra.mxu0 0.0
      %3001 = vmatpush.msra.mxu0 0.0
      %3002 = vmatpush.msra.mxu0 0.0
      %3003 = vmatpush.msra.mxu0 0.0
      %3004 = vmatpush.msra.mxu0 0.0
      %3005 = vmatpush.msra.mxu0 0.0
      %3006 = vmatpush.msra.mxu0 0.0
      %3007 = vmatpush.msra.mxu0 %v2988
      %3008 = vmatpush.msra.mxu0 %v2987
      %3009 = vmatpush.msra.mxu0 %v2986
      %3010 = vmatpush.msra.mxu0 %v2985
      %3011 = vmatmul.f32.gmra.mxu0 %v2990
      %v3012 = vpop.f32.mrf.mxu0
      %v3013 = vadd.f32 0.0, %v3012
      %3014 = vmatmul.f32.gmra.mxu0 %v2993
      %v3015 = vpop.f32.mrf.mxu0
      %v3016 = vadd.f32 0.0, %v3015
      %3017 = vdwg.mxu0
      %v3018 = vadd.f32 %v2976, %v3013
      %v3019 = vadd.f32 %v2977, %v3016
      %v3020 = vld [vmem:[%s8] sm:$0x1]
      %v3022 = vperm.slane %v3020, 0
      %v3024 = vadd.f32 %v3018, %v3022
      %v3025 = vadd.f32 %v3019, %v3022
      %v3026 = vtanh.pop %v3024
      %v3027 = vtanh.pop %v3025
      %v3028 = vld [vmem:[%s9] sm:$0xff]
      %v3029 = vld [vmem:[%s9 + $0x8] sm:$0xff]
      %v3030 = vld [vmem:[%s9 + $0x10] sm:$0xff]
      %v3031 = vld [vmem:[%s9 + $0x18] sm:$0xff]
      %v3032 = vld [vmem:[%s10] sm:$0x1]
      %v3034 = vperm.slane %v3032, 0
      %v3037 = vsel %vm2840, %v3026, 0
      %v3040 = vsel %vm2840, %v3027, 0
      %3042 = vmatpush.msra.mxu0 0.0
      %3043 = vmatpush.msra.mxu0 0.0
      %3044 = vmatpush.msra.mxu0 0.0
      %3045 = vmatpush.msra.mxu0 0.0
      %3046 = vmatpush.msra.mxu0 0.0
      %3047 = vmatpush.msra.mxu0 0.0
      %3048 = vmatpush.msra.mxu0 0.0
      %3049 = vmatpush.msra.mxu0 0.0
      %3050 = vmatpush.msra.mxu0 0.0
      %3051 = vmatpush.msra.mxu0 0.0
      %3052 = vmatpush.msra.mxu0 0.0
      %3053 = vmatpush.msra.mxu0 0.0
      %3054 = vmatpush.msra.mxu0 %v3031
      %3055 = vmatpush.msra.mxu0 %v3030
      %3056 = vmatpush.msra.mxu0 %v3029
      %3057 = vmatpush.msra.mxu0 %v3028
      %3058 = vmatmul.f32.gmra.mxu0 %v3037
      %v3059 = vpop.f32.mrf.mxu0
      %v3060 = vadd.f32 %v3034, %v3059
      %3061 = vmatmul.f32.gmra.mxu0 %v3040
      %v3062 = vpop.f32.mrf.mxu0
      %v3063 = vadd.f32 %v3034, %v3062
      %3064 = vdwg.mxu0
      %vm3065 = vcmask 80896
      %3066 = vst.msk [vmem:[%s388] sm:$0xff] %vm3065, %v3060
      %3067 = vst.msk [vmem:[%s388 + $0x8] sm:$0xff] %vm3065, %v3063
      %s3068 = smul.u32 2, %s22
      %p3069 = scmp.lt.s32.totalorder %s3068, 3
      %s3070 = scalar_select %p3069, %s3068, 3
      %s3071 = smul.addr %s3070, 8
      %s3072 = scalar_lea.vmem %s11, %s3071
      // Predicated region
      $region65: #{tpu_custom_call.1} parent=63 // pred_check
        %p3073 = pneg %p276
      $region66: #{tpu_custom_call.1} parent=63 // pred_check_branch
        %3075 = sbr.rel (%p3073) target = $region68
      $region67: #{tpu_custom_call.1} parent=63 // pred_region
        %s3076 = smul.u32 2, %s22
      $region68: #{tpu_custom_call.1} parent=63 // pred_fallthru
        _
    $region64: #{tpu_custom_call.1} parent=5 // pred_fallthru
      _
    %p3077 = scmp.le.s32.totalorder 2, %s17
    // Predicated region
    $region69: #{tpu_custom_call.1} parent=5 // pred_check
      %p3078 = pneg %p3077
    $region70: #{tpu_custom_call.1} parent=5 // pred_check_branch
      %3080 = sbr.rel (%p3078) target = $region72
    $region71: #{tpu_custom_call.1} parent=5 // pred_region
      %s3081 = ssub.s32 %s17, 2
      // Predicated region
      $region73: #{tpu_custom_call.1} parent=71 // pred_check
        %p3082 = pneg %p282
      $region74: #{tpu_custom_call.1} parent=71 // pred_check_branch
        %3084 = sbr.rel (%p3082) target = $region76
      $region75: #{tpu_custom_call.1} parent=71 // pred_region
        %s3085 = smul.u32 2, %s23
        %p3086 = scmp.lt.s32.totalorder %s3085, 3
        %s3087 = scalar_select %p3086, %s3085, 3
        %s3088 = smul.addr %s3087, 8
        %s3089 = scalar_lea.vmem %s11, %s3088
      $region76: #{tpu_custom_call.1} parent=71 // pred_fallthru
        _
    $region72: #{tpu_custom_call.1} parent=5 // pred_fallthru
      _
  $region6: #{tpu_custom_call.1} parent=0 // loop_footer
    %s21 = sadd.s32 1, %s17
  $region7: #{tpu_custom_call.1} parent=0 // loop_footer_branch
    %16 = sbr.rel target = $region3
  $region8: #{tpu_custom_call.1} parent=0 // loop_exit
    _

</llo_original>
